<compile_context>
chip_gen: v5e
topology: v5e:2x2
jax: 0.10.0
libtpu: 0.0.40
codegen_flags: <defaults>
</compile_context>

<pallas_src>
import jax
import jax.numpy as jnp
from jax.experimental import pallas as pl
from jax.experimental.pallas import tpu as pltpu

LANE = 128
SUB = 8


def _pick_row_block(H, target):
    """Largest divisor of H that is <= target (falls back to H)."""
    if target is None or target >= H:
        return H
    for hb in range(min(target, H), 0, -1):
        if H % hb == 0:
            return hb
    return H


def basic_block_forward(x_nchw, params, eps=1e-5, row_block=8):
    """BasicBlock forward (stride=1, downsample=None). x_nchw: (N, C, H, W)."""
    w1, g1, be1, rm1, rv1, w2, g2, be2, rm2, rv2 = params
    N, C, H, W = x_nchw.shape
    Cout = w1.shape[0]
    assert C == Cout, "downsample=None requires inplanes == planes"

    Cp = max(LANE, ((C + LANE - 1) // LANE) * LANE)        # lane-dense channels
    Wp = ((W + SUB - 1) // SUB) * SUB                      # sublane-aligned width
    HB = _pick_row_block(H, row_block)                     # divisor of H
    NH = H // HB
    HB2 = HB + 2

    # NCHW -> NHWC
    x = jnp.transpose(x_nchw, (0, 2, 3, 1)).astype(jnp.float32)
    # bf16 conv-path input: 2 rows top/bottom (conv pad + row-block halo),
    # 1 col left + (1 + Wp - W) cols right, channels padded to Cp.
    xp = jnp.pad(x.astype(jnp.bfloat16),
                 ((0, 0), (2, 2), (1, 1 + Wp - W), (0, Cp - C)))
    # f32 residual in an aligned row-block layout (no halo, no shifted slices).
    xr = jnp.pad(x, ((0, 0), (0, 0), (0, Wp - W), (0, Cp - C)))

    def prep(w, g, be, rm, rv):
        inv = g / jnp.sqrt(rv + eps)                                # (Cout,)
        wh = jnp.transpose(w, (2, 3, 1, 0)).astype(jnp.float32)     # HWIO
        wh = wh * inv[None, None, None, :]                          # fold BN scale (f32)
        wh = jnp.pad(wh, ((0, 0), (0, 0), (0, Cp - C), (0, Cp - Cout)))
        wf = wh.reshape(9, Cp, Cp).astype(jnp.bfloat16)             # tap-major
        b = jnp.pad(be - rm * inv, (0, Cp - Cout)).reshape(1, Cp)
        return wf, b.astype(jnp.float32)

    w1f, b1 = prep(w1, g1, be1, rm1, rv1)
    w2f, b2 = prep(w2, g2, be2, rm2, rv2)

    def kernel(x_ref, r_ref, w1_ref, b1_ref, w2_ref, b2_ref, o_ref):
        h = pl.program_id(1)
        r0 = pl.multiple_of(h * HB, HB)

        # Haloed bf16 input rows covering conv1's receptive field of the block.
        x3 = x_ref[0, pl.ds(r0, HB + 4)]                    # (HB+4, Wp+2, Cp)

        # ---- conv1 (BN scale folded into weights): 9 accumulating matmuls ----
        acc1 = jnp.zeros((HB2 * Wp, Cp), jnp.float32)
        for ky in range(3):
            for kx in range(3):
                tap = x3[ky:ky + HB2, kx:kx + Wp, :].reshape(HB2 * Wp, Cp)
                acc1 = acc1 + jnp.dot(tap, w1_ref[ky * 3 + kx],
                                      preferred_element_type=jnp.float32)

        # bn1 bias + relu
        mid = jnp.maximum(acc1 + b1_ref[...], 0.0)
        mid = mid.astype(jnp.bfloat16).reshape(HB2, Wp, Cp)

        if Wp != W:
            # conv2 reads mid column W for its output column W-1; it must be
            # zero (SAME pad of the W-wide intermediate). Static branch.
            col = jax.lax.broadcasted_iota(jnp.int32, (1, Wp, 1), 1)
            mid = jnp.where(col < W, mid, jnp.zeros_like(mid))

        # conv2 vertical SAME padding: zero halo rows only at image boundaries.
        keep_top = jnp.where(h > 0, 1.0, 0.0).astype(jnp.bfloat16)
        keep_bot = jnp.where(h < pl.num_programs(1) - 1, 1.0, 0.0).astype(jnp.bfloat16)
        top = mid[:1] * keep_top
        bot = mid[HB2 - 1:] * keep_bot
        mid = jnp.concatenate([top, mid[1:HB2 - 1], bot], axis=0)

        # conv2 horizontal SAME padding (value-level, no scratch round trip).
        zcol = jnp.zeros((HB2, 1, Cp), jnp.bfloat16)
        midp = jnp.concatenate([zcol, mid, zcol], axis=1)   # (HB2, Wp+2, Cp)

        # ---- conv2: 9 accumulating matmuls ----
        acc2 = jnp.zeros((HB * Wp, Cp), jnp.float32)
        for ky in range(3):
            for kx in range(3):
                tap = midp[ky:ky + HB, kx:kx + Wp, :].reshape(HB * Wp, Cp)
                acc2 = acc2 + jnp.dot(tap, w2_ref[ky * 3 + kx],
                                      preferred_element_type=jnp.float32)

        # ---- bn2 bias + residual (f32) + relu ----
        residual = r_ref[0].reshape(HB * Wp, Cp)
        out = jnp.maximum(acc2 + b2_ref[...] + residual, 0.0)
        o_ref[0] = out.reshape(HB, Wp, Cp).astype(o_ref.dtype)

    out = pl.pallas_call(
        kernel,
        out_shape=jax.ShapeDtypeStruct((N, H, Wp, Cp), jnp.float32),
        grid=(N, NH),
        in_specs=[
            pl.BlockSpec((1, H + 4, Wp + 2, Cp), lambda b, h: (b, 0, 0, 0)),
            pl.BlockSpec((1, HB, Wp, Cp), lambda b, h: (b, h, 0, 0)),
            pl.BlockSpec((9, Cp, Cp), lambda b, h: (0, 0, 0)),
            pl.BlockSpec((1, Cp), lambda b, h: (0, 0)),
            pl.BlockSpec((9, Cp, Cp), lambda b, h: (0, 0, 0)),
            pl.BlockSpec((1, Cp), lambda b, h: (0, 0)),
        ],
        out_specs=pl.BlockSpec((1, HB, Wp, Cp), lambda b, h: (b, h, 0, 0)),
        compiler_params=pltpu.CompilerParams(
            dimension_semantics=("parallel", "parallel"),
            vmem_limit_bytes=32 * 1024 * 1024),
    )(xp, xr, w1f, b1, w2f, b2)

    return jnp.transpose(out[:, :, :W, :C], (0, 3, 1, 2))   # back to NCHW


def basic_block_reference(x_nchw, params, eps=1e-5):
    """Pure-JAX f32 reference (same inference-BN semantics)."""
    w1, g1, be1, rm1, rv1, w2, g2, be2, rm2, rv2 = params
    x = jnp.transpose(x_nchw, (0, 2, 3, 1)).astype(jnp.float32)
    w1h = jnp.transpose(w1, (2, 3, 1, 0)).astype(jnp.float32)
    w2h = jnp.transpose(w2, (2, 3, 1, 0)).astype(jnp.float32)

    def conv(inp, w):
        return jax.lax.conv_general_dilated(
            inp, w, window_strides=(1, 1), padding="SAME",
            dimension_numbers=("NHWC", "HWIO", "NHWC"))

    def bn(o, g, be, rm, rv):
        inv = g / jnp.sqrt(rv + eps)
        return o * inv + (be - rm * inv)

    o = jnp.maximum(bn(conv(x, w1h), g1, be1, rm1, rv1), 0.0)
    o = bn(conv(o, w2h), g2, be2, rm2, rv2)
    o = jnp.maximum(o + x, 0.0)
    return jnp.transpose(o, (0, 3, 1, 2))


def make_params(key, inplanes, planes):
    k = jax.random.split(key, 8)
    w1 = 0.1 * jax.random.normal(k[0], (planes, inplanes, 3, 3), jnp.float32)
    w2 = 0.1 * jax.random.normal(k[1], (planes, planes, 3, 3), jnp.float32)
    g1 = 1.0 + 0.1 * jax.random.normal(k[2], (planes,), jnp.float32)
    be1 = 0.05 * jax.random.normal(k[3], (planes,), jnp.float32)
    rm1 = 0.1 * jax.random.normal(k[4], (planes,), jnp.float32)
    rv1 = 1.0 + 0.1 * jax.random.uniform(k[5], (planes,), jnp.float32)
    g2 = 1.0 + 0.1 * jax.random.normal(k[6], (planes,), jnp.float32)
    be2 = 0.05 * jax.random.normal(k[7], (planes,), jnp.float32)
    rm2 = jnp.zeros((planes,), jnp.float32)
    rv2 = jnp.ones((planes,), jnp.float32)
    return (w1, g1, be1, rm1, rv1, w2, g2, be2, rm2, rv2)


if __name__ == "__main__":
    key = jax.random.PRNGKey(0)
    kx, kp = jax.random.split(key)

    N, C, H, W = 2, 8, 16, 16            # inplanes == planes == 8, stride=1
    x = jax.random.normal(kx, (N, C, H, W), jnp.float32)
    params = make_params(kp, C, C)

    out = jax.block_until_ready(basic_block_forward(x, params))
    ref = basic_block_reference(x, params)

    assert out.shape == (N, C, H, W)
    # bf16 MXU inputs with f32 accumulation -> loose tolerance vs f32 reference
    err = float(jnp.max(jnp.abs(out - ref)))
    assert jnp.allclose(out, ref, atol=5e-2, rtol=5e-2), err
    print("KERNEL_OK")
</pallas_src>

<mosaic_0001>
module attributes {stable_mosaic.version = 11 : i64} {
  func.func @kernel(%arg0: i32, %arg1: i32, %arg2: memref<1x20x18x128xbf16, #tpu.memory_space<vmem>>, %arg3: memref<1x8x16x128xf32, #tpu.memory_space<vmem>>, %arg4: memref<9x128x128xbf16, #tpu.memory_space<vmem>>, %arg5: memref<1x128xf32, #tpu.memory_space<vmem>>, %arg6: memref<9x128x128xbf16, #tpu.memory_space<vmem>>, %arg7: memref<1x128xf32, #tpu.memory_space<vmem>>, %arg8: memref<1x8x16x128xf32, #tpu.memory_space<vmem>>) attributes {dimension_semantics = [#tpu.dimension_semantics<parallel>, #tpu.dimension_semantics<parallel>], iteration_bounds = array<i64: 2, 2>, scalar_prefetch = 0 : i64, scratch_operands = 0 : i64, tpu.core_type = #tpu.core_type<tc>, window_params = [{transform_indices = @transform_0, window_bounds = array<i64: 1, 20, 18, 128>}, {transform_indices = @transform_1, window_bounds = array<i64: 1, 8, 16, 128>}, {pipeline_mode = #tpu.pipeline_mode<synchronous>, transform_indices = @transform_2, window_bounds = array<i64: 9, 128, 128>}, {pipeline_mode = #tpu.pipeline_mode<synchronous>, transform_indices = @transform_3, window_bounds = array<i64: 1, 128>}, {pipeline_mode = #tpu.pipeline_mode<synchronous>, transform_indices = @transform_4, window_bounds = array<i64: 9, 128, 128>}, {pipeline_mode = #tpu.pipeline_mode<synchronous>, transform_indices = @transform_5, window_bounds = array<i64: 1, 128>}, {transform_indices = @transform_6, window_bounds = array<i64: 1, 8, 16, 128>}]} {
    %c8_i32 = arith.constant 8 : i32
    %0 = arith.muli %arg1, %c8_i32 : i32
    %1 = tpu.assume_multiple %0, 8 : i32
    %c0 = arith.constant 0 : index
    %2 = arith.index_cast %1 : i32 to index
    %c0_0 = arith.constant 0 : index
    %c0_1 = arith.constant 0 : index
    %3 = vector.load %arg2[%c0, %2, %c0_0, %c0_1] : memref<1x20x18x128xbf16, #tpu.memory_space<vmem>>, vector<1x12x18x128xbf16>
    %4 = vector.shape_cast %3 : vector<1x12x18x128xbf16> to vector<12x18x128xbf16>
    %cst = arith.constant 0.000000e+00 : f32
    %5 = vector.broadcast %cst : f32 to vector<160x128xf32>
    %6 = vector.extract_strided_slice %4 {offsets = [0, 0, 0], sizes = [10, 16, 128], strides = [1, 1, 1]} : vector<12x18x128xbf16> to vector<10x16x128xbf16>
    %7 = vector.shape_cast %6 : vector<10x16x128xbf16> to vector<160x128xbf16>
    %c0_2 = arith.constant 0 : index
    %c0_3 = arith.constant 0 : index
    %c0_4 = arith.constant 0 : index
    %8 = vector.load %arg4[%c0_2, %c0_3, %c0_4] : memref<9x128x128xbf16, #tpu.memory_space<vmem>>, vector<1x128x128xbf16>
    %9 = vector.shape_cast %8 : vector<1x128x128xbf16> to vector<128x128xbf16>
    %cst_5 = arith.constant dense<0.000000e+00> : vector<160x128xf32>
    %10 = tpu.matmul %7, %9, %cst_5 {dimension_numbers = #tpu.dot_dimension_numbers<[1], [0], [0], [1], [0, 0, 1, 1], [], []>} : vector<160x128xbf16>, vector<128x128xbf16>, vector<160x128xf32> -> vector<160x128xf32>
    %11 = arith.addf %5, %10 : vector<160x128xf32>
    %12 = vector.extract_strided_slice %4 {offsets = [0, 1, 0], sizes = [10, 16, 128], strides = [1, 1, 1]} : vector<12x18x128xbf16> to vector<10x16x128xbf16>
    %13 = vector.shape_cast %12 : vector<10x16x128xbf16> to vector<160x128xbf16>
    %c1 = arith.constant 1 : index
    %c0_6 = arith.constant 0 : index
    %c0_7 = arith.constant 0 : index
    %14 = vector.load %arg4[%c1, %c0_6, %c0_7] : memref<9x128x128xbf16, #tpu.memory_space<vmem>>, vector<1x128x128xbf16>
    %15 = vector.shape_cast %14 : vector<1x128x128xbf16> to vector<128x128xbf16>
    %cst_8 = arith.constant dense<0.000000e+00> : vector<160x128xf32>
    %16 = tpu.matmul %13, %15, %cst_8 {dimension_numbers = #tpu.dot_dimension_numbers<[1], [0], [0], [1], [0, 0, 1, 1], [], []>} : vector<160x128xbf16>, vector<128x128xbf16>, vector<160x128xf32> -> vector<160x128xf32>
    %17 = arith.addf %11, %16 : vector<160x128xf32>
    %18 = vector.extract_strided_slice %4 {offsets = [0, 2, 0], sizes = [10, 16, 128], strides = [1, 1, 1]} : vector<12x18x128xbf16> to vector<10x16x128xbf16>
    %19 = vector.shape_cast %18 : vector<10x16x128xbf16> to vector<160x128xbf16>
    %c2 = arith.constant 2 : index
    %c0_9 = arith.constant 0 : index
    %c0_10 = arith.constant 0 : index
    %20 = vector.load %arg4[%c2, %c0_9, %c0_10] : memref<9x128x128xbf16, #tpu.memory_space<vmem>>, vector<1x128x128xbf16>
    %21 = vector.shape_cast %20 : vector<1x128x128xbf16> to vector<128x128xbf16>
    %cst_11 = arith.constant dense<0.000000e+00> : vector<160x128xf32>
    %22 = tpu.matmul %19, %21, %cst_11 {dimension_numbers = #tpu.dot_dimension_numbers<[1], [0], [0], [1], [0, 0, 1, 1], [], []>} : vector<160x128xbf16>, vector<128x128xbf16>, vector<160x128xf32> -> vector<160x128xf32>
    %23 = arith.addf %17, %22 : vector<160x128xf32>
    %24 = vector.extract_strided_slice %4 {offsets = [1, 0, 0], sizes = [10, 16, 128], strides = [1, 1, 1]} : vector<12x18x128xbf16> to vector<10x16x128xbf16>
    %25 = vector.shape_cast %24 : vector<10x16x128xbf16> to vector<160x128xbf16>
    %c3 = arith.constant 3 : index
    %c0_12 = arith.constant 0 : index
    %c0_13 = arith.constant 0 : index
    %26 = vector.load %arg4[%c3, %c0_12, %c0_13] : memref<9x128x128xbf16, #tpu.memory_space<vmem>>, vector<1x128x128xbf16>
    %27 = vector.shape_cast %26 : vector<1x128x128xbf16> to vector<128x128xbf16>
    %cst_14 = arith.constant dense<0.000000e+00> : vector<160x128xf32>
    %28 = tpu.matmul %25, %27, %cst_14 {dimension_numbers = #tpu.dot_dimension_numbers<[1], [0], [0], [1], [0, 0, 1, 1], [], []>} : vector<160x128xbf16>, vector<128x128xbf16>, vector<160x128xf32> -> vector<160x128xf32>
    %29 = arith.addf %23, %28 : vector<160x128xf32>
    %30 = vector.extract_strided_slice %4 {offsets = [1, 1, 0], sizes = [10, 16, 128], strides = [1, 1, 1]} : vector<12x18x128xbf16> to vector<10x16x128xbf16>
    %31 = vector.shape_cast %30 : vector<10x16x128xbf16> to vector<160x128xbf16>
    %c4 = arith.constant 4 : index
    %c0_15 = arith.constant 0 : index
    %c0_16 = arith.constant 0 : index
    %32 = vector.load %arg4[%c4, %c0_15, %c0_16] : memref<9x128x128xbf16, #tpu.memory_space<vmem>>, vector<1x128x128xbf16>
    %33 = vector.shape_cast %32 : vector<1x128x128xbf16> to vector<128x128xbf16>
    %cst_17 = arith.constant dense<0.000000e+00> : vector<160x128xf32>
    %34 = tpu.matmul %31, %33, %cst_17 {dimension_numbers = #tpu.dot_dimension_numbers<[1], [0], [0], [1], [0, 0, 1, 1], [], []>} : vector<160x128xbf16>, vector<128x128xbf16>, vector<160x128xf32> -> vector<160x128xf32>
    %35 = arith.addf %29, %34 : vector<160x128xf32>
    %36 = vector.extract_strided_slice %4 {offsets = [1, 2, 0], sizes = [10, 16, 128], strides = [1, 1, 1]} : vector<12x18x128xbf16> to vector<10x16x128xbf16>
    %37 = vector.shape_cast %36 : vector<10x16x128xbf16> to vector<160x128xbf16>
    %c5 = arith.constant 5 : index
    %c0_18 = arith.constant 0 : index
    %c0_19 = arith.constant 0 : index
    %38 = vector.load %arg4[%c5, %c0_18, %c0_19] : memref<9x128x128xbf16, #tpu.memory_space<vmem>>, vector<1x128x128xbf16>
    %39 = vector.shape_cast %38 : vector<1x128x128xbf16> to vector<128x128xbf16>
    %cst_20 = arith.constant dense<0.000000e+00> : vector<160x128xf32>
    %40 = tpu.matmul %37, %39, %cst_20 {dimension_numbers = #tpu.dot_dimension_numbers<[1], [0], [0], [1], [0, 0, 1, 1], [], []>} : vector<160x128xbf16>, vector<128x128xbf16>, vector<160x128xf32> -> vector<160x128xf32>
    %41 = arith.addf %35, %40 : vector<160x128xf32>
    %42 = vector.extract_strided_slice %4 {offsets = [2, 0, 0], sizes = [10, 16, 128], strides = [1, 1, 1]} : vector<12x18x128xbf16> to vector<10x16x128xbf16>
    %43 = vector.shape_cast %42 : vector<10x16x128xbf16> to vector<160x128xbf16>
    %c6 = arith.constant 6 : index
    %c0_21 = arith.constant 0 : index
    %c0_22 = arith.constant 0 : index
    %44 = vector.load %arg4[%c6, %c0_21, %c0_22] : memref<9x128x128xbf16, #tpu.memory_space<vmem>>, vector<1x128x128xbf16>
    %45 = vector.shape_cast %44 : vector<1x128x128xbf16> to vector<128x128xbf16>
    %cst_23 = arith.constant dense<0.000000e+00> : vector<160x128xf32>
    %46 = tpu.matmul %43, %45, %cst_23 {dimension_numbers = #tpu.dot_dimension_numbers<[1], [0], [0], [1], [0, 0, 1, 1], [], []>} : vector<160x128xbf16>, vector<128x128xbf16>, vector<160x128xf32> -> vector<160x128xf32>
    %47 = arith.addf %41, %46 : vector<160x128xf32>
    %48 = vector.extract_strided_slice %4 {offsets = [2, 1, 0], sizes = [10, 16, 128], strides = [1, 1, 1]} : vector<12x18x128xbf16> to vector<10x16x128xbf16>
    %49 = vector.shape_cast %48 : vector<10x16x128xbf16> to vector<160x128xbf16>
    %c7 = arith.constant 7 : index
    %c0_24 = arith.constant 0 : index
    %c0_25 = arith.constant 0 : index
    %50 = vector.load %arg4[%c7, %c0_24, %c0_25] : memref<9x128x128xbf16, #tpu.memory_space<vmem>>, vector<1x128x128xbf16>
    %51 = vector.shape_cast %50 : vector<1x128x128xbf16> to vector<128x128xbf16>
    %cst_26 = arith.constant dense<0.000000e+00> : vector<160x128xf32>
    %52 = tpu.matmul %49, %51, %cst_26 {dimension_numbers = #tpu.dot_dimension_numbers<[1], [0], [0], [1], [0, 0, 1, 1], [], []>} : vector<160x128xbf16>, vector<128x128xbf16>, vector<160x128xf32> -> vector<160x128xf32>
    %53 = arith.addf %47, %52 : vector<160x128xf32>
    %54 = vector.extract_strided_slice %4 {offsets = [2, 2, 0], sizes = [10, 16, 128], strides = [1, 1, 1]} : vector<12x18x128xbf16> to vector<10x16x128xbf16>
    %55 = vector.shape_cast %54 : vector<10x16x128xbf16> to vector<160x128xbf16>
    %c8 = arith.constant 8 : index
    %c0_27 = arith.constant 0 : index
    %c0_28 = arith.constant 0 : index
    %56 = vector.load %arg4[%c8, %c0_27, %c0_28] : memref<9x128x128xbf16, #tpu.memory_space<vmem>>, vector<1x128x128xbf16>
    %57 = vector.shape_cast %56 : vector<1x128x128xbf16> to vector<128x128xbf16>
    %cst_29 = arith.constant dense<0.000000e+00> : vector<160x128xf32>
    %58 = tpu.matmul %55, %57, %cst_29 {dimension_numbers = #tpu.dot_dimension_numbers<[1], [0], [0], [1], [0, 0, 1, 1], [], []>} : vector<160x128xbf16>, vector<128x128xbf16>, vector<160x128xf32> -> vector<160x128xf32>
    %59 = arith.addf %53, %58 : vector<160x128xf32>
    %c0_30 = arith.constant 0 : index
    %c0_31 = arith.constant 0 : index
    %60 = vector.load %arg5[%c0_30, %c0_31] : memref<1x128xf32, #tpu.memory_space<vmem>>, vector<1x128xf32>
    %61 = vector.broadcast %60 : vector<1x128xf32> to vector<160x128xf32>
    %62 = arith.addf %59, %61 : vector<160x128xf32>
    %cst_32 = arith.constant 0.000000e+00 : f32
    %63 = vector.broadcast %cst_32 : f32 to vector<160x128xf32>
    %64 = arith.maximumf %62, %63 : vector<160x128xf32>
    %65 = arith.truncf %64 : vector<160x128xf32> to vector<160x128xbf16>
    %66 = vector.shape_cast %65 : vector<160x128xbf16> to vector<10x16x128xbf16>
    %c0_i32 = arith.constant 0 : i32
    %67 = arith.cmpi sgt, %arg1, %c0_i32 : i32
    %cst_33 = arith.constant 1.000000e+00 : f32
    %cst_34 = arith.constant 0.000000e+00 : f32
    %68 = arith.select %67, %cst_33, %cst_34 : f32
    %69 = arith.truncf %68 : f32 to bf16
    %c1_i32 = arith.constant 1 : i32
    %70 = arith.cmpi slt, %arg1, %c1_i32 : i32
    %cst_35 = arith.constant 1.000000e+00 : f32
    %cst_36 = arith.constant 0.000000e+00 : f32
    %71 = arith.select %70, %cst_35, %cst_36 : f32
    %72 = arith.truncf %71 : f32 to bf16
    %73 = vector.extract_strided_slice %66 {offsets = [0, 0, 0], sizes = [1, 16, 128], strides = [1, 1, 1]} : vector<10x16x128xbf16> to vector<1x16x128xbf16>
    %74 = vector.broadcast %69 : bf16 to vector<1x16x128xbf16>
    %75 = arith.mulf %73, %74 : vector<1x16x128xbf16>
    %76 = vector.extract_strided_slice %66 {offsets = [9, 0, 0], sizes = [1, 16, 128], strides = [1, 1, 1]} : vector<10x16x128xbf16> to vector<1x16x128xbf16>
    %77 = vector.broadcast %72 : bf16 to vector<1x16x128xbf16>
    %78 = arith.mulf %76, %77 : vector<1x16x128xbf16>
    %79 = vector.extract_strided_slice %66 {offsets = [1, 0, 0], sizes = [8, 16, 128], strides = [1, 1, 1]} : vector<10x16x128xbf16> to vector<8x16x128xbf16>
    %80 = tpu.concatenate %75, %79, %78 in 0 : vector<1x16x128xbf16>, vector<8x16x128xbf16>, vector<1x16x128xbf16> -> vector<10x16x128xbf16>
    %cst_37 = arith.constant 0.000000e+00 : bf16
    %81 = vector.broadcast %cst_37 : bf16 to vector<10x1x128xbf16>
    %82 = tpu.concatenate %81, %80, %81 in 1 : vector<10x1x128xbf16>, vector<10x16x128xbf16>, vector<10x1x128xbf16> -> vector<10x18x128xbf16>
    %cst_38 = arith.constant 0.000000e+00 : f32
    %83 = vector.broadcast %cst_38 : f32 to vector<128x128xf32>
    %84 = vector.extract_strided_slice %82 {offsets = [0, 0, 0], sizes = [8, 16, 128], strides = [1, 1, 1]} : vector<10x18x128xbf16> to vector<8x16x128xbf16>
    %85 = vector.shape_cast %84 : vector<8x16x128xbf16> to vector<128x128xbf16>
    %c0_39 = arith.constant 0 : index
    %c0_40 = arith.constant 0 : index
    %c0_41 = arith.constant 0 : index
    %86 = vector.load %arg6[%c0_39, %c0_40, %c0_41] : memref<9x128x128xbf16, #tpu.memory_space<vmem>>, vector<1x128x128xbf16>
    %87 = vector.shape_cast %86 : vector<1x128x128xbf16> to vector<128x128xbf16>
    %cst_42 = arith.constant dense<0.000000e+00> : vector<128x128xf32>
    %88 = tpu.matmul %85, %87, %cst_42 {dimension_numbers = #tpu.dot_dimension_numbers<[1], [0], [0], [1], [0, 0, 1, 1], [], []>} : vector<128x128xbf16>, vector<128x128xbf16>, vector<128x128xf32> -> vector<128x128xf32>
    %89 = arith.addf %83, %88 : vector<128x128xf32>
    %90 = vector.extract_strided_slice %82 {offsets = [0, 1, 0], sizes = [8, 16, 128], strides = [1, 1, 1]} : vector<10x18x128xbf16> to vector<8x16x128xbf16>
    %91 = vector.shape_cast %90 : vector<8x16x128xbf16> to vector<128x128xbf16>
    %c1_43 = arith.constant 1 : index
    %c0_44 = arith.constant 0 : index
    %c0_45 = arith.constant 0 : index
    %92 = vector.load %arg6[%c1_43, %c0_44, %c0_45] : memref<9x128x128xbf16, #tpu.memory_space<vmem>>, vector<1x128x128xbf16>
    %93 = vector.shape_cast %92 : vector<1x128x128xbf16> to vector<128x128xbf16>
    %cst_46 = arith.constant dense<0.000000e+00> : vector<128x128xf32>
    %94 = tpu.matmul %91, %93, %cst_46 {dimension_numbers = #tpu.dot_dimension_numbers<[1], [0], [0], [1], [0, 0, 1, 1], [], []>} : vector<128x128xbf16>, vector<128x128xbf16>, vector<128x128xf32> -> vector<128x128xf32>
    %95 = arith.addf %89, %94 : vector<128x128xf32>
    %96 = vector.extract_strided_slice %82 {offsets = [0, 2, 0], sizes = [8, 16, 128], strides = [1, 1, 1]} : vector<10x18x128xbf16> to vector<8x16x128xbf16>
    %97 = vector.shape_cast %96 : vector<8x16x128xbf16> to vector<128x128xbf16>
    %c2_47 = arith.constant 2 : index
    %c0_48 = arith.constant 0 : index
    %c0_49 = arith.constant 0 : index
    %98 = vector.load %arg6[%c2_47, %c0_48, %c0_49] : memref<9x128x128xbf16, #tpu.memory_space<vmem>>, vector<1x128x128xbf16>
    %99 = vector.shape_cast %98 : vector<1x128x128xbf16> to vector<128x128xbf16>
    %cst_50 = arith.constant dense<0.000000e+00> : vector<128x128xf32>
    %100 = tpu.matmul %97, %99, %cst_50 {dimension_numbers = #tpu.dot_dimension_numbers<[1], [0], [0], [1], [0, 0, 1, 1], [], []>} : vector<128x128xbf16>, vector<128x128xbf16>, vector<128x128xf32> -> vector<128x128xf32>
    %101 = arith.addf %95, %100 : vector<128x128xf32>
    %102 = vector.extract_strided_slice %82 {offsets = [1, 0, 0], sizes = [8, 16, 128], strides = [1, 1, 1]} : vector<10x18x128xbf16> to vector<8x16x128xbf16>
    %103 = vector.shape_cast %102 : vector<8x16x128xbf16> to vector<128x128xbf16>
    %c3_51 = arith.constant 3 : index
    %c0_52 = arith.constant 0 : index
    %c0_53 = arith.constant 0 : index
    %104 = vector.load %arg6[%c3_51, %c0_52, %c0_53] : memref<9x128x128xbf16, #tpu.memory_space<vmem>>, vector<1x128x128xbf16>
    %105 = vector.shape_cast %104 : vector<1x128x128xbf16> to vector<128x128xbf16>
    %cst_54 = arith.constant dense<0.000000e+00> : vector<128x128xf32>
    %106 = tpu.matmul %103, %105, %cst_54 {dimension_numbers = #tpu.dot_dimension_numbers<[1], [0], [0], [1], [0, 0, 1, 1], [], []>} : vector<128x128xbf16>, vector<128x128xbf16>, vector<128x128xf32> -> vector<128x128xf32>
    %107 = arith.addf %101, %106 : vector<128x128xf32>
    %108 = vector.extract_strided_slice %82 {offsets = [1, 1, 0], sizes = [8, 16, 128], strides = [1, 1, 1]} : vector<10x18x128xbf16> to vector<8x16x128xbf16>
    %109 = vector.shape_cast %108 : vector<8x16x128xbf16> to vector<128x128xbf16>
    %c4_55 = arith.constant 4 : index
    %c0_56 = arith.constant 0 : index
    %c0_57 = arith.constant 0 : index
    %110 = vector.load %arg6[%c4_55, %c0_56, %c0_57] : memref<9x128x128xbf16, #tpu.memory_space<vmem>>, vector<1x128x128xbf16>
    %111 = vector.shape_cast %110 : vector<1x128x128xbf16> to vector<128x128xbf16>
    %cst_58 = arith.constant dense<0.000000e+00> : vector<128x128xf32>
    %112 = tpu.matmul %109, %111, %cst_58 {dimension_numbers = #tpu.dot_dimension_numbers<[1], [0], [0], [1], [0, 0, 1, 1], [], []>} : vector<128x128xbf16>, vector<128x128xbf16>, vector<128x128xf32> -> vector<128x128xf32>
    %113 = arith.addf %107, %112 : vector<128x128xf32>
    %114 = vector.extract_strided_slice %82 {offsets = [1, 2, 0], sizes = [8, 16, 128], strides = [1, 1, 1]} : vector<10x18x128xbf16> to vector<8x16x128xbf16>
    %115 = vector.shape_cast %114 : vector<8x16x128xbf16> to vector<128x128xbf16>
    %c5_59 = arith.constant 5 : index
    %c0_60 = arith.constant 0 : index
    %c0_61 = arith.constant 0 : index
    %116 = vector.load %arg6[%c5_59, %c0_60, %c0_61] : memref<9x128x128xbf16, #tpu.memory_space<vmem>>, vector<1x128x128xbf16>
    %117 = vector.shape_cast %116 : vector<1x128x128xbf16> to vector<128x128xbf16>
    %cst_62 = arith.constant dense<0.000000e+00> : vector<128x128xf32>
    %118 = tpu.matmul %115, %117, %cst_62 {dimension_numbers = #tpu.dot_dimension_numbers<[1], [0], [0], [1], [0, 0, 1, 1], [], []>} : vector<128x128xbf16>, vector<128x128xbf16>, vector<128x128xf32> -> vector<128x128xf32>
    %119 = arith.addf %113, %118 : vector<128x128xf32>
    %120 = vector.extract_strided_slice %82 {offsets = [2, 0, 0], sizes = [8, 16, 128], strides = [1, 1, 1]} : vector<10x18x128xbf16> to vector<8x16x128xbf16>
    %121 = vector.shape_cast %120 : vector<8x16x128xbf16> to vector<128x128xbf16>
    %c6_63 = arith.constant 6 : index
    %c0_64 = arith.constant 0 : index
    %c0_65 = arith.constant 0 : index
    %122 = vector.load %arg6[%c6_63, %c0_64, %c0_65] : memref<9x128x128xbf16, #tpu.memory_space<vmem>>, vector<1x128x128xbf16>
    %123 = vector.shape_cast %122 : vector<1x128x128xbf16> to vector<128x128xbf16>
    %cst_66 = arith.constant dense<0.000000e+00> : vector<128x128xf32>
    %124 = tpu.matmul %121, %123, %cst_66 {dimension_numbers = #tpu.dot_dimension_numbers<[1], [0], [0], [1], [0, 0, 1, 1], [], []>} : vector<128x128xbf16>, vector<128x128xbf16>, vector<128x128xf32> -> vector<128x128xf32>
    %125 = arith.addf %119, %124 : vector<128x128xf32>
    %126 = vector.extract_strided_slice %82 {offsets = [2, 1, 0], sizes = [8, 16, 128], strides = [1, 1, 1]} : vector<10x18x128xbf16> to vector<8x16x128xbf16>
    %127 = vector.shape_cast %126 : vector<8x16x128xbf16> to vector<128x128xbf16>
    %c7_67 = arith.constant 7 : index
    %c0_68 = arith.constant 0 : index
    %c0_69 = arith.constant 0 : index
    %128 = vector.load %arg6[%c7_67, %c0_68, %c0_69] : memref<9x128x128xbf16, #tpu.memory_space<vmem>>, vector<1x128x128xbf16>
    %129 = vector.shape_cast %128 : vector<1x128x128xbf16> to vector<128x128xbf16>
    %cst_70 = arith.constant dense<0.000000e+00> : vector<128x128xf32>
    %130 = tpu.matmul %127, %129, %cst_70 {dimension_numbers = #tpu.dot_dimension_numbers<[1], [0], [0], [1], [0, 0, 1, 1], [], []>} : vector<128x128xbf16>, vector<128x128xbf16>, vector<128x128xf32> -> vector<128x128xf32>
    %131 = arith.addf %125, %130 : vector<128x128xf32>
    %132 = vector.extract_strided_slice %82 {offsets = [2, 2, 0], sizes = [8, 16, 128], strides = [1, 1, 1]} : vector<10x18x128xbf16> to vector<8x16x128xbf16>
    %133 = vector.shape_cast %132 : vector<8x16x128xbf16> to vector<128x128xbf16>
    %c8_71 = arith.constant 8 : index
    %c0_72 = arith.constant 0 : index
    %c0_73 = arith.constant 0 : index
    %134 = vector.load %arg6[%c8_71, %c0_72, %c0_73] : memref<9x128x128xbf16, #tpu.memory_space<vmem>>, vector<1x128x128xbf16>
    %135 = vector.shape_cast %134 : vector<1x128x128xbf16> to vector<128x128xbf16>
    %cst_74 = arith.constant dense<0.000000e+00> : vector<128x128xf32>
    %136 = tpu.matmul %133, %135, %cst_74 {dimension_numbers = #tpu.dot_dimension_numbers<[1], [0], [0], [1], [0, 0, 1, 1], [], []>} : vector<128x128xbf16>, vector<128x128xbf16>, vector<128x128xf32> -> vector<128x128xf32>
    %137 = arith.addf %131, %136 : vector<128x128xf32>
    %c0_75 = arith.constant 0 : index
    %c0_76 = arith.constant 0 : index
    %c0_77 = arith.constant 0 : index
    %c0_78 = arith.constant 0 : index
    %138 = vector.load %arg3[%c0_75, %c0_76, %c0_77, %c0_78] : memref<1x8x16x128xf32, #tpu.memory_space<vmem>>, vector<1x8x16x128xf32>
    %139 = vector.shape_cast %138 : vector<1x8x16x128xf32> to vector<8x16x128xf32>
    %140 = vector.shape_cast %139 : vector<8x16x128xf32> to vector<128x128xf32>
    %c0_79 = arith.constant 0 : index
    %c0_80 = arith.constant 0 : index
    %141 = vector.load %arg7[%c0_79, %c0_80] : memref<1x128xf32, #tpu.memory_space<vmem>>, vector<1x128xf32>
    %142 = vector.broadcast %141 : vector<1x128xf32> to vector<128x128xf32>
    %143 = arith.addf %137, %142 : vector<128x128xf32>
    %144 = arith.addf %143, %140 : vector<128x128xf32>
    %cst_81 = arith.constant 0.000000e+00 : f32
    %145 = vector.broadcast %cst_81 : f32 to vector<128x128xf32>
    %146 = arith.maximumf %144, %145 : vector<128x128xf32>
    %147 = vector.shape_cast %146 : vector<128x128xf32> to vector<8x16x128xf32>
    %c0_82 = arith.constant 0 : index
    %c0_83 = arith.constant 0 : index
    %c0_84 = arith.constant 0 : index
    %c0_85 = arith.constant 0 : index
    %148 = vector.load %arg8[%c0_82, %c0_83, %c0_84, %c0_85] : memref<1x8x16x128xf32, #tpu.memory_space<vmem>>, vector<1x8x16x128xf32>
    %149 = vector.shape_cast %148 : vector<1x8x16x128xf32> to vector<8x16x128xf32>
    %150 = vector.shape_cast %147 : vector<8x16x128xf32> to vector<1x8x16x128xf32>
    tpu.vector_store %arg8[%c0_82, %c0_83, %c0_84, %c0_85], %150 {strides = array<i32>} : memref<1x8x16x128xf32, #tpu.memory_space<vmem>>, vector<1x8x16x128xf32>,
    return
  }
  func.func @transform_0(%arg0: i32, %arg1: i32) -> (i32, i32, i32, i32) {
    %c0_i32 = arith.constant 0 : i32
    %c0_i32_0 = arith.constant 0 : i32
    %c0_i32_1 = arith.constant 0 : i32
    %c0_i32_2 = arith.constant 0 : i32
    return %arg0, %c0_i32, %c0_i32_0, %c0_i32_1 : i32, i32, i32, i32
  }
  func.func @transform_1(%arg0: i32, %arg1: i32) -> (i32, i32, i32, i32) {
    %c0_i32 = arith.constant 0 : i32
    %c0_i32_0 = arith.constant 0 : i32
    %c0_i32_1 = arith.constant 0 : i32
    return %arg0, %arg1, %c0_i32, %c0_i32_0 : i32, i32, i32, i32
  }
  func.func @transform_2(%arg0: i32, %arg1: i32) -> (i32, i32, i32) {
    %c0_i32 = arith.constant 0 : i32
    %c0_i32_0 = arith.constant 0 : i32
    %c0_i32_1 = arith.constant 0 : i32
    %c0_i32_2 = arith.constant 0 : i32
    return %c0_i32, %c0_i32_0, %c0_i32_1 : i32, i32, i32
  }
  func.func @transform_3(%arg0: i32, %arg1: i32) -> (i32, i32) {
    %c0_i32 = arith.constant 0 : i32
    %c0_i32_0 = arith.constant 0 : i32
    %c0_i32_1 = arith.constant 0 : i32
    return %c0_i32, %c0_i32_0 : i32, i32
  }
  func.func @transform_4(%arg0: i32, %arg1: i32) -> (i32, i32, i32) {
    %c0_i32 = arith.constant 0 : i32
    %c0_i32_0 = arith.constant 0 : i32
    %c0_i32_1 = arith.constant 0 : i32
    %c0_i32_2 = arith.constant 0 : i32
    return %c0_i32, %c0_i32_0, %c0_i32_1 : i32, i32, i32
  }
  func.func @transform_5(%arg0: i32, %arg1: i32) -> (i32, i32) {
    %c0_i32 = arith.constant 0 : i32
    %c0_i32_0 = arith.constant 0 : i32
    %c0_i32_1 = arith.constant 0 : i32
    return %c0_i32, %c0_i32_0 : i32, i32
  }
  func.func @transform_6(%arg0: i32, %arg1: i32) -> (i32, i32, i32, i32) {
    %c0_i32 = arith.constant 0 : i32
    %c0_i32_0 = arith.constant 0 : i32
    %c0_i32_1 = arith.constant 0 : i32
    return %arg0, %arg1, %c0_i32, %c0_i32_0 : i32, i32, i32, i32
  }
}

</mosaic_0001>

<llo_original>
// kernel: tpu_custom_call.1
$region0: #{tpu_custom_call.1}
  #allocation0 [shape = 'u32[]', space=smem, size = 0x4, offset = 0x4, fixed_abs, tag = 'smem constant byte address 0x4 - core index']
  #allocation1 [shape = 'u32[72,128]{1,0:T(1,128)}', space=vmem, size = 0x9000, scoped, tag = 'internal scratch']
  %s0 = inlined_call_operand.vmem [shape: bf16[2,20,18,128], index: 0, kind: input, shape index: {}]
  %s1 = inlined_call_operand.hbm [shape: f32[2,16,16,128], index: 1, kind: input, shape index: {}]
  %s2 = inlined_call_operand.vmem [shape: bf16[9,128,128], index: 2, kind: input, shape index: {}]
  %s3 = inlined_call_operand.vmem [shape: f32[1,128], index: 3, kind: input, shape index: {}]
  %s4 = inlined_call_operand.hbm [shape: bf16[9,128,128], index: 4, kind: input, shape index: {}]
  %s5 = inlined_call_operand.vmem [shape: f32[1,128], index: 5, kind: input, shape index: {}]
  %s6 = inlined_call_operand.hbm [shape: f32[2,16,16,128], index: 6, kind: output, shape index: {}]
  %s7 = sld [smem:[#allocation0]]
  $region65: #{tpu_custom_call.1} parent=0
    _
  %s9 = ssub.s32 1, %s7
  %s10 = scalar_select 0, %s9, %s7
  $region1: #{tpu_custom_call.1} parent=0
    #allocation2 [shape = 'u8[131072]{0}', space=vmem, size = 0x20000, scoped, tag = 'input window, operand 1']
    #allocation3 [shape = 's32[2]{0}', space=sflag, size = 0x8, scoped, tag = 'scoped memory for tpu_custom_call.1']
    #allocation4 [shape = 's32[2]{0}', space=sflag, size = 0x8, scoped, tag = 'scoped memory for tpu_custom_call.1']
    #allocation5 [shape = 'u8[294912]{0}', space=vmem, size = 0x48000, scoped, tag = 'input window, operand 4, single buffered']
    #allocation6 [shape = 's32[1]{0}', space=sflag, size = 0x4, scoped, tag = 'scoped memory for tpu_custom_call.1']
    #allocation7 [shape = 'u8[131072]{0}', space=vmem, size = 0x20000, scoped, tag = 'output window, operand 0']
    %11 = vsyncpa [#allocation3], 0
    %s12 = scalar_lea.sflag [#allocation3], 1
    %13 = vsyncpa %s12, 0
    %14 = vsyncpa [#allocation6], 0
    %15 = vsyncpa [#allocation4], 0
    %s16 = scalar_lea.sflag [#allocation4], 1
    %17 = vsyncpa %s16, 0
    loop: start=0, step=1, limit=6
    $region2: #{tpu_custom_call.1} parent=1 // loop_pre_header
      _
    $region3: #{tpu_custom_call.1} parent=1 // loop_header
      %s19 = sphi 0, %s23
      %p20 = scmp.ge.s32.totalorder %s19, 6
      %s26 = sphi 0, %s38
      %s27 = sphi 0, %s34
      %s28 = sphi 0, %s26
      %s29 = sphi 0, %s27
      %s30 = sphi 0, %s28
      %s31 = sphi 0, %s29
      %s41 = sphi 0, %s43
      %s44 = sphi 0, %s41
      %s45 = sphi 0, %s44
      %s61 = sphi 0, %s45
      %s69 = sphi 0, %s71
      %s72 = sphi 0, %s69
      %s73 = sphi 0, %s72
      %s89 = sphi 0, %s73
      %s93 = sphi 0, %s93
      %s95 = sphi 0, %s93
      %s96 = sphi 0, %s95
      %s110 = sphi 0, %s96
      %s114 = sphi 0, %s114
      %s116 = sphi 0, %s114
      %s117 = sphi 0, %s116
      %s131 = sphi 0, %s117
      %s135 = sphi 0, %s135
      %s137 = sphi 0, %s135
      %s138 = sphi 0, %s137
      %s152 = sphi 0, %s138
      %s156 = sphi 0, %s156
      %s158 = sphi 0, %s156
      %s159 = sphi 0, %s158
      %s173 = sphi 0, %s159
      %s181 = sphi 0, %s183
      %s184 = sphi 0, %s181
      %s185 = sphi 0, %s184
      %s201 = sphi 0, %s185
    $region4: #{tpu_custom_call.1} parent=1 // loop_header_branch
      %22 = sbr.rel (%p20) target = $region8
    $region5: #{tpu_custom_call.1} parent=1 // loop_body
      %s24 = ssub.s32 %s19, 1
      %s25 = ssub.s32 %s19, 2
      %s32 = sadd.s32 1, %s27
      %p33 = scmp.ge.s32.totalorder %s32, 2
      %s34 = scalar_select %p33, 0, %s32
      %s35 = sadd.s32 1, %s26
      %s36 = scalar_select %p33, %s35, %s26
      %p37 = scmp.ge.s32.totalorder %s36, 2
      %s38 = scalar_select %p37, 0, %s36
      %s39 = ssub.s32 %s26, %s38
      %p40 = scmp.eq.s32.totalorder %s39, 0
      %s42 = sadd.s32 %s41, 1
      %s43 = scalar_select %p40, %s41, %s42
      %p46 = pneg %p40
      %p47 = scmp.eq.s32.totalorder %s19, 3
      %p48 = por %p46, %p47
      %p49 = scmp.ne.s32.totalorder %s41, %s44
      %p50 = scmp.eq.s32.totalorder %s19, 0
      %p51 = por %p49, %p50
      %p52 = scmp.ne.s32.totalorder %s41, %s44
      %p53 = scmp.eq.s32.totalorder %s24, 3
      %p54 = por %p52, %p53
      %p55 = scmp.ne.s32.totalorder %s44, %s45
      %p56 = scmp.eq.s32.totalorder %s24, 0
      %p57 = por %p55, %p56
      %p58 = scmp.ne.s32.totalorder %s44, %s45
      %p59 = scmp.eq.s32.totalorder %s25, 3
      %p60 = por %p58, %p59
      %p62 = scmp.ne.s32.totalorder %s45, %s61
      %p63 = scmp.eq.s32.totalorder %s25, 0
      %p64 = por %p62, %p63
      %s65 = ssub.s32 %s26, %s38
      %s66 = ssub.s32 %s27, %s34
      %s67 = sor.u32 %s65, %s66
      %p68 = scmp.eq.s32.totalorder %s67, 0
      %s70 = sadd.s32 %s69, 1
      %s71 = scalar_select %p68, %s69, %s70
      %p74 = pneg %p68
      %p75 = scmp.eq.s32.totalorder %s19, 3
      %p76 = por %p74, %p75
      %p77 = scmp.ne.s32.totalorder %s69, %s72
      %p78 = scmp.eq.s32.totalorder %s19, 0
      %p79 = por %p77, %p78
      %p80 = scmp.ne.s32.totalorder %s69, %s72
      %p81 = scmp.eq.s32.totalorder %s24, 3
      %p82 = por %p80, %p81
      %p83 = scmp.ne.s32.totalorder %s72, %s73
      %p84 = scmp.eq.s32.totalorder %s24, 0
      %p85 = por %p83, %p84
      %p86 = scmp.ne.s32.totalorder %s72, %s73
      %p87 = scmp.eq.s32.totalorder %s25, 3
      %p88 = por %p86, %p87
      %p90 = scmp.ne.s32.totalorder %s73, %s89
      %p91 = scmp.eq.s32.totalorder %s25, 0
      %p92 = por %p90, %p91
      %s94 = sadd.s32 %s93, 1
      %p97 = scmp.eq.s32.totalorder %s19, 3
      %p98 = scmp.ne.s32.totalorder %s93, %s95
      %p99 = scmp.eq.s32.totalorder %s19, 0
      %p100 = por %p98, %p99
      %p101 = scmp.ne.s32.totalorder %s93, %s95
      %p102 = scmp.eq.s32.totalorder %s24, 3
      %p103 = por %p101, %p102
      %p104 = scmp.ne.s32.totalorder %s95, %s96
      %p105 = scmp.eq.s32.totalorder %s24, 0
      %p106 = por %p104, %p105
      %p107 = scmp.ne.s32.totalorder %s95, %s96
      %p108 = scmp.eq.s32.totalorder %s25, 3
      %p109 = por %p107, %p108
      %p111 = scmp.ne.s32.totalorder %s96, %s110
      %p112 = scmp.eq.s32.totalorder %s25, 0
      %p113 = por %p111, %p112
      %s115 = sadd.s32 %s114, 1
      %p118 = scmp.eq.s32.totalorder %s19, 3
      %p119 = scmp.ne.s32.totalorder %s114, %s116
      %p120 = scmp.eq.s32.totalorder %s19, 0
      %p121 = por %p119, %p120
      %p122 = scmp.ne.s32.totalorder %s114, %s116
      %p123 = scmp.eq.s32.totalorder %s24, 3
      %p124 = por %p122, %p123
      %p125 = scmp.ne.s32.totalorder %s116, %s117
      %p126 = scmp.eq.s32.totalorder %s24, 0
      %p127 = por %p125, %p126
      %p128 = scmp.ne.s32.totalorder %s116, %s117
      %p129 = scmp.eq.s32.totalorder %s25, 3
      %p130 = por %p128, %p129
      %p132 = scmp.ne.s32.totalorder %s117, %s131
      %p133 = scmp.eq.s32.totalorder %s25, 0
      %p134 = por %p132, %p133
      %s136 = sadd.s32 %s135, 1
      %p139 = scmp.eq.s32.totalorder %s19, 3
      %p140 = scmp.ne.s32.totalorder %s135, %s137
      %p141 = scmp.eq.s32.totalorder %s19, 0
      %p142 = por %p140, %p141
      %p143 = scmp.ne.s32.totalorder %s135, %s137
      %p144 = scmp.eq.s32.totalorder %s24, 3
      %p145 = por %p143, %p144
      %p146 = scmp.ne.s32.totalorder %s137, %s138
      %p147 = scmp.eq.s32.totalorder %s24, 0
      %p148 = por %p146, %p147
      %p149 = scmp.ne.s32.totalorder %s137, %s138
      %p150 = scmp.eq.s32.totalorder %s25, 3
      %p151 = por %p149, %p150
      %p153 = scmp.ne.s32.totalorder %s138, %s152
      %p154 = scmp.eq.s32.totalorder %s25, 0
      %p155 = por %p153, %p154
      %s157 = sadd.s32 %s156, 1
      %p160 = scmp.eq.s32.totalorder %s19, 3
      %p161 = scmp.ne.s32.totalorder %s156, %s158
      %p162 = scmp.eq.s32.totalorder %s19, 0
      %p163 = por %p161, %p162
      %p164 = scmp.ne.s32.totalorder %s156, %s158
      %p165 = scmp.eq.s32.totalorder %s24, 3
      %p166 = por %p164, %p165
      %p167 = scmp.ne.s32.totalorder %s158, %s159
      %p168 = scmp.eq.s32.totalorder %s24, 0
      %p169 = por %p167, %p168
      %p170 = scmp.ne.s32.totalorder %s158, %s159
      %p171 = scmp.eq.s32.totalorder %s25, 3
      %p172 = por %p170, %p171
      %p174 = scmp.ne.s32.totalorder %s159, %s173
      %p175 = scmp.eq.s32.totalorder %s25, 0
      %p176 = por %p174, %p175
      %s177 = ssub.s32 %s26, %s38
      %s178 = ssub.s32 %s27, %s34
      %s179 = sor.u32 %s177, %s178
      %p180 = scmp.eq.s32.totalorder %s179, 0
      %s182 = sadd.s32 %s181, 1
      %s183 = scalar_select %p180, %s181, %s182
      %p186 = pneg %p180
      %p187 = scmp.eq.s32.totalorder %s19, 3
      %p188 = por %p186, %p187
      %p189 = scmp.ne.s32.totalorder %s181, %s184
      %p190 = scmp.eq.s32.totalorder %s19, 0
      %p191 = por %p189, %p190
      %p192 = scmp.ne.s32.totalorder %s181, %s184
      %p193 = scmp.eq.s32.totalorder %s24, 3
      %p194 = por %p192, %p193
      %p195 = scmp.ne.s32.totalorder %s184, %s185
      %p196 = scmp.eq.s32.totalorder %s24, 0
      %p197 = por %p195, %p196
      %p198 = scmp.ne.s32.totalorder %s184, %s185
      %p199 = scmp.eq.s32.totalorder %s25, 3
      %p200 = por %p198, %p199
      %p202 = scmp.ne.s32.totalorder %s185, %s201
      %p203 = scmp.eq.s32.totalorder %s25, 0
      %p204 = por %p202, %p203
      %p205 = scmp.le.s32.totalorder 1, %s19
      %p206 = scmp.lt.s32.totalorder %s19, 5
      %p207 = pnand %p205, %p206
      %p208 = pneg %p207
      // Predicated region
      $region9: #{tpu_custom_call.1} parent=5 // pred_check
        _
      $region10: #{tpu_custom_call.1} parent=5 // pred_check_branch
        %210 = sbr.rel (%p207) target = $region12
      $region11: #{tpu_custom_call.1} parent=5 // pred_region
        %s211 = ssub.s32 %s19, 1
        // Predicated region
        $region13: #{tpu_custom_call.1} parent=11 // pred_check
          %p212 = pneg %p106
        $region14: #{tpu_custom_call.1} parent=11 // pred_check_branch
          %214 = sbr.rel (%p212) target = $region16
        $region15: #{tpu_custom_call.1} parent=11 // pred_region
          _
        $region16: #{tpu_custom_call.1} parent=11 // pred_fallthru
          _
        // Predicated region
        $region17: #{tpu_custom_call.1} parent=11 // pred_check
          %p215 = pneg %p127
        $region18: #{tpu_custom_call.1} parent=11 // pred_check_branch
          %217 = sbr.rel (%p215) target = $region20
        $region19: #{tpu_custom_call.1} parent=11 // pred_region
          _
        $region20: #{tpu_custom_call.1} parent=11 // pred_fallthru
          _
        // Predicated region
        $region21: #{tpu_custom_call.1} parent=11 // pred_check
          %p218 = pneg %p148
        $region22: #{tpu_custom_call.1} parent=11 // pred_check_branch
          %220 = sbr.rel (%p218) target = $region24
        $region23: #{tpu_custom_call.1} parent=11 // pred_region
          %222 = vsyncadd [#allocation6], 0
          %s223 = sshll.u32 %s4, 4
          %s224 = int_to_ptr.hbm [resolvable:$true] %s223
          %s225 = sshll.u32 [#allocation5], 4
          %s226 = int_to_ptr.vmem [resolvable:$true] %s225
          %231 = dma.hbm_to_vmem [thread:$0]  %s224, 9216, %s226, [#allocation6], 64, 64, 4
        $region24: #{tpu_custom_call.1} parent=11 // pred_fallthru
          _
        // Predicated region
        $region25: #{tpu_custom_call.1} parent=11 // pred_check
          %p232 = pneg %p169
        $region26: #{tpu_custom_call.1} parent=11 // pred_check_branch
          %234 = sbr.rel (%p232) target = $region28
        $region27: #{tpu_custom_call.1} parent=11 // pred_region
          _
        $region28: #{tpu_custom_call.1} parent=11 // pred_fallthru
          _
      $region12: #{tpu_custom_call.1} parent=5 // pred_fallthru
        _
      %p235 = scmp.lt.s32.totalorder %s19, 4
      // Predicated region
      $region29: #{tpu_custom_call.1} parent=5 // pred_check
        %p236 = pneg %p235
      $region30: #{tpu_custom_call.1} parent=5 // pred_check_branch
        %238 = sbr.rel (%p236) target = $region32
      $region31: #{tpu_custom_call.1} parent=5 // pred_region
        // Predicated region
        $region33: #{tpu_custom_call.1} parent=31 // pred_check
          %p239 = pneg %p51
        $region34: #{tpu_custom_call.1} parent=31 // pred_check_branch
          %241 = sbr.rel (%p239) target = $region36
        $region35: #{tpu_custom_call.1} parent=31 // pred_region
          %p242 = scmp.lt.s32.totalorder %s26, 1
          %s243 = scalar_select %p242, %s26, 1
          %s244 = smul.addr %s243, 60
          %s245 = smul.addr %s244, 4
          %s246 = scalar_lea.vmem %s0, %s245
        $region36: #{tpu_custom_call.1} parent=31 // pred_fallthru
          _
        // Predicated region
        $region37: #{tpu_custom_call.1} parent=31 // pred_check
          %p247 = pneg %p79
        $region38: #{tpu_custom_call.1} parent=31 // pred_check_branch
          %249 = sbr.rel (%p247) target = $region40
        $region39: #{tpu_custom_call.1} parent=31 // pred_region
          %s250 = sand.u32 %s69, 1
          %s251 = scalar_lea.sflag [#allocation3], %s250
          %s252 = sand.u32 %s69, 1
          %s253 = smul.addr %s252, 128
          %s254 = scalar_lea.vmem [#allocation2], %s253
          %s255 = smul.u32 8, %s27
          %257 = vsyncadd %s251, 0
          %s258 = smul.addr %s255, 2
          %s259 = smul.addr %s26, 32
          %s260 = sadd.s32 %s258, %s259
          %s261 = smul.addr %s260, 8
          %s262 = scalar_lea.hbm %s1, %s261
          %s263 = sshll.u32 %s262, 4
          %s264 = int_to_ptr.hbm [resolvable:$true] %s263
          %s265 = sshll.u32 %s254, 4
          %s266 = int_to_ptr.vmem [resolvable:$true] %s265
          %271 = dma.hbm_to_vmem [thread:$0]  %s264, 2048, %s266, %s251, 128, 128, 8
        $region40: #{tpu_custom_call.1} parent=31 // pred_fallthru
          _
      $region32: #{tpu_custom_call.1} parent=5 // pred_fallthru
        _
      %p272 = scmp.le.s32.totalorder 1, %s19
      %p273 = scmp.lt.s32.totalorder %s19, 5
      %p274 = pnand %p272, %p273
      %p275 = pneg %p274
      // Predicated region
      $region41: #{tpu_custom_call.1} parent=5 // pred_check
        _
      $region42: #{tpu_custom_call.1} parent=5 // pred_check_branch
        %277 = sbr.rel (%p274) target = $region44
      $region43: #{tpu_custom_call.1} parent=5 // pred_region
        %s278 = ssub.s32 %s19, 1
        %s279 = sand.u32 %s72, 1
        %s280 = scalar_lea.sflag [#allocation3], %s279
        %s281 = sand.u32 %s72, 1
        %s282 = smul.addr %s281, 128
        %s283 = scalar_lea.vmem [#allocation2], %s282
        // Predicated region
        $region45: #{tpu_custom_call.1} parent=43 // pred_check
          %p284 = pneg %p85
        $region46: #{tpu_custom_call.1} parent=43 // pred_check_branch
          %286 = sbr.rel (%p284) target = $region48
        $region47: #{tpu_custom_call.1} parent=43 // pred_region
          %288 = dma.done %s280, 2048
        $region48: #{tpu_custom_call.1} parent=43 // pred_fallthru
          _
        // Predicated region
        $region49: #{tpu_custom_call.1} parent=43 // pred_check
          %p289 = pneg %p148
        $region50: #{tpu_custom_call.1} parent=43 // pred_check_branch
          %291 = sbr.rel (%p289) target = $region52
        $region51: #{tpu_custom_call.1} parent=43 // pred_region
          %293 = dma.done [#allocation6], 9216
        $region52: #{tpu_custom_call.1} parent=43 // pred_fallthru
          _
        %p294 = scmp.lt.s32.totalorder %s28, 1
        %s295 = scalar_select %p294, %s28, 1
        %s296 = smul.addr %s295, 60
        %s297 = smul.addr %s296, 4
        %s298 = scalar_lea.vmem %s0, %s297
        %p299 = pneg %p57
        %p300 = pneg %p54
        %s301 = sand.u32 %s72, 1
        %s302 = scalar_lea.sflag [#allocation3], %s301
        %s303 = sand.u32 %s72, 1
        %s304 = smul.addr %s303, 128
        %s305 = scalar_lea.vmem [#allocation2], %s304
        %p306 = pneg %p85
        %p307 = pneg %p82
        %p308 = pneg %p106
        %p309 = pneg %p103
        %p310 = pneg %p127
        %p311 = pneg %p124
        %p312 = pneg %p148
        %p313 = pneg %p145
        %p314 = pneg %p169
        %p315 = pneg %p166
        %p316 = pneg %p197
        %p317 = pneg %p194
        %s318 = sand.u32 %s184, 1
        %s319 = scalar_lea.sflag [#allocation4], %s318
        %s320 = sand.u32 %s184, 1
        %s321 = smul.addr %s320, 128
        %s322 = scalar_lea.vmem [#allocation7], %s321
        %p323 = scmp.lt.s32.totalorder %s28, 1
        %s324 = scalar_select %p323, %s28, 1
        %s325 = smul.addr %s324, 60
        %s326 = smul.addr %s325, 4
        %s327 = scalar_lea.vmem %s0, %s326
        %s328 = smul.u32 8, %s29
        %s329 = smul.u32 8, %s29
        %s331 = smul.u32 %s29, 8
        %s332 = smul.u32 %s331, 3
        %s333 = smul.addr %s332, 4
        %s334 = scalar_lea.vmem %s327, %s333
        %v335 = vld [vmem:[%s334] sm:$0xf]
        %v336 = vld [vmem:[%s334 + $0x4] sm:$0xf]
        %v337 = vld [vmem:[%s334 + $0x8] sm:$0x1]
        %v338 = vld [vmem:[%s334 + $0xc] sm:$0xf]
        %v339 = vld [vmem:[%s334 + $0x10] sm:$0xf]
        %v340 = vld [vmem:[%s334 + $0x14] sm:$0x1]
        %v341 = vld [vmem:[%s334 + $0x18] sm:$0xf]
        %v342 = vld [vmem:[%s334 + $0x1c] sm:$0xf]
        %v343 = vld [vmem:[%s334 + $0x20] sm:$0x1]
        %v344 = vld [vmem:[%s334 + $0x24] sm:$0xf]
        %v345 = vld [vmem:[%s334 + $0x28] sm:$0xf]
        %v346 = vld [vmem:[%s334 + $0x2c] sm:$0x1]
        %v347 = vld [vmem:[%s334 + $0x30] sm:$0xf]
        %v348 = vld [vmem:[%s334 + $0x34] sm:$0xf]
        %v349 = vld [vmem:[%s334 + $0x38] sm:$0x1]
        %v350 = vld [vmem:[%s334 + $0x3c] sm:$0xf]
        %v351 = vld [vmem:[%s334 + $0x40] sm:$0xf]
        %v352 = vld [vmem:[%s334 + $0x44] sm:$0x1]
        %v353 = vld [vmem:[%s334 + $0x48] sm:$0xf]
        %v354 = vld [vmem:[%s334 + $0x4c] sm:$0xf]
        %v355 = vld [vmem:[%s334 + $0x50] sm:$0x1]
        %v356 = vld [vmem:[%s334 + $0x54] sm:$0xf]
        %v357 = vld [vmem:[%s334 + $0x58] sm:$0xf]
        %v358 = vld [vmem:[%s334 + $0x5c] sm:$0x1]
        %v359 = vld [vmem:[%s334 + $0x60] sm:$0xf]
        %v360 = vld [vmem:[%s334 + $0x64] sm:$0xf]
        %v361 = vld [vmem:[%s334 + $0x68] sm:$0x1]
        %v362 = vld [vmem:[%s334 + $0x6c] sm:$0xf]
        %v363 = vld [vmem:[%s334 + $0x70] sm:$0xf]
        %v364 = vld [vmem:[%s334 + $0x74] sm:$0x1]
        %v365 = vld [vmem:[%s334 + $0x78] sm:$0xf]
        %v366 = vld [vmem:[%s334 + $0x7c] sm:$0xf]
        %v367 = vld [vmem:[%s334 + $0x80] sm:$0x1]
        %v368 = vld [vmem:[%s334 + $0x84] sm:$0xf]
        %v369 = vld [vmem:[%s334 + $0x88] sm:$0xf]
        %v370 = vld [vmem:[%s334 + $0x8c] sm:$0x1]
        %v371 = vld [vmem:[%s2] sm:$0xf]
        %v372 = vld [vmem:[%s2 + $0x4] sm:$0xf]
        %v373 = vld [vmem:[%s2 + $0x8] sm:$0xf]
        %v374 = vld [vmem:[%s2 + $0xc] sm:$0xf]
        %v375 = vld [vmem:[%s2 + $0x10] sm:$0xf]
        %v376 = vld [vmem:[%s2 + $0x14] sm:$0xf]
        %v377 = vld [vmem:[%s2 + $0x18] sm:$0xf]
        %v378 = vld [vmem:[%s2 + $0x1c] sm:$0xf]
        %v379 = vld [vmem:[%s2 + $0x20] sm:$0xf]
        %v380 = vld [vmem:[%s2 + $0x24] sm:$0xf]
        %v381 = vld [vmem:[%s2 + $0x28] sm:$0xf]
        %v382 = vld [vmem:[%s2 + $0x2c] sm:$0xf]
        %v383 = vld [vmem:[%s2 + $0x30] sm:$0xf]
        %v384 = vld [vmem:[%s2 + $0x34] sm:$0xf]
        %v385 = vld [vmem:[%s2 + $0x38] sm:$0xf]
        %v386 = vld [vmem:[%s2 + $0x3c] sm:$0xf]
        %vm387 = vsmask.f32 3328
        %vm388 = vsmask.f32 7440
        %vm389 = vmor %vm387, %vm388
        %v391 = vshrl.u32 %v335, 16
        %v393 = vrot.slane %v391, 4
        %v394 = vshll.u32 %v335, 16
        %v396 = vrot.slane %v394, 5
        %v397 = vor.u32 %v393, %v396
        %v398 = vrot.slane %v397, 4
        %v400 = vshll.u32 %v336, 16
        %v402 = vrot.slane %v400, 5
        %v403 = vsel %vm389, %v398, %v402
        %v404 = vshrl.u32 %v336, 16
        %v406 = vrot.slane %v404, 4
        %v407 = vor.u32 %v406, %v402
        %v408 = vrot.slane %v407, 4
        %v410 = vshll.u32 %v337, 16
        %v412 = vrot.slane %v410, 5
        %v413 = vsel %vm389, %v408, %v412
        %v415 = vshrl.u32 %v338, 16
        %v417 = vrot.slane %v415, 4
        %v418 = vshll.u32 %v338, 16
        %v420 = vrot.slane %v418, 5
        %v421 = vor.u32 %v417, %v420
        %v422 = vrot.slane %v421, 4
        %v424 = vshll.u32 %v339, 16
        %v426 = vrot.slane %v424, 5
        %v427 = vsel %vm389, %v422, %v426
        %v428 = vshrl.u32 %v339, 16
        %v430 = vrot.slane %v428, 4
        %v431 = vor.u32 %v430, %v426
        %v432 = vrot.slane %v431, 4
        %v434 = vshll.u32 %v340, 16
        %v436 = vrot.slane %v434, 5
        %v437 = vsel %vm389, %v432, %v436
        %v439 = vshrl.u32 %v341, 16
        %v441 = vrot.slane %v439, 4
        %v442 = vshll.u32 %v341, 16
        %v444 = vrot.slane %v442, 5
        %v445 = vor.u32 %v441, %v444
        %v446 = vrot.slane %v445, 4
        %v448 = vshll.u32 %v342, 16
        %v450 = vrot.slane %v448, 5
        %v451 = vsel %vm389, %v446, %v450
        %v452 = vshrl.u32 %v342, 16
        %v454 = vrot.slane %v452, 4
        %v455 = vor.u32 %v454, %v450
        %v456 = vrot.slane %v455, 4
        %v458 = vshll.u32 %v343, 16
        %v460 = vrot.slane %v458, 5
        %v461 = vsel %vm389, %v456, %v460
        %v463 = vshrl.u32 %v344, 16
        %v465 = vrot.slane %v463, 4
        %v466 = vshll.u32 %v344, 16
        %v468 = vrot.slane %v466, 5
        %v469 = vor.u32 %v465, %v468
        %v470 = vrot.slane %v469, 4
        %v472 = vshll.u32 %v345, 16
        %v474 = vrot.slane %v472, 5
        %v475 = vsel %vm389, %v470, %v474
        %v476 = vshrl.u32 %v345, 16
        %v478 = vrot.slane %v476, 4
        %v479 = vor.u32 %v478, %v474
        %v480 = vrot.slane %v479, 4
        %v482 = vshll.u32 %v346, 16
        %v484 = vrot.slane %v482, 5
        %v485 = vsel %vm389, %v480, %v484
        %v487 = vshrl.u32 %v347, 16
        %v489 = vrot.slane %v487, 4
        %v490 = vshll.u32 %v347, 16
        %v492 = vrot.slane %v490, 5
        %v493 = vor.u32 %v489, %v492
        %v494 = vrot.slane %v493, 4
        %v496 = vshll.u32 %v348, 16
        %v498 = vrot.slane %v496, 5
        %v499 = vsel %vm389, %v494, %v498
        %v500 = vshrl.u32 %v348, 16
        %v502 = vrot.slane %v500, 4
        %v503 = vor.u32 %v502, %v498
        %v504 = vrot.slane %v503, 4
        %v506 = vshll.u32 %v349, 16
        %v508 = vrot.slane %v506, 5
        %v509 = vsel %vm389, %v504, %v508
        %v511 = vshrl.u32 %v350, 16
        %v513 = vrot.slane %v511, 4
        %v514 = vshll.u32 %v350, 16
        %v516 = vrot.slane %v514, 5
        %v517 = vor.u32 %v513, %v516
        %v518 = vrot.slane %v517, 4
        %v520 = vshll.u32 %v351, 16
        %v522 = vrot.slane %v520, 5
        %v523 = vsel %vm389, %v518, %v522
        %v524 = vshrl.u32 %v351, 16
        %v526 = vrot.slane %v524, 4
        %v527 = vor.u32 %v526, %v522
        %v528 = vrot.slane %v527, 4
        %v530 = vshll.u32 %v352, 16
        %v532 = vrot.slane %v530, 5
        %v533 = vsel %vm389, %v528, %v532
        %v535 = vshrl.u32 %v353, 16
        %v537 = vrot.slane %v535, 4
        %v538 = vshll.u32 %v353, 16
        %v540 = vrot.slane %v538, 5
        %v541 = vor.u32 %v537, %v540
        %v542 = vrot.slane %v541, 4
        %v544 = vshll.u32 %v354, 16
        %v546 = vrot.slane %v544, 5
        %v547 = vsel %vm389, %v542, %v546
        %v548 = vshrl.u32 %v354, 16
        %v550 = vrot.slane %v548, 4
        %v551 = vor.u32 %v550, %v546
        %v552 = vrot.slane %v551, 4
        %v554 = vshll.u32 %v355, 16
        %v556 = vrot.slane %v554, 5
        %v557 = vsel %vm389, %v552, %v556
        %v559 = vshrl.u32 %v356, 16
        %v561 = vrot.slane %v559, 4
        %v562 = vshll.u32 %v356, 16
        %v564 = vrot.slane %v562, 5
        %v565 = vor.u32 %v561, %v564
        %v566 = vrot.slane %v565, 4
        %v568 = vshll.u32 %v357, 16
        %v570 = vrot.slane %v568, 5
        %v571 = vsel %vm389, %v566, %v570
        %v572 = vshrl.u32 %v357, 16
        %v574 = vrot.slane %v572, 4
        %v575 = vor.u32 %v574, %v570
        %v576 = vrot.slane %v575, 4
        %v578 = vshll.u32 %v358, 16
        %v580 = vrot.slane %v578, 5
        %v581 = vsel %vm389, %v576, %v580
        %v583 = vshrl.u32 %v359, 16
        %v585 = vrot.slane %v583, 4
        %v586 = vshll.u32 %v359, 16
        %v588 = vrot.slane %v586, 5
        %v589 = vor.u32 %v585, %v588
        %v590 = vrot.slane %v589, 4
        %v592 = vshll.u32 %v360, 16
        %v594 = vrot.slane %v592, 5
        %v595 = vsel %vm389, %v590, %v594
        %v596 = vshrl.u32 %v360, 16
        %v598 = vrot.slane %v596, 4
        %v599 = vor.u32 %v598, %v594
        %v600 = vrot.slane %v599, 4
        %v602 = vshll.u32 %v361, 16
        %v604 = vrot.slane %v602, 5
        %v605 = vsel %vm389, %v600, %v604
        %v607 = vshrl.u32 %v362, 16
        %v609 = vrot.slane %v607, 4
        %v610 = vshll.u32 %v362, 16
        %v612 = vrot.slane %v610, 5
        %v613 = vor.u32 %v609, %v612
        %v614 = vrot.slane %v613, 4
        %v616 = vshll.u32 %v363, 16
        %v618 = vrot.slane %v616, 5
        %v619 = vsel %vm389, %v614, %v618
        %v620 = vshrl.u32 %v363, 16
        %v622 = vrot.slane %v620, 4
        %v623 = vor.u32 %v622, %v618
        %v624 = vrot.slane %v623, 4
        %v626 = vshll.u32 %v364, 16
        %v628 = vrot.slane %v626, 5
        %v629 = vsel %vm389, %v624, %v628
        %s630 = scalar_lea.vmem %s2, 64
        %v631 = vld [vmem:[%s630] sm:$0xf]
        %v632 = vld [vmem:[%s630 + $0x4] sm:$0xf]
        %v633 = vld [vmem:[%s630 + $0x8] sm:$0xf]
        %v634 = vld [vmem:[%s630 + $0xc] sm:$0xf]
        %v635 = vld [vmem:[%s630 + $0x10] sm:$0xf]
        %v636 = vld [vmem:[%s630 + $0x14] sm:$0xf]
        %v637 = vld [vmem:[%s630 + $0x18] sm:$0xf]
        %v638 = vld [vmem:[%s630 + $0x1c] sm:$0xf]
        %v639 = vld [vmem:[%s630 + $0x20] sm:$0xf]
        %v640 = vld [vmem:[%s630 + $0x24] sm:$0xf]
        %v641 = vld [vmem:[%s630 + $0x28] sm:$0xf]
        %v642 = vld [vmem:[%s630 + $0x2c] sm:$0xf]
        %v643 = vld [vmem:[%s630 + $0x30] sm:$0xf]
        %v644 = vld [vmem:[%s630 + $0x34] sm:$0xf]
        %v645 = vld [vmem:[%s630 + $0x38] sm:$0xf]
        %v646 = vld [vmem:[%s630 + $0x3c] sm:$0xf]
        %v647 = vunpack.c.l.b16 %v403
        %v648 = vunpack.c.l.b16 %v413
        %v649 = vunpack.c.l.b16 %v427
        %v650 = vunpack.c.l.b16 %v437
        %v651 = vunpack.c.l.b16 %v451
        %v652 = vunpack.c.l.b16 %v461
        %v653 = vunpack.c.l.b16 %v475
        %v654 = vunpack.c.l.b16 %v485
        %v655 = vunpack.c.l.b16 %v499
        %v656 = vunpack.c.l.b16 %v509
        %v657 = vunpack.c.l.b16 %v523
        %v658 = vunpack.c.l.b16 %v533
        %v659 = vunpack.c.l.b16 %v547
        %v660 = vunpack.c.l.b16 %v557
        %v661 = vunpack.c.l.b16 %v571
        %v662 = vunpack.c.l.b16 %v581
        %v663 = vunpack.c.l.b16 %v595
        %v664 = vunpack.c.l.b16 %v605
        %v665 = vunpack.c.l.b16 %v619
        %v666 = vunpack.c.l.b16 %v629
        %v667 = vpack.c.b16 %v648, %v647
        %v668 = vpack.c.b16 %v650, %v649
        %v669 = vpack.c.b16 %v652, %v651
        %v670 = vpack.c.b16 %v654, %v653
        %v671 = vpack.c.b16 %v656, %v655
        %v672 = vpack.c.b16 %v658, %v657
        %v673 = vpack.c.b16 %v660, %v659
        %v674 = vpack.c.b16 %v662, %v661
        %v675 = vpack.c.b16 %v664, %v663
        %v676 = vpack.c.b16 %v666, %v665
        %v703 = vunpack.c.l.b16 %v631
        %v704 = vunpack.c.l.b16 %v632
        %v705 = vunpack.c.l.b16 %v633
        %v706 = vunpack.c.l.b16 %v634
        %v707 = vunpack.c.l.b16 %v635
        %v708 = vunpack.c.l.b16 %v636
        %v709 = vunpack.c.l.b16 %v637
        %v710 = vunpack.c.l.b16 %v638
        %v711 = vunpack.c.l.b16 %v639
        %v712 = vunpack.c.l.b16 %v640
        %v713 = vunpack.c.l.b16 %v641
        %v714 = vunpack.c.l.b16 %v642
        %v715 = vunpack.c.l.b16 %v643
        %v716 = vunpack.c.l.b16 %v644
        %v717 = vunpack.c.l.b16 %v645
        %v718 = vunpack.c.l.b16 %v646
        %v719 = vpack.c.b16 %v704, %v703
        %v720 = vpack.c.b16 %v706, %v705
        %v721 = vpack.c.b16 %v708, %v707
        %v722 = vpack.c.b16 %v710, %v709
        %v723 = vpack.c.b16 %v712, %v711
        %v724 = vpack.c.b16 %v714, %v713
        %v725 = vpack.c.b16 %v716, %v715
        %v726 = vpack.c.b16 %v718, %v717
        %735 = vmatpush.bf16.msra.mxu0 %v726
        %736 = vmatpush.bf16.msra.mxu0 %v725
        %737 = vmatpush.bf16.msra.mxu0 %v724
        %738 = vmatpush.bf16.msra.mxu0 %v723
        %739 = vmatpush.bf16.msra.mxu0 %v722
        %740 = vmatpush.bf16.msra.mxu0 %v721
        %741 = vmatpush.bf16.msra.mxu0 %v720
        %742 = vmatpush.bf16.msra.mxu0 %v719
        %743 = vmatmul.bf16.gmra.mxu0 %v667
        %v744 = vpop.f32.mrf.mxu0
        %v745 = vadd.f32 0.0, %v744
        %v746 = vpop.f32.mrf.mxu0
        %v747 = vadd.f32 0.0, %v746
        %748 = vmatmul.bf16.gmra.mxu0 %v668
        %v749 = vpop.f32.mrf.mxu0
        %v750 = vadd.f32 0.0, %v749
        %v751 = vpop.f32.mrf.mxu0
        %v752 = vadd.f32 0.0, %v751
        %753 = vmatmul.bf16.gmra.mxu0 %v669
        %v754 = vpop.f32.mrf.mxu0
        %v755 = vadd.f32 0.0, %v754
        %v756 = vpop.f32.mrf.mxu0
        %v757 = vadd.f32 0.0, %v756
        %758 = vmatmul.bf16.gmra.mxu0 %v670
        %v759 = vpop.f32.mrf.mxu0
        %v760 = vadd.f32 0.0, %v759
        %v761 = vpop.f32.mrf.mxu0
        %v762 = vadd.f32 0.0, %v761
        %763 = vmatmul.bf16.gmra.mxu0 %v671
        %v764 = vpop.f32.mrf.mxu0
        %v765 = vadd.f32 0.0, %v764
        %v766 = vpop.f32.mrf.mxu0
        %v767 = vadd.f32 0.0, %v766
        %768 = vmatmul.bf16.gmra.mxu0 %v672
        %v769 = vpop.f32.mrf.mxu0
        %v770 = vadd.f32 0.0, %v769
        %v771 = vpop.f32.mrf.mxu0
        %v772 = vadd.f32 0.0, %v771
        %773 = vmatmul.bf16.gmra.mxu0 %v673
        %v774 = vpop.f32.mrf.mxu0
        %v775 = vadd.f32 0.0, %v774
        %v776 = vpop.f32.mrf.mxu0
        %v777 = vadd.f32 0.0, %v776
        %778 = vmatmul.bf16.gmra.mxu0 %v674
        %v779 = vpop.f32.mrf.mxu0
        %v780 = vadd.f32 0.0, %v779
        %v781 = vpop.f32.mrf.mxu0
        %v782 = vadd.f32 0.0, %v781
        %783 = vmatmul.bf16.gmra.mxu0 %v675
        %v784 = vpop.f32.mrf.mxu0
        %v785 = vadd.f32 0.0, %v784
        %v786 = vpop.f32.mrf.mxu0
        %v787 = vadd.f32 0.0, %v786
        %788 = vmatmul.bf16.gmra.mxu0 %v676
        %v789 = vpop.f32.mrf.mxu0
        %v790 = vadd.f32 0.0, %v789
        %v791 = vpop.f32.mrf.mxu0
        %v792 = vadd.f32 0.0, %v791
        %793 = vdwg.mxu0
        %v814 = vunpack.c.l.b16 %v335
        %v815 = vunpack.c.l.b16 %v336
        %v816 = vunpack.c.l.b16 %v338
        %v817 = vunpack.c.l.b16 %v339
        %v818 = vunpack.c.l.b16 %v341
        %v819 = vunpack.c.l.b16 %v342
        %v820 = vunpack.c.l.b16 %v344
        %v821 = vunpack.c.l.b16 %v345
        %v822 = vunpack.c.l.b16 %v347
        %v823 = vunpack.c.l.b16 %v348
        %v824 = vunpack.c.l.b16 %v350
        %v825 = vunpack.c.l.b16 %v351
        %v826 = vunpack.c.l.b16 %v353
        %v827 = vunpack.c.l.b16 %v354
        %v828 = vunpack.c.l.b16 %v356
        %v829 = vunpack.c.l.b16 %v357
        %v830 = vunpack.c.l.b16 %v359
        %v831 = vunpack.c.l.b16 %v360
        %v832 = vunpack.c.l.b16 %v362
        %v833 = vunpack.c.l.b16 %v363
        %v834 = vpack.c.b16 %v815, %v814
        %v835 = vpack.c.b16 %v817, %v816
        %v836 = vpack.c.b16 %v819, %v818
        %v837 = vpack.c.b16 %v821, %v820
        %v838 = vpack.c.b16 %v823, %v822
        %v839 = vpack.c.b16 %v825, %v824
        %v840 = vpack.c.b16 %v827, %v826
        %v841 = vpack.c.b16 %v829, %v828
        %v842 = vpack.c.b16 %v831, %v830
        %v843 = vpack.c.b16 %v833, %v832
        %v870 = vunpack.c.l.b16 %v371
        %v871 = vunpack.c.l.b16 %v372
        %v872 = vunpack.c.l.b16 %v373
        %v873 = vunpack.c.l.b16 %v374
        %v874 = vunpack.c.l.b16 %v375
        %v875 = vunpack.c.l.b16 %v376
        %v876 = vunpack.c.l.b16 %v377
        %v877 = vunpack.c.l.b16 %v378
        %v878 = vunpack.c.l.b16 %v379
        %v879 = vunpack.c.l.b16 %v380
        %v880 = vunpack.c.l.b16 %v381
        %v881 = vunpack.c.l.b16 %v382
        %v882 = vunpack.c.l.b16 %v383
        %v883 = vunpack.c.l.b16 %v384
        %v884 = vunpack.c.l.b16 %v385
        %v885 = vunpack.c.l.b16 %v386
        %v886 = vpack.c.b16 %v871, %v870
        %v887 = vpack.c.b16 %v873, %v872
        %v888 = vpack.c.b16 %v875, %v874
        %v889 = vpack.c.b16 %v877, %v876
        %v890 = vpack.c.b16 %v879, %v878
        %v891 = vpack.c.b16 %v881, %v880
        %v892 = vpack.c.b16 %v883, %v882
        %v893 = vpack.c.b16 %v885, %v884
        %902 = vmatpush.bf16.msra.mxu0 %v893
        %903 = vmatpush.bf16.msra.mxu0 %v892
        %904 = vmatpush.bf16.msra.mxu0 %v891
        %905 = vmatpush.bf16.msra.mxu0 %v890
        %906 = vmatpush.bf16.msra.mxu0 %v889
        %907 = vmatpush.bf16.msra.mxu0 %v888
        %908 = vmatpush.bf16.msra.mxu0 %v887
        %909 = vmatpush.bf16.msra.mxu0 %v886
        %910 = vmatmul.bf16.gmra.mxu0 %v834
        %v911 = vpop.f32.mrf.mxu0
        %v912 = vadd.f32 %v745, %v911
        %v913 = vpop.f32.mrf.mxu0
        %v914 = vadd.f32 %v747, %v913
        %915 = vmatmul.bf16.gmra.mxu0 %v835
        %v916 = vpop.f32.mrf.mxu0
        %v917 = vadd.f32 %v750, %v916
        %v918 = vpop.f32.mrf.mxu0
        %v919 = vadd.f32 %v752, %v918
        %920 = vmatmul.bf16.gmra.mxu0 %v836
        %v921 = vpop.f32.mrf.mxu0
        %v922 = vadd.f32 %v755, %v921
        %v923 = vpop.f32.mrf.mxu0
        %v924 = vadd.f32 %v757, %v923
        %925 = vmatmul.bf16.gmra.mxu0 %v837
        %v926 = vpop.f32.mrf.mxu0
        %v927 = vadd.f32 %v760, %v926
        %v928 = vpop.f32.mrf.mxu0
        %v929 = vadd.f32 %v762, %v928
        %930 = vmatmul.bf16.gmra.mxu0 %v838
        %v931 = vpop.f32.mrf.mxu0
        %v932 = vadd.f32 %v765, %v931
        %v933 = vpop.f32.mrf.mxu0
        %v934 = vadd.f32 %v767, %v933
        %935 = vmatmul.bf16.gmra.mxu0 %v839
        %v936 = vpop.f32.mrf.mxu0
        %v937 = vadd.f32 %v770, %v936
        %v938 = vpop.f32.mrf.mxu0
        %v939 = vadd.f32 %v772, %v938
        %940 = vmatmul.bf16.gmra.mxu0 %v840
        %v941 = vpop.f32.mrf.mxu0
        %v942 = vadd.f32 %v775, %v941
        %v943 = vpop.f32.mrf.mxu0
        %v944 = vadd.f32 %v777, %v943
        %945 = vmatmul.bf16.gmra.mxu0 %v841
        %v946 = vpop.f32.mrf.mxu0
        %v947 = vadd.f32 %v780, %v946
        %v948 = vpop.f32.mrf.mxu0
        %v949 = vadd.f32 %v782, %v948
        %950 = vmatmul.bf16.gmra.mxu0 %v842
        %v951 = vpop.f32.mrf.mxu0
        %v952 = vadd.f32 %v785, %v951
        %v953 = vpop.f32.mrf.mxu0
        %v954 = vadd.f32 %v787, %v953
        %955 = vmatmul.bf16.gmra.mxu0 %v843
        %v956 = vpop.f32.mrf.mxu0
        %v957 = vadd.f32 %v790, %v956
        %v958 = vpop.f32.mrf.mxu0
        %v959 = vadd.f32 %v792, %v958
        %960 = vdwg.mxu0
        %vm971 = vcmask 1042432
        %vm972 = vcmask 1046532
        %vm973 = vmor %vm971, %vm972
        %v974 = vrot.slane %v335, 5
        %v975 = vrot.slane %v974, 4
        %v976 = vrot.slane %v336, 5
        %v977 = vsel %vm973, %v975, %v976
        %v978 = vrot.slane %v976, 4
        %v979 = vrot.slane %v337, 5
        %v980 = vsel %vm973, %v978, %v979
        %v981 = vrot.slane %v338, 5
        %v982 = vrot.slane %v981, 4
        %v983 = vrot.slane %v339, 5
        %v984 = vsel %vm973, %v982, %v983
        %v985 = vrot.slane %v983, 4
        %v986 = vrot.slane %v340, 5
        %v987 = vsel %vm973, %v985, %v986
        %v988 = vrot.slane %v341, 5
        %v989 = vrot.slane %v988, 4
        %v990 = vrot.slane %v342, 5
        %v991 = vsel %vm973, %v989, %v990
        %v992 = vrot.slane %v990, 4
        %v993 = vrot.slane %v343, 5
        %v994 = vsel %vm973, %v992, %v993
        %v995 = vrot.slane %v344, 5
        %v996 = vrot.slane %v995, 4
        %v997 = vrot.slane %v345, 5
        %v998 = vsel %vm973, %v996, %v997
        %v999 = vrot.slane %v997, 4
        %v1000 = vrot.slane %v346, 5
        %v1001 = vsel %vm973, %v999, %v1000
        %v1002 = vrot.slane %v347, 5
        %v1003 = vrot.slane %v1002, 4
        %v1004 = vrot.slane %v348, 5
        %v1005 = vsel %vm973, %v1003, %v1004
        %v1006 = vrot.slane %v1004, 4
        %v1007 = vrot.slane %v349, 5
        %v1008 = vsel %vm973, %v1006, %v1007
        %v1009 = vrot.slane %v350, 5
        %v1010 = vrot.slane %v1009, 4
        %v1011 = vrot.slane %v351, 5
        %v1012 = vsel %vm973, %v1010, %v1011
        %v1013 = vrot.slane %v1011, 4
        %v1014 = vrot.slane %v352, 5
        %v1015 = vsel %vm973, %v1013, %v1014
        %v1016 = vrot.slane %v353, 5
        %v1017 = vrot.slane %v1016, 4
        %v1018 = vrot.slane %v354, 5
        %v1019 = vsel %vm973, %v1017, %v1018
        %v1020 = vrot.slane %v1018, 4
        %v1021 = vrot.slane %v355, 5
        %v1022 = vsel %vm973, %v1020, %v1021
        %v1023 = vrot.slane %v356, 5
        %v1024 = vrot.slane %v1023, 4
        %v1025 = vrot.slane %v357, 5
        %v1026 = vsel %vm973, %v1024, %v1025
        %v1027 = vrot.slane %v1025, 4
        %v1028 = vrot.slane %v358, 5
        %v1029 = vsel %vm973, %v1027, %v1028
        %v1030 = vrot.slane %v359, 5
        %v1031 = vrot.slane %v1030, 4
        %v1032 = vrot.slane %v360, 5
        %v1033 = vsel %vm973, %v1031, %v1032
        %v1034 = vrot.slane %v1032, 4
        %v1035 = vrot.slane %v361, 5
        %v1036 = vsel %vm973, %v1034, %v1035
        %v1037 = vrot.slane %v362, 5
        %v1038 = vrot.slane %v1037, 4
        %v1039 = vrot.slane %v363, 5
        %v1040 = vsel %vm973, %v1038, %v1039
        %v1041 = vrot.slane %v1039, 4
        %v1042 = vrot.slane %v364, 5
        %v1043 = vsel %vm973, %v1041, %v1042
        %s1044 = scalar_lea.vmem %s2, 128
        %v1045 = vld [vmem:[%s1044] sm:$0xf]
        %v1046 = vld [vmem:[%s1044 + $0x4] sm:$0xf]
        %v1047 = vld [vmem:[%s1044 + $0x8] sm:$0xf]
        %v1048 = vld [vmem:[%s1044 + $0xc] sm:$0xf]
        %v1049 = vld [vmem:[%s1044 + $0x10] sm:$0xf]
        %v1050 = vld [vmem:[%s1044 + $0x14] sm:$0xf]
        %v1051 = vld [vmem:[%s1044 + $0x18] sm:$0xf]
        %v1052 = vld [vmem:[%s1044 + $0x1c] sm:$0xf]
        %v1053 = vld [vmem:[%s1044 + $0x20] sm:$0xf]
        %v1054 = vld [vmem:[%s1044 + $0x24] sm:$0xf]
        %v1055 = vld [vmem:[%s1044 + $0x28] sm:$0xf]
        %v1056 = vld [vmem:[%s1044 + $0x2c] sm:$0xf]
        %v1057 = vld [vmem:[%s1044 + $0x30] sm:$0xf]
        %v1058 = vld [vmem:[%s1044 + $0x34] sm:$0xf]
        %v1059 = vld [vmem:[%s1044 + $0x38] sm:$0xf]
        %v1060 = vld [vmem:[%s1044 + $0x3c] sm:$0xf]
        %v1061 = vunpack.c.l.b16 %v977
        %v1062 = vunpack.c.l.b16 %v980
        %v1063 = vunpack.c.l.b16 %v984
        %v1064 = vunpack.c.l.b16 %v987
        %v1065 = vunpack.c.l.b16 %v991
        %v1066 = vunpack.c.l.b16 %v994
        %v1067 = vunpack.c.l.b16 %v998
        %v1068 = vunpack.c.l.b16 %v1001
        %v1069 = vunpack.c.l.b16 %v1005
        %v1070 = vunpack.c.l.b16 %v1008
        %v1071 = vunpack.c.l.b16 %v1012
        %v1072 = vunpack.c.l.b16 %v1015
        %v1073 = vunpack.c.l.b16 %v1019
        %v1074 = vunpack.c.l.b16 %v1022
        %v1075 = vunpack.c.l.b16 %v1026
        %v1076 = vunpack.c.l.b16 %v1029
        %v1077 = vunpack.c.l.b16 %v1033
        %v1078 = vunpack.c.l.b16 %v1036
        %v1079 = vunpack.c.l.b16 %v1040
        %v1080 = vunpack.c.l.b16 %v1043
        %v1081 = vpack.c.b16 %v1062, %v1061
        %v1082 = vpack.c.b16 %v1064, %v1063
        %v1083 = vpack.c.b16 %v1066, %v1065
        %v1084 = vpack.c.b16 %v1068, %v1067
        %v1085 = vpack.c.b16 %v1070, %v1069
        %v1086 = vpack.c.b16 %v1072, %v1071
        %v1087 = vpack.c.b16 %v1074, %v1073
        %v1088 = vpack.c.b16 %v1076, %v1075
        %v1089 = vpack.c.b16 %v1078, %v1077
        %v1090 = vpack.c.b16 %v1080, %v1079
        %v1117 = vunpack.c.l.b16 %v1045
        %v1118 = vunpack.c.l.b16 %v1046
        %v1119 = vunpack.c.l.b16 %v1047
        %v1120 = vunpack.c.l.b16 %v1048
        %v1121 = vunpack.c.l.b16 %v1049
        %v1122 = vunpack.c.l.b16 %v1050
        %v1123 = vunpack.c.l.b16 %v1051
        %v1124 = vunpack.c.l.b16 %v1052
        %v1125 = vunpack.c.l.b16 %v1053
        %v1126 = vunpack.c.l.b16 %v1054
        %v1127 = vunpack.c.l.b16 %v1055
        %v1128 = vunpack.c.l.b16 %v1056
        %v1129 = vunpack.c.l.b16 %v1057
        %v1130 = vunpack.c.l.b16 %v1058
        %v1131 = vunpack.c.l.b16 %v1059
        %v1132 = vunpack.c.l.b16 %v1060
        %v1133 = vpack.c.b16 %v1118, %v1117
        %v1134 = vpack.c.b16 %v1120, %v1119
        %v1135 = vpack.c.b16 %v1122, %v1121
        %v1136 = vpack.c.b16 %v1124, %v1123
        %v1137 = vpack.c.b16 %v1126, %v1125
        %v1138 = vpack.c.b16 %v1128, %v1127
        %v1139 = vpack.c.b16 %v1130, %v1129
        %v1140 = vpack.c.b16 %v1132, %v1131
        %1149 = vmatpush.bf16.msra.mxu0 %v1140
        %1150 = vmatpush.bf16.msra.mxu0 %v1139
        %1151 = vmatpush.bf16.msra.mxu0 %v1138
        %1152 = vmatpush.bf16.msra.mxu0 %v1137
        %1153 = vmatpush.bf16.msra.mxu0 %v1136
        %1154 = vmatpush.bf16.msra.mxu0 %v1135
        %1155 = vmatpush.bf16.msra.mxu0 %v1134
        %1156 = vmatpush.bf16.msra.mxu0 %v1133
        %1157 = vmatmul.bf16.gmra.mxu0 %v1081
        %v1158 = vpop.f32.mrf.mxu0
        %v1159 = vadd.f32 0.0, %v1158
        %v1160 = vpop.f32.mrf.mxu0
        %v1161 = vadd.f32 0.0, %v1160
        %1162 = vmatmul.bf16.gmra.mxu0 %v1082
        %v1163 = vpop.f32.mrf.mxu0
        %v1164 = vadd.f32 0.0, %v1163
        %v1165 = vpop.f32.mrf.mxu0
        %v1166 = vadd.f32 0.0, %v1165
        %1167 = vmatmul.bf16.gmra.mxu0 %v1083
        %v1168 = vpop.f32.mrf.mxu0
        %v1169 = vadd.f32 0.0, %v1168
        %v1170 = vpop.f32.mrf.mxu0
        %v1171 = vadd.f32 0.0, %v1170
        %1172 = vmatmul.bf16.gmra.mxu0 %v1084
        %v1173 = vpop.f32.mrf.mxu0
        %v1174 = vadd.f32 0.0, %v1173
        %v1175 = vpop.f32.mrf.mxu0
        %v1176 = vadd.f32 0.0, %v1175
        %1177 = vmatmul.bf16.gmra.mxu0 %v1085
        %v1178 = vpop.f32.mrf.mxu0
        %v1179 = vadd.f32 0.0, %v1178
        %v1180 = vpop.f32.mrf.mxu0
        %v1181 = vadd.f32 0.0, %v1180
        %1182 = vmatmul.bf16.gmra.mxu0 %v1086
        %v1183 = vpop.f32.mrf.mxu0
        %v1184 = vadd.f32 0.0, %v1183
        %v1185 = vpop.f32.mrf.mxu0
        %v1186 = vadd.f32 0.0, %v1185
        %1187 = vmatmul.bf16.gmra.mxu0 %v1087
        %v1188 = vpop.f32.mrf.mxu0
        %v1189 = vadd.f32 0.0, %v1188
        %v1190 = vpop.f32.mrf.mxu0
        %v1191 = vadd.f32 0.0, %v1190
        %1192 = vmatmul.bf16.gmra.mxu0 %v1088
        %v1193 = vpop.f32.mrf.mxu0
        %v1194 = vadd.f32 0.0, %v1193
        %v1195 = vpop.f32.mrf.mxu0
        %v1196 = vadd.f32 0.0, %v1195
        %1197 = vmatmul.bf16.gmra.mxu0 %v1089
        %v1198 = vpop.f32.mrf.mxu0
        %v1199 = vadd.f32 0.0, %v1198
        %v1200 = vpop.f32.mrf.mxu0
        %v1201 = vadd.f32 0.0, %v1200
        %1202 = vmatmul.bf16.gmra.mxu0 %v1090
        %v1203 = vpop.f32.mrf.mxu0
        %v1204 = vadd.f32 0.0, %v1203
        %v1205 = vpop.f32.mrf.mxu0
        %v1206 = vadd.f32 0.0, %v1205
        %1207 = vdwg.mxu0
        %v1208 = vadd.f32 %v912, %v1159
        %v1209 = vadd.f32 %v914, %v1161
        %v1210 = vadd.f32 %v917, %v1164
        %v1211 = vadd.f32 %v919, %v1166
        %v1212 = vadd.f32 %v922, %v1169
        %v1213 = vadd.f32 %v924, %v1171
        %v1214 = vadd.f32 %v927, %v1174
        %v1215 = vadd.f32 %v929, %v1176
        %v1216 = vadd.f32 %v932, %v1179
        %v1217 = vadd.f32 %v934, %v1181
        %v1218 = vadd.f32 %v937, %v1184
        %v1219 = vadd.f32 %v939, %v1186
        %v1220 = vadd.f32 %v942, %v1189
        %v1221 = vadd.f32 %v944, %v1191
        %v1222 = vadd.f32 %v947, %v1194
        %v1223 = vadd.f32 %v949, %v1196
        %v1224 = vadd.f32 %v952, %v1199
        %v1225 = vadd.f32 %v954, %v1201
        %v1226 = vadd.f32 %v957, %v1204
        %v1227 = vadd.f32 %v959, %v1206
        %s1228 = scalar_lea.vmem %s2, 192
        %v1229 = vld [vmem:[%s1228] sm:$0xf]
        %v1230 = vld [vmem:[%s1228 + $0x4] sm:$0xf]
        %v1231 = vld [vmem:[%s1228 + $0x8] sm:$0xf]
        %v1232 = vld [vmem:[%s1228 + $0xc] sm:$0xf]
        %v1233 = vld [vmem:[%s1228 + $0x10] sm:$0xf]
        %v1234 = vld [vmem:[%s1228 + $0x14] sm:$0xf]
        %v1235 = vld [vmem:[%s1228 + $0x18] sm:$0xf]
        %v1236 = vld [vmem:[%s1228 + $0x1c] sm:$0xf]
        %v1237 = vld [vmem:[%s1228 + $0x20] sm:$0xf]
        %v1238 = vld [vmem:[%s1228 + $0x24] sm:$0xf]
        %v1239 = vld [vmem:[%s1228 + $0x28] sm:$0xf]
        %v1240 = vld [vmem:[%s1228 + $0x2c] sm:$0xf]
        %v1241 = vld [vmem:[%s1228 + $0x30] sm:$0xf]
        %v1242 = vld [vmem:[%s1228 + $0x34] sm:$0xf]
        %v1243 = vld [vmem:[%s1228 + $0x38] sm:$0xf]
        %v1244 = vld [vmem:[%s1228 + $0x3c] sm:$0xf]
        %v1247 = vunpack.c.l.b16 %v365
        %v1248 = vunpack.c.l.b16 %v366
        %v1249 = vpack.c.b16 %v1248, %v1247
        %v1267 = vunpack.c.l.b16 %v1229
        %v1268 = vunpack.c.l.b16 %v1230
        %v1269 = vunpack.c.l.b16 %v1231
        %v1270 = vunpack.c.l.b16 %v1232
        %v1271 = vunpack.c.l.b16 %v1233
        %v1272 = vunpack.c.l.b16 %v1234
        %v1273 = vunpack.c.l.b16 %v1235
        %v1274 = vunpack.c.l.b16 %v1236
        %v1275 = vunpack.c.l.b16 %v1237
        %v1276 = vunpack.c.l.b16 %v1238
        %v1277 = vunpack.c.l.b16 %v1239
        %v1278 = vunpack.c.l.b16 %v1240
        %v1279 = vunpack.c.l.b16 %v1241
        %v1280 = vunpack.c.l.b16 %v1242
        %v1281 = vunpack.c.l.b16 %v1243
        %v1282 = vunpack.c.l.b16 %v1244
        %v1283 = vpack.c.b16 %v1268, %v1267
        %v1284 = vpack.c.b16 %v1270, %v1269
        %v1285 = vpack.c.b16 %v1272, %v1271
        %v1286 = vpack.c.b16 %v1274, %v1273
        %v1287 = vpack.c.b16 %v1276, %v1275
        %v1288 = vpack.c.b16 %v1278, %v1277
        %v1289 = vpack.c.b16 %v1280, %v1279
        %v1290 = vpack.c.b16 %v1282, %v1281
        %1299 = vmatpush.bf16.msra.mxu0 %v1290
        %1300 = vmatpush.bf16.msra.mxu0 %v1289
        %1301 = vmatpush.bf16.msra.mxu0 %v1288
        %1302 = vmatpush.bf16.msra.mxu0 %v1287
        %1303 = vmatpush.bf16.msra.mxu0 %v1286
        %1304 = vmatpush.bf16.msra.mxu0 %v1285
        %1305 = vmatpush.bf16.msra.mxu0 %v1284
        %1306 = vmatpush.bf16.msra.mxu0 %v1283
        %1307 = vmatmul.bf16.gmra.mxu0 %v835
        %v1308 = vpop.f32.mrf.mxu0
        %v1309 = vadd.f32 0.0, %v1308
        %v1310 = vpop.f32.mrf.mxu0
        %v1311 = vadd.f32 0.0, %v1310
        %1312 = vmatmul.bf16.gmra.mxu0 %v836
        %v1313 = vpop.f32.mrf.mxu0
        %v1314 = vadd.f32 0.0, %v1313
        %v1315 = vpop.f32.mrf.mxu0
        %v1316 = vadd.f32 0.0, %v1315
        %1317 = vmatmul.bf16.gmra.mxu0 %v837
        %v1318 = vpop.f32.mrf.mxu0
        %v1319 = vadd.f32 0.0, %v1318
        %v1320 = vpop.f32.mrf.mxu0
        %v1321 = vadd.f32 0.0, %v1320
        %1322 = vmatmul.bf16.gmra.mxu0 %v838
        %v1323 = vpop.f32.mrf.mxu0
        %v1324 = vadd.f32 0.0, %v1323
        %v1325 = vpop.f32.mrf.mxu0
        %v1326 = vadd.f32 0.0, %v1325
        %1327 = vmatmul.bf16.gmra.mxu0 %v839
        %v1328 = vpop.f32.mrf.mxu0
        %v1329 = vadd.f32 0.0, %v1328
        %v1330 = vpop.f32.mrf.mxu0
        %v1331 = vadd.f32 0.0, %v1330
        %1332 = vmatmul.bf16.gmra.mxu0 %v840
        %v1333 = vpop.f32.mrf.mxu0
        %v1334 = vadd.f32 0.0, %v1333
        %v1335 = vpop.f32.mrf.mxu0
        %v1336 = vadd.f32 0.0, %v1335
        %1337 = vmatmul.bf16.gmra.mxu0 %v841
        %v1338 = vpop.f32.mrf.mxu0
        %v1339 = vadd.f32 0.0, %v1338
        %v1340 = vpop.f32.mrf.mxu0
        %v1341 = vadd.f32 0.0, %v1340
        %1342 = vmatmul.bf16.gmra.mxu0 %v842
        %v1343 = vpop.f32.mrf.mxu0
        %v1344 = vadd.f32 0.0, %v1343
        %v1345 = vpop.f32.mrf.mxu0
        %v1346 = vadd.f32 0.0, %v1345
        %1347 = vmatmul.bf16.gmra.mxu0 %v843
        %v1348 = vpop.f32.mrf.mxu0
        %v1349 = vadd.f32 0.0, %v1348
        %v1350 = vpop.f32.mrf.mxu0
        %v1351 = vadd.f32 0.0, %v1350
        %1352 = vmatmul.bf16.gmra.mxu0 %v1249
        %v1353 = vpop.f32.mrf.mxu0
        %v1354 = vadd.f32 0.0, %v1353
        %v1355 = vpop.f32.mrf.mxu0
        %v1356 = vadd.f32 0.0, %v1355
        %1357 = vdwg.mxu0
        %v1358 = vadd.f32 %v1208, %v1309
        %v1359 = vadd.f32 %v1209, %v1311
        %v1360 = vadd.f32 %v1210, %v1314
        %v1361 = vadd.f32 %v1211, %v1316
        %v1362 = vadd.f32 %v1212, %v1319
        %v1363 = vadd.f32 %v1213, %v1321
        %v1364 = vadd.f32 %v1214, %v1324
        %v1365 = vadd.f32 %v1215, %v1326
        %v1366 = vadd.f32 %v1216, %v1329
        %v1367 = vadd.f32 %v1217, %v1331
        %v1368 = vadd.f32 %v1218, %v1334
        %v1369 = vadd.f32 %v1219, %v1336
        %v1370 = vadd.f32 %v1220, %v1339
        %v1371 = vadd.f32 %v1221, %v1341
        %v1372 = vadd.f32 %v1222, %v1344
        %v1373 = vadd.f32 %v1223, %v1346
        %v1374 = vadd.f32 %v1224, %v1349
        %v1375 = vadd.f32 %v1225, %v1351
        %v1376 = vadd.f32 %v1226, %v1354
        %v1377 = vadd.f32 %v1227, %v1356
        %v1379 = vshrl.u32 %v365, 16
        %v1381 = vrot.slane %v1379, 4
        %v1382 = vshll.u32 %v365, 16
        %v1384 = vrot.slane %v1382, 5
        %v1385 = vor.u32 %v1381, %v1384
        %v1386 = vrot.slane %v1385, 4
        %v1388 = vshll.u32 %v366, 16
        %v1390 = vrot.slane %v1388, 5
        %v1391 = vsel %vm389, %v1386, %v1390
        %v1392 = vshrl.u32 %v366, 16
        %v1394 = vrot.slane %v1392, 4
        %v1395 = vor.u32 %v1394, %v1390
        %v1396 = vrot.slane %v1395, 4
        %v1398 = vshll.u32 %v367, 16
        %v1400 = vrot.slane %v1398, 5
        %v1401 = vsel %vm389, %v1396, %v1400
        %s1402 = scalar_lea.vmem %s2, 256
        %v1403 = vld [vmem:[%s1402] sm:$0xf]
        %v1404 = vld [vmem:[%s1402 + $0x4] sm:$0xf]
        %v1405 = vld [vmem:[%s1402 + $0x8] sm:$0xf]
        %v1406 = vld [vmem:[%s1402 + $0xc] sm:$0xf]
        %v1407 = vld [vmem:[%s1402 + $0x10] sm:$0xf]
        %v1408 = vld [vmem:[%s1402 + $0x14] sm:$0xf]
        %v1409 = vld [vmem:[%s1402 + $0x18] sm:$0xf]
        %v1410 = vld [vmem:[%s1402 + $0x1c] sm:$0xf]
        %v1411 = vld [vmem:[%s1402 + $0x20] sm:$0xf]
        %v1412 = vld [vmem:[%s1402 + $0x24] sm:$0xf]
        %v1413 = vld [vmem:[%s1402 + $0x28] sm:$0xf]
        %v1414 = vld [vmem:[%s1402 + $0x2c] sm:$0xf]
        %v1415 = vld [vmem:[%s1402 + $0x30] sm:$0xf]
        %v1416 = vld [vmem:[%s1402 + $0x34] sm:$0xf]
        %v1417 = vld [vmem:[%s1402 + $0x38] sm:$0xf]
        %v1418 = vld [vmem:[%s1402 + $0x3c] sm:$0xf]
        %v1419 = vunpack.c.l.b16 %v1391
        %v1420 = vunpack.c.l.b16 %v1401
        %v1421 = vpack.c.b16 %v1420, %v1419
        %v1439 = vunpack.c.l.b16 %v1403
        %v1440 = vunpack.c.l.b16 %v1404
        %v1441 = vunpack.c.l.b16 %v1405
        %v1442 = vunpack.c.l.b16 %v1406
        %v1443 = vunpack.c.l.b16 %v1407
        %v1444 = vunpack.c.l.b16 %v1408
        %v1445 = vunpack.c.l.b16 %v1409
        %v1446 = vunpack.c.l.b16 %v1410
        %v1447 = vunpack.c.l.b16 %v1411
        %v1448 = vunpack.c.l.b16 %v1412
        %v1449 = vunpack.c.l.b16 %v1413
        %v1450 = vunpack.c.l.b16 %v1414
        %v1451 = vunpack.c.l.b16 %v1415
        %v1452 = vunpack.c.l.b16 %v1416
        %v1453 = vunpack.c.l.b16 %v1417
        %v1454 = vunpack.c.l.b16 %v1418
        %v1455 = vpack.c.b16 %v1440, %v1439
        %v1456 = vpack.c.b16 %v1442, %v1441
        %v1457 = vpack.c.b16 %v1444, %v1443
        %v1458 = vpack.c.b16 %v1446, %v1445
        %v1459 = vpack.c.b16 %v1448, %v1447
        %v1460 = vpack.c.b16 %v1450, %v1449
        %v1461 = vpack.c.b16 %v1452, %v1451
        %v1462 = vpack.c.b16 %v1454, %v1453
        %1471 = vmatpush.bf16.msra.mxu0 %v1462
        %1472 = vmatpush.bf16.msra.mxu0 %v1461
        %1473 = vmatpush.bf16.msra.mxu0 %v1460
        %1474 = vmatpush.bf16.msra.mxu0 %v1459
        %1475 = vmatpush.bf16.msra.mxu0 %v1458
        %1476 = vmatpush.bf16.msra.mxu0 %v1457
        %1477 = vmatpush.bf16.msra.mxu0 %v1456
        %1478 = vmatpush.bf16.msra.mxu0 %v1455
        %1479 = vmatmul.bf16.gmra.mxu0 %v668
        %v1480 = vpop.f32.mrf.mxu0
        %v1481 = vadd.f32 0.0, %v1480
        %v1482 = vpop.f32.mrf.mxu0
        %v1483 = vadd.f32 0.0, %v1482
        %1484 = vmatmul.bf16.gmra.mxu0 %v669
        %v1485 = vpop.f32.mrf.mxu0
        %v1486 = vadd.f32 0.0, %v1485
        %v1487 = vpop.f32.mrf.mxu0
        %v1488 = vadd.f32 0.0, %v1487
        %1489 = vmatmul.bf16.gmra.mxu0 %v670
        %v1490 = vpop.f32.mrf.mxu0
        %v1491 = vadd.f32 0.0, %v1490
        %v1492 = vpop.f32.mrf.mxu0
        %v1493 = vadd.f32 0.0, %v1492
        %1494 = vmatmul.bf16.gmra.mxu0 %v671
        %v1495 = vpop.f32.mrf.mxu0
        %v1496 = vadd.f32 0.0, %v1495
        %v1497 = vpop.f32.mrf.mxu0
        %v1498 = vadd.f32 0.0, %v1497
        %1499 = vmatmul.bf16.gmra.mxu0 %v672
        %v1500 = vpop.f32.mrf.mxu0
        %v1501 = vadd.f32 0.0, %v1500
        %v1502 = vpop.f32.mrf.mxu0
        %v1503 = vadd.f32 0.0, %v1502
        %1504 = vmatmul.bf16.gmra.mxu0 %v673
        %v1505 = vpop.f32.mrf.mxu0
        %v1506 = vadd.f32 0.0, %v1505
        %v1507 = vpop.f32.mrf.mxu0
        %v1508 = vadd.f32 0.0, %v1507
        %1509 = vmatmul.bf16.gmra.mxu0 %v674
        %v1510 = vpop.f32.mrf.mxu0
        %v1511 = vadd.f32 0.0, %v1510
        %v1512 = vpop.f32.mrf.mxu0
        %v1513 = vadd.f32 0.0, %v1512
        %1514 = vmatmul.bf16.gmra.mxu0 %v675
        %v1515 = vpop.f32.mrf.mxu0
        %v1516 = vadd.f32 0.0, %v1515
        %v1517 = vpop.f32.mrf.mxu0
        %v1518 = vadd.f32 0.0, %v1517
        %1519 = vmatmul.bf16.gmra.mxu0 %v676
        %v1520 = vpop.f32.mrf.mxu0
        %v1521 = vadd.f32 0.0, %v1520
        %v1522 = vpop.f32.mrf.mxu0
        %v1523 = vadd.f32 0.0, %v1522
        %1524 = vmatmul.bf16.gmra.mxu0 %v1421
        %v1525 = vpop.f32.mrf.mxu0
        %v1526 = vadd.f32 0.0, %v1525
        %v1527 = vpop.f32.mrf.mxu0
        %v1528 = vadd.f32 0.0, %v1527
        %1529 = vdwg.mxu0
        %v1530 = vadd.f32 %v1358, %v1481
        %v1531 = vadd.f32 %v1359, %v1483
        %v1532 = vadd.f32 %v1360, %v1486
        %v1533 = vadd.f32 %v1361, %v1488
        %v1534 = vadd.f32 %v1362, %v1491
        %v1535 = vadd.f32 %v1363, %v1493
        %v1536 = vadd.f32 %v1364, %v1496
        %v1537 = vadd.f32 %v1365, %v1498
        %v1538 = vadd.f32 %v1366, %v1501
        %v1539 = vadd.f32 %v1367, %v1503
        %v1540 = vadd.f32 %v1368, %v1506
        %v1541 = vadd.f32 %v1369, %v1508
        %v1542 = vadd.f32 %v1370, %v1511
        %v1543 = vadd.f32 %v1371, %v1513
        %v1544 = vadd.f32 %v1372, %v1516
        %v1545 = vadd.f32 %v1373, %v1518
        %v1546 = vadd.f32 %v1374, %v1521
        %v1547 = vadd.f32 %v1375, %v1523
        %v1548 = vadd.f32 %v1376, %v1526
        %v1549 = vadd.f32 %v1377, %v1528
        %v1551 = vrot.slane %v365, 5
        %v1552 = vrot.slane %v1551, 4
        %v1553 = vrot.slane %v366, 5
        %v1554 = vsel %vm973, %v1552, %v1553
        %v1555 = vrot.slane %v1553, 4
        %v1556 = vrot.slane %v367, 5
        %v1557 = vsel %vm973, %v1555, %v1556
        %s1558 = scalar_lea.vmem %s2, 320
        %v1559 = vld [vmem:[%s1558] sm:$0xf]
        %v1560 = vld [vmem:[%s1558 + $0x4] sm:$0xf]
        %v1561 = vld [vmem:[%s1558 + $0x8] sm:$0xf]
        %v1562 = vld [vmem:[%s1558 + $0xc] sm:$0xf]
        %v1563 = vld [vmem:[%s1558 + $0x10] sm:$0xf]
        %v1564 = vld [vmem:[%s1558 + $0x14] sm:$0xf]
        %v1565 = vld [vmem:[%s1558 + $0x18] sm:$0xf]
        %v1566 = vld [vmem:[%s1558 + $0x1c] sm:$0xf]
        %v1567 = vld [vmem:[%s1558 + $0x20] sm:$0xf]
        %v1568 = vld [vmem:[%s1558 + $0x24] sm:$0xf]
        %v1569 = vld [vmem:[%s1558 + $0x28] sm:$0xf]
        %v1570 = vld [vmem:[%s1558 + $0x2c] sm:$0xf]
        %v1571 = vld [vmem:[%s1558 + $0x30] sm:$0xf]
        %v1572 = vld [vmem:[%s1558 + $0x34] sm:$0xf]
        %v1573 = vld [vmem:[%s1558 + $0x38] sm:$0xf]
        %v1574 = vld [vmem:[%s1558 + $0x3c] sm:$0xf]
        %v1575 = vunpack.c.l.b16 %v1554
        %v1576 = vunpack.c.l.b16 %v1557
        %v1577 = vpack.c.b16 %v1576, %v1575
        %v1595 = vunpack.c.l.b16 %v1559
        %v1596 = vunpack.c.l.b16 %v1560
        %v1597 = vunpack.c.l.b16 %v1561
        %v1598 = vunpack.c.l.b16 %v1562
        %v1599 = vunpack.c.l.b16 %v1563
        %v1600 = vunpack.c.l.b16 %v1564
        %v1601 = vunpack.c.l.b16 %v1565
        %v1602 = vunpack.c.l.b16 %v1566
        %v1603 = vunpack.c.l.b16 %v1567
        %v1604 = vunpack.c.l.b16 %v1568
        %v1605 = vunpack.c.l.b16 %v1569
        %v1606 = vunpack.c.l.b16 %v1570
        %v1607 = vunpack.c.l.b16 %v1571
        %v1608 = vunpack.c.l.b16 %v1572
        %v1609 = vunpack.c.l.b16 %v1573
        %v1610 = vunpack.c.l.b16 %v1574
        %v1611 = vpack.c.b16 %v1596, %v1595
        %v1612 = vpack.c.b16 %v1598, %v1597
        %v1613 = vpack.c.b16 %v1600, %v1599
        %v1614 = vpack.c.b16 %v1602, %v1601
        %v1615 = vpack.c.b16 %v1604, %v1603
        %v1616 = vpack.c.b16 %v1606, %v1605
        %v1617 = vpack.c.b16 %v1608, %v1607
        %v1618 = vpack.c.b16 %v1610, %v1609
        %1627 = vmatpush.bf16.msra.mxu0 %v1618
        %1628 = vmatpush.bf16.msra.mxu0 %v1617
        %1629 = vmatpush.bf16.msra.mxu0 %v1616
        %1630 = vmatpush.bf16.msra.mxu0 %v1615
        %1631 = vmatpush.bf16.msra.mxu0 %v1614
        %1632 = vmatpush.bf16.msra.mxu0 %v1613
        %1633 = vmatpush.bf16.msra.mxu0 %v1612
        %1634 = vmatpush.bf16.msra.mxu0 %v1611
        %1635 = vmatmul.bf16.gmra.mxu0 %v1082
        %v1636 = vpop.f32.mrf.mxu0
        %v1637 = vadd.f32 0.0, %v1636
        %v1638 = vpop.f32.mrf.mxu0
        %v1639 = vadd.f32 0.0, %v1638
        %1640 = vmatmul.bf16.gmra.mxu0 %v1083
        %v1641 = vpop.f32.mrf.mxu0
        %v1642 = vadd.f32 0.0, %v1641
        %v1643 = vpop.f32.mrf.mxu0
        %v1644 = vadd.f32 0.0, %v1643
        %1645 = vmatmul.bf16.gmra.mxu0 %v1084
        %v1646 = vpop.f32.mrf.mxu0
        %v1647 = vadd.f32 0.0, %v1646
        %v1648 = vpop.f32.mrf.mxu0
        %v1649 = vadd.f32 0.0, %v1648
        %1650 = vmatmul.bf16.gmra.mxu0 %v1085
        %v1651 = vpop.f32.mrf.mxu0
        %v1652 = vadd.f32 0.0, %v1651
        %v1653 = vpop.f32.mrf.mxu0
        %v1654 = vadd.f32 0.0, %v1653
        %1655 = vmatmul.bf16.gmra.mxu0 %v1086
        %v1656 = vpop.f32.mrf.mxu0
        %v1657 = vadd.f32 0.0, %v1656
        %v1658 = vpop.f32.mrf.mxu0
        %v1659 = vadd.f32 0.0, %v1658
        %1660 = vmatmul.bf16.gmra.mxu0 %v1087
        %v1661 = vpop.f32.mrf.mxu0
        %v1662 = vadd.f32 0.0, %v1661
        %v1663 = vpop.f32.mrf.mxu0
        %v1664 = vadd.f32 0.0, %v1663
        %1665 = vmatmul.bf16.gmra.mxu0 %v1088
        %v1666 = vpop.f32.mrf.mxu0
        %v1667 = vadd.f32 0.0, %v1666
        %v1668 = vpop.f32.mrf.mxu0
        %v1669 = vadd.f32 0.0, %v1668
        %1670 = vmatmul.bf16.gmra.mxu0 %v1089
        %v1671 = vpop.f32.mrf.mxu0
        %v1672 = vadd.f32 0.0, %v1671
        %v1673 = vpop.f32.mrf.mxu0
        %v1674 = vadd.f32 0.0, %v1673
        %1675 = vmatmul.bf16.gmra.mxu0 %v1090
        %v1676 = vpop.f32.mrf.mxu0
        %v1677 = vadd.f32 0.0, %v1676
        %v1678 = vpop.f32.mrf.mxu0
        %v1679 = vadd.f32 0.0, %v1678
        %1680 = vmatmul.bf16.gmra.mxu0 %v1577
        %v1681 = vpop.f32.mrf.mxu0
        %v1682 = vadd.f32 0.0, %v1681
        %v1683 = vpop.f32.mrf.mxu0
        %v1684 = vadd.f32 0.0, %v1683
        %1685 = vdwg.mxu0
        %v1686 = vadd.f32 %v1530, %v1637
        %v1687 = vadd.f32 %v1531, %v1639
        %v1688 = vadd.f32 %v1532, %v1642
        %v1689 = vadd.f32 %v1533, %v1644
        %v1690 = vadd.f32 %v1534, %v1647
        %v1691 = vadd.f32 %v1535, %v1649
        %v1692 = vadd.f32 %v1536, %v1652
        %v1693 = vadd.f32 %v1537, %v1654
        %v1694 = vadd.f32 %v1538, %v1657
        %v1695 = vadd.f32 %v1539, %v1659
        %v1696 = vadd.f32 %v1540, %v1662
        %v1697 = vadd.f32 %v1541, %v1664
        %v1698 = vadd.f32 %v1542, %v1667
        %v1699 = vadd.f32 %v1543, %v1669
        %v1700 = vadd.f32 %v1544, %v1672
        %v1701 = vadd.f32 %v1545, %v1674
        %v1702 = vadd.f32 %v1546, %v1677
        %v1703 = vadd.f32 %v1547, %v1679
        %v1704 = vadd.f32 %v1548, %v1682
        %v1705 = vadd.f32 %v1549, %v1684
        %s1706 = scalar_lea.vmem %s2, 384
        %v1707 = vld [vmem:[%s1706] sm:$0xf]
        %v1708 = vld [vmem:[%s1706 + $0x4] sm:$0xf]
        %v1709 = vld [vmem:[%s1706 + $0x8] sm:$0xf]
        %v1710 = vld [vmem:[%s1706 + $0xc] sm:$0xf]
        %v1711 = vld [vmem:[%s1706 + $0x10] sm:$0xf]
        %v1712 = vld [vmem:[%s1706 + $0x14] sm:$0xf]
        %v1713 = vld [vmem:[%s1706 + $0x18] sm:$0xf]
        %v1714 = vld [vmem:[%s1706 + $0x1c] sm:$0xf]
        %v1715 = vld [vmem:[%s1706 + $0x20] sm:$0xf]
        %v1716 = vld [vmem:[%s1706 + $0x24] sm:$0xf]
        %v1717 = vld [vmem:[%s1706 + $0x28] sm:$0xf]
        %v1718 = vld [vmem:[%s1706 + $0x2c] sm:$0xf]
        %v1719 = vld [vmem:[%s1706 + $0x30] sm:$0xf]
        %v1720 = vld [vmem:[%s1706 + $0x34] sm:$0xf]
        %v1721 = vld [vmem:[%s1706 + $0x38] sm:$0xf]
        %v1722 = vld [vmem:[%s1706 + $0x3c] sm:$0xf]
        %v1725 = vunpack.c.l.b16 %v368
        %v1726 = vunpack.c.l.b16 %v369
        %v1727 = vpack.c.b16 %v1726, %v1725
        %v1745 = vunpack.c.l.b16 %v1707
        %v1746 = vunpack.c.l.b16 %v1708
        %v1747 = vunpack.c.l.b16 %v1709
        %v1748 = vunpack.c.l.b16 %v1710
        %v1749 = vunpack.c.l.b16 %v1711
        %v1750 = vunpack.c.l.b16 %v1712
        %v1751 = vunpack.c.l.b16 %v1713
        %v1752 = vunpack.c.l.b16 %v1714
        %v1753 = vunpack.c.l.b16 %v1715
        %v1754 = vunpack.c.l.b16 %v1716
        %v1755 = vunpack.c.l.b16 %v1717
        %v1756 = vunpack.c.l.b16 %v1718
        %v1757 = vunpack.c.l.b16 %v1719
        %v1758 = vunpack.c.l.b16 %v1720
        %v1759 = vunpack.c.l.b16 %v1721
        %v1760 = vunpack.c.l.b16 %v1722
        %v1761 = vpack.c.b16 %v1746, %v1745
        %v1762 = vpack.c.b16 %v1748, %v1747
        %v1763 = vpack.c.b16 %v1750, %v1749
        %v1764 = vpack.c.b16 %v1752, %v1751
        %v1765 = vpack.c.b16 %v1754, %v1753
        %v1766 = vpack.c.b16 %v1756, %v1755
        %v1767 = vpack.c.b16 %v1758, %v1757
        %v1768 = vpack.c.b16 %v1760, %v1759
        %1777 = vmatpush.bf16.msra.mxu0 %v1768
        %1778 = vmatpush.bf16.msra.mxu0 %v1767
        %1779 = vmatpush.bf16.msra.mxu0 %v1766
        %1780 = vmatpush.bf16.msra.mxu0 %v1765
        %1781 = vmatpush.bf16.msra.mxu0 %v1764
        %1782 = vmatpush.bf16.msra.mxu0 %v1763
        %1783 = vmatpush.bf16.msra.mxu0 %v1762
        %1784 = vmatpush.bf16.msra.mxu0 %v1761
        %1785 = vmatmul.bf16.gmra.mxu0 %v836
        %v1786 = vpop.f32.mrf.mxu0
        %v1787 = vadd.f32 0.0, %v1786
        %v1788 = vpop.f32.mrf.mxu0
        %v1789 = vadd.f32 0.0, %v1788
        %1790 = vmatmul.bf16.gmra.mxu0 %v837
        %v1791 = vpop.f32.mrf.mxu0
        %v1792 = vadd.f32 0.0, %v1791
        %v1793 = vpop.f32.mrf.mxu0
        %v1794 = vadd.f32 0.0, %v1793
        %1795 = vmatmul.bf16.gmra.mxu0 %v838
        %v1796 = vpop.f32.mrf.mxu0
        %v1797 = vadd.f32 0.0, %v1796
        %v1798 = vpop.f32.mrf.mxu0
        %v1799 = vadd.f32 0.0, %v1798
        %1800 = vmatmul.bf16.gmra.mxu0 %v839
        %v1801 = vpop.f32.mrf.mxu0
        %v1802 = vadd.f32 0.0, %v1801
        %v1803 = vpop.f32.mrf.mxu0
        %v1804 = vadd.f32 0.0, %v1803
        %1805 = vmatmul.bf16.gmra.mxu0 %v840
        %v1806 = vpop.f32.mrf.mxu0
        %v1807 = vadd.f32 0.0, %v1806
        %v1808 = vpop.f32.mrf.mxu0
        %v1809 = vadd.f32 0.0, %v1808
        %1810 = vmatmul.bf16.gmra.mxu0 %v841
        %v1811 = vpop.f32.mrf.mxu0
        %v1812 = vadd.f32 0.0, %v1811
        %v1813 = vpop.f32.mrf.mxu0
        %v1814 = vadd.f32 0.0, %v1813
        %1815 = vmatmul.bf16.gmra.mxu0 %v842
        %v1816 = vpop.f32.mrf.mxu0
        %v1817 = vadd.f32 0.0, %v1816
        %v1818 = vpop.f32.mrf.mxu0
        %v1819 = vadd.f32 0.0, %v1818
        %1820 = vmatmul.bf16.gmra.mxu0 %v843
        %v1821 = vpop.f32.mrf.mxu0
        %v1822 = vadd.f32 0.0, %v1821
        %v1823 = vpop.f32.mrf.mxu0
        %v1824 = vadd.f32 0.0, %v1823
        %1825 = vmatmul.bf16.gmra.mxu0 %v1249
        %v1826 = vpop.f32.mrf.mxu0
        %v1827 = vadd.f32 0.0, %v1826
        %v1828 = vpop.f32.mrf.mxu0
        %v1829 = vadd.f32 0.0, %v1828
        %1830 = vmatmul.bf16.gmra.mxu0 %v1727
        %v1831 = vpop.f32.mrf.mxu0
        %v1832 = vadd.f32 0.0, %v1831
        %v1833 = vpop.f32.mrf.mxu0
        %v1834 = vadd.f32 0.0, %v1833
        %1835 = vdwg.mxu0
        %v1836 = vadd.f32 %v1686, %v1787
        %v1837 = vadd.f32 %v1687, %v1789
        %v1838 = vadd.f32 %v1688, %v1792
        %v1839 = vadd.f32 %v1689, %v1794
        %v1840 = vadd.f32 %v1690, %v1797
        %v1841 = vadd.f32 %v1691, %v1799
        %v1842 = vadd.f32 %v1692, %v1802
        %v1843 = vadd.f32 %v1693, %v1804
        %v1844 = vadd.f32 %v1694, %v1807
        %v1845 = vadd.f32 %v1695, %v1809
        %v1846 = vadd.f32 %v1696, %v1812
        %v1847 = vadd.f32 %v1697, %v1814
        %v1848 = vadd.f32 %v1698, %v1817
        %v1849 = vadd.f32 %v1699, %v1819
        %v1850 = vadd.f32 %v1700, %v1822
        %v1851 = vadd.f32 %v1701, %v1824
        %v1852 = vadd.f32 %v1702, %v1827
        %v1853 = vadd.f32 %v1703, %v1829
        %v1854 = vadd.f32 %v1704, %v1832
        %v1855 = vadd.f32 %v1705, %v1834
        %v1857 = vshrl.u32 %v368, 16
        %v1859 = vrot.slane %v1857, 4
        %v1860 = vshll.u32 %v368, 16
        %v1862 = vrot.slane %v1860, 5
        %v1863 = vor.u32 %v1859, %v1862
        %v1864 = vrot.slane %v1863, 4
        %v1866 = vshll.u32 %v369, 16
        %v1868 = vrot.slane %v1866, 5
        %v1869 = vsel %vm389, %v1864, %v1868
        %v1870 = vshrl.u32 %v369, 16
        %v1872 = vrot.slane %v1870, 4
        %v1873 = vor.u32 %v1872, %v1868
        %v1874 = vrot.slane %v1873, 4
        %v1876 = vshll.u32 %v370, 16
        %v1878 = vrot.slane %v1876, 5
        %v1879 = vsel %vm389, %v1874, %v1878
        %s1880 = scalar_lea.vmem %s2, 448
        %v1881 = vld [vmem:[%s1880] sm:$0xf]
        %v1882 = vld [vmem:[%s1880 + $0x4] sm:$0xf]
        %v1883 = vld [vmem:[%s1880 + $0x8] sm:$0xf]
        %v1884 = vld [vmem:[%s1880 + $0xc] sm:$0xf]
        %v1885 = vld [vmem:[%s1880 + $0x10] sm:$0xf]
        %v1886 = vld [vmem:[%s1880 + $0x14] sm:$0xf]
        %v1887 = vld [vmem:[%s1880 + $0x18] sm:$0xf]
        %v1888 = vld [vmem:[%s1880 + $0x1c] sm:$0xf]
        %v1889 = vld [vmem:[%s1880 + $0x20] sm:$0xf]
        %v1890 = vld [vmem:[%s1880 + $0x24] sm:$0xf]
        %v1891 = vld [vmem:[%s1880 + $0x28] sm:$0xf]
        %v1892 = vld [vmem:[%s1880 + $0x2c] sm:$0xf]
        %v1893 = vld [vmem:[%s1880 + $0x30] sm:$0xf]
        %v1894 = vld [vmem:[%s1880 + $0x34] sm:$0xf]
        %v1895 = vld [vmem:[%s1880 + $0x38] sm:$0xf]
        %v1896 = vld [vmem:[%s1880 + $0x3c] sm:$0xf]
        %v1897 = vunpack.c.l.b16 %v1869
        %v1898 = vunpack.c.l.b16 %v1879
        %v1899 = vpack.c.b16 %v1898, %v1897
        %v1917 = vunpack.c.l.b16 %v1881
        %v1918 = vunpack.c.l.b16 %v1882
        %v1919 = vunpack.c.l.b16 %v1883
        %v1920 = vunpack.c.l.b16 %v1884
        %v1921 = vunpack.c.l.b16 %v1885
        %v1922 = vunpack.c.l.b16 %v1886
        %v1923 = vunpack.c.l.b16 %v1887
        %v1924 = vunpack.c.l.b16 %v1888
        %v1925 = vunpack.c.l.b16 %v1889
        %v1926 = vunpack.c.l.b16 %v1890
        %v1927 = vunpack.c.l.b16 %v1891
        %v1928 = vunpack.c.l.b16 %v1892
        %v1929 = vunpack.c.l.b16 %v1893
        %v1930 = vunpack.c.l.b16 %v1894
        %v1931 = vunpack.c.l.b16 %v1895
        %v1932 = vunpack.c.l.b16 %v1896
        %v1933 = vpack.c.b16 %v1918, %v1917
        %v1934 = vpack.c.b16 %v1920, %v1919
        %v1935 = vpack.c.b16 %v1922, %v1921
        %v1936 = vpack.c.b16 %v1924, %v1923
        %v1937 = vpack.c.b16 %v1926, %v1925
        %v1938 = vpack.c.b16 %v1928, %v1927
        %v1939 = vpack.c.b16 %v1930, %v1929
        %v1940 = vpack.c.b16 %v1932, %v1931
        %1949 = vmatpush.bf16.msra.mxu0 %v1940
        %1950 = vmatpush.bf16.msra.mxu0 %v1939
        %1951 = vmatpush.bf16.msra.mxu0 %v1938
        %1952 = vmatpush.bf16.msra.mxu0 %v1937
        %1953 = vmatpush.bf16.msra.mxu0 %v1936
        %1954 = vmatpush.bf16.msra.mxu0 %v1935
        %1955 = vmatpush.bf16.msra.mxu0 %v1934
        %1956 = vmatpush.bf16.msra.mxu0 %v1933
        %1957 = vmatmul.bf16.gmra.mxu0 %v669
        %v1958 = vpop.f32.mrf.mxu0
        %v1959 = vadd.f32 0.0, %v1958
        %v1960 = vpop.f32.mrf.mxu0
        %v1961 = vadd.f32 0.0, %v1960
        %1962 = vmatmul.bf16.gmra.mxu0 %v670
        %v1963 = vpop.f32.mrf.mxu0
        %v1964 = vadd.f32 0.0, %v1963
        %v1965 = vpop.f32.mrf.mxu0
        %v1966 = vadd.f32 0.0, %v1965
        %1967 = vmatmul.bf16.gmra.mxu0 %v671
        %v1968 = vpop.f32.mrf.mxu0
        %v1969 = vadd.f32 0.0, %v1968
        %v1970 = vpop.f32.mrf.mxu0
        %v1971 = vadd.f32 0.0, %v1970
        %1972 = vmatmul.bf16.gmra.mxu0 %v672
        %v1973 = vpop.f32.mrf.mxu0
        %v1974 = vadd.f32 0.0, %v1973
        %v1975 = vpop.f32.mrf.mxu0
        %v1976 = vadd.f32 0.0, %v1975
        %1977 = vmatmul.bf16.gmra.mxu0 %v673
        %v1978 = vpop.f32.mrf.mxu0
        %v1979 = vadd.f32 0.0, %v1978
        %v1980 = vpop.f32.mrf.mxu0
        %v1981 = vadd.f32 0.0, %v1980
        %1982 = vmatmul.bf16.gmra.mxu0 %v674
        %v1983 = vpop.f32.mrf.mxu0
        %v1984 = vadd.f32 0.0, %v1983
        %v1985 = vpop.f32.mrf.mxu0
        %v1986 = vadd.f32 0.0, %v1985
        %1987 = vmatmul.bf16.gmra.mxu0 %v675
        %v1988 = vpop.f32.mrf.mxu0
        %v1989 = vadd.f32 0.0, %v1988
        %v1990 = vpop.f32.mrf.mxu0
        %v1991 = vadd.f32 0.0, %v1990
        %1992 = vmatmul.bf16.gmra.mxu0 %v676
        %v1993 = vpop.f32.mrf.mxu0
        %v1994 = vadd.f32 0.0, %v1993
        %v1995 = vpop.f32.mrf.mxu0
        %v1996 = vadd.f32 0.0, %v1995
        %1997 = vmatmul.bf16.gmra.mxu0 %v1421
        %v1998 = vpop.f32.mrf.mxu0
        %v1999 = vadd.f32 0.0, %v1998
        %v2000 = vpop.f32.mrf.mxu0
        %v2001 = vadd.f32 0.0, %v2000
        %2002 = vmatmul.bf16.gmra.mxu0 %v1899
        %v2003 = vpop.f32.mrf.mxu0
        %v2004 = vadd.f32 0.0, %v2003
        %v2005 = vpop.f32.mrf.mxu0
        %v2006 = vadd.f32 0.0, %v2005
        %2007 = vdwg.mxu0
        %v2008 = vadd.f32 %v1836, %v1959
        %v2009 = vadd.f32 %v1837, %v1961
        %v2010 = vadd.f32 %v1838, %v1964
        %v2011 = vadd.f32 %v1839, %v1966
        %v2012 = vadd.f32 %v1840, %v1969
        %v2013 = vadd.f32 %v1841, %v1971
        %v2014 = vadd.f32 %v1842, %v1974
        %v2015 = vadd.f32 %v1843, %v1976
        %v2016 = vadd.f32 %v1844, %v1979
        %v2017 = vadd.f32 %v1845, %v1981
        %v2018 = vadd.f32 %v1846, %v1984
        %v2019 = vadd.f32 %v1847, %v1986
        %v2020 = vadd.f32 %v1848, %v1989
        %v2021 = vadd.f32 %v1849, %v1991
        %v2022 = vadd.f32 %v1850, %v1994
        %v2023 = vadd.f32 %v1851, %v1996
        %v2024 = vadd.f32 %v1852, %v1999
        %v2025 = vadd.f32 %v1853, %v2001
        %v2026 = vadd.f32 %v1854, %v2004
        %v2027 = vadd.f32 %v1855, %v2006
        %v2029 = vrot.slane %v368, 5
        %v2030 = vrot.slane %v2029, 4
        %v2031 = vrot.slane %v369, 5
        %v2032 = vsel %vm973, %v2030, %v2031
        %v2033 = vrot.slane %v2031, 4
        %v2034 = vrot.slane %v370, 5
        %v2035 = vsel %vm973, %v2033, %v2034
        %s2036 = scalar_lea.vmem %s2, 512
        %v2037 = vld [vmem:[%s2036] sm:$0xf]
        %v2038 = vld [vmem:[%s2036 + $0x4] sm:$0xf]
        %v2039 = vld [vmem:[%s2036 + $0x8] sm:$0xf]
        %v2040 = vld [vmem:[%s2036 + $0xc] sm:$0xf]
        %v2041 = vld [vmem:[%s2036 + $0x10] sm:$0xf]
        %v2042 = vld [vmem:[%s2036 + $0x14] sm:$0xf]
        %v2043 = vld [vmem:[%s2036 + $0x18] sm:$0xf]
        %v2044 = vld [vmem:[%s2036 + $0x1c] sm:$0xf]
        %v2045 = vld [vmem:[%s2036 + $0x20] sm:$0xf]
        %v2046 = vld [vmem:[%s2036 + $0x24] sm:$0xf]
        %v2047 = vld [vmem:[%s2036 + $0x28] sm:$0xf]
        %v2048 = vld [vmem:[%s2036 + $0x2c] sm:$0xf]
        %v2049 = vld [vmem:[%s2036 + $0x30] sm:$0xf]
        %v2050 = vld [vmem:[%s2036 + $0x34] sm:$0xf]
        %v2051 = vld [vmem:[%s2036 + $0x38] sm:$0xf]
        %v2052 = vld [vmem:[%s2036 + $0x3c] sm:$0xf]
        %v2053 = vunpack.c.l.b16 %v2032
        %v2054 = vunpack.c.l.b16 %v2035
        %v2055 = vpack.c.b16 %v2054, %v2053
        %v2073 = vunpack.c.l.b16 %v2037
        %v2074 = vunpack.c.l.b16 %v2038
        %v2075 = vunpack.c.l.b16 %v2039
        %v2076 = vunpack.c.l.b16 %v2040
        %v2077 = vunpack.c.l.b16 %v2041
        %v2078 = vunpack.c.l.b16 %v2042
        %v2079 = vunpack.c.l.b16 %v2043
        %v2080 = vunpack.c.l.b16 %v2044
        %v2081 = vunpack.c.l.b16 %v2045
        %v2082 = vunpack.c.l.b16 %v2046
        %v2083 = vunpack.c.l.b16 %v2047
        %v2084 = vunpack.c.l.b16 %v2048
        %v2085 = vunpack.c.l.b16 %v2049
        %v2086 = vunpack.c.l.b16 %v2050
        %v2087 = vunpack.c.l.b16 %v2051
        %v2088 = vunpack.c.l.b16 %v2052
        %v2089 = vpack.c.b16 %v2074, %v2073
        %v2090 = vpack.c.b16 %v2076, %v2075
        %v2091 = vpack.c.b16 %v2078, %v2077
        %v2092 = vpack.c.b16 %v2080, %v2079
        %v2093 = vpack.c.b16 %v2082, %v2081
        %v2094 = vpack.c.b16 %v2084, %v2083
        %v2095 = vpack.c.b16 %v2086, %v2085
        %v2096 = vpack.c.b16 %v2088, %v2087
        %2105 = vmatpush.bf16.msra.mxu0 %v2096
        %2106 = vmatpush.bf16.msra.mxu0 %v2095
        %2107 = vmatpush.bf16.msra.mxu0 %v2094
        %2108 = vmatpush.bf16.msra.mxu0 %v2093
        %2109 = vmatpush.bf16.msra.mxu0 %v2092
        %2110 = vmatpush.bf16.msra.mxu0 %v2091
        %2111 = vmatpush.bf16.msra.mxu0 %v2090
        %2112 = vmatpush.bf16.msra.mxu0 %v2089
        %2113 = vmatmul.bf16.gmra.mxu0 %v1083
        %v2114 = vpop.f32.mrf.mxu0
        %v2115 = vadd.f32 0.0, %v2114
        %v2116 = vpop.f32.mrf.mxu0
        %v2117 = vadd.f32 0.0, %v2116
        %2118 = vmatmul.bf16.gmra.mxu0 %v1084
        %v2119 = vpop.f32.mrf.mxu0
        %v2120 = vadd.f32 0.0, %v2119
        %v2121 = vpop.f32.mrf.mxu0
        %v2122 = vadd.f32 0.0, %v2121
        %2123 = vmatmul.bf16.gmra.mxu0 %v1085
        %v2124 = vpop.f32.mrf.mxu0
        %v2125 = vadd.f32 0.0, %v2124
        %v2126 = vpop.f32.mrf.mxu0
        %v2127 = vadd.f32 0.0, %v2126
        %2128 = vmatmul.bf16.gmra.mxu0 %v1086
        %v2129 = vpop.f32.mrf.mxu0
        %v2130 = vadd.f32 0.0, %v2129
        %v2131 = vpop.f32.mrf.mxu0
        %v2132 = vadd.f32 0.0, %v2131
        %2133 = vmatmul.bf16.gmra.mxu0 %v1087
        %v2134 = vpop.f32.mrf.mxu0
        %v2135 = vadd.f32 0.0, %v2134
        %v2136 = vpop.f32.mrf.mxu0
        %v2137 = vadd.f32 0.0, %v2136
        %2138 = vmatmul.bf16.gmra.mxu0 %v1088
        %v2139 = vpop.f32.mrf.mxu0
        %v2140 = vadd.f32 0.0, %v2139
        %v2141 = vpop.f32.mrf.mxu0
        %v2142 = vadd.f32 0.0, %v2141
        %2143 = vmatmul.bf16.gmra.mxu0 %v1089
        %v2144 = vpop.f32.mrf.mxu0
        %v2145 = vadd.f32 0.0, %v2144
        %v2146 = vpop.f32.mrf.mxu0
        %v2147 = vadd.f32 0.0, %v2146
        %2148 = vmatmul.bf16.gmra.mxu0 %v1090
        %v2149 = vpop.f32.mrf.mxu0
        %v2150 = vadd.f32 0.0, %v2149
        %v2151 = vpop.f32.mrf.mxu0
        %v2152 = vadd.f32 0.0, %v2151
        %2153 = vmatmul.bf16.gmra.mxu0 %v1577
        %v2154 = vpop.f32.mrf.mxu0
        %v2155 = vadd.f32 0.0, %v2154
        %v2156 = vpop.f32.mrf.mxu0
        %v2157 = vadd.f32 0.0, %v2156
        %2158 = vmatmul.bf16.gmra.mxu0 %v2055
        %v2159 = vpop.f32.mrf.mxu0
        %v2160 = vadd.f32 0.0, %v2159
        %v2161 = vpop.f32.mrf.mxu0
        %v2162 = vadd.f32 0.0, %v2161
        %2163 = vdwg.mxu0
        %v2164 = vadd.f32 %v2008, %v2115
        %v2165 = vadd.f32 %v2009, %v2117
        %v2166 = vadd.f32 %v2010, %v2120
        %v2167 = vadd.f32 %v2011, %v2122
        %v2168 = vadd.f32 %v2012, %v2125
        %v2169 = vadd.f32 %v2013, %v2127
        %v2170 = vadd.f32 %v2014, %v2130
        %v2171 = vadd.f32 %v2015, %v2132
        %v2172 = vadd.f32 %v2016, %v2135
        %v2173 = vadd.f32 %v2017, %v2137
        %v2174 = vadd.f32 %v2018, %v2140
        %v2175 = vadd.f32 %v2019, %v2142
        %v2176 = vadd.f32 %v2020, %v2145
        %v2177 = vadd.f32 %v2021, %v2147
        %v2178 = vadd.f32 %v2022, %v2150
        %v2179 = vadd.f32 %v2023, %v2152
        %v2180 = vadd.f32 %v2024, %v2155
        %v2181 = vadd.f32 %v2025, %v2157
        %v2182 = vadd.f32 %v2026, %v2160
        %v2183 = vadd.f32 %v2027, %v2162
        %v2184 = vld [vmem:[%s3] sm:$0x1]
        %v2186 = vperm.slane %v2184, 0
        %v2188 = vadd.f32 %v2164, %v2186
        %v2189 = vadd.f32 %v2165, %v2186
        %v2190 = vadd.f32 %v2166, %v2186
        %v2191 = vadd.f32 %v2167, %v2186
        %v2192 = vadd.f32 %v2168, %v2186
        %v2193 = vadd.f32 %v2169, %v2186
        %v2194 = vadd.f32 %v2170, %v2186
        %v2195 = vadd.f32 %v2171, %v2186
        %v2196 = vadd.f32 %v2172, %v2186
        %v2197 = vadd.f32 %v2173, %v2186
        %v2198 = vadd.f32 %v2174, %v2186
        %v2199 = vadd.f32 %v2175, %v2186
        %v2200 = vadd.f32 %v2176, %v2186
        %v2201 = vadd.f32 %v2177, %v2186
        %v2202 = vadd.f32 %v2178, %v2186
        %v2203 = vadd.f32 %v2179, %v2186
        %v2204 = vadd.f32 %v2180, %v2186
        %v2205 = vadd.f32 %v2181, %v2186
        %v2206 = vadd.f32 %v2182, %v2186
        %v2207 = vadd.f32 %v2183, %v2186
        %v2208 = vmax.f32 %v2188, 0.0
        %v2209 = vmax.f32 %v2189, 0.0
        %v2210 = vmax.f32 %v2190, 0.0
        %v2211 = vmax.f32 %v2191, 0.0
        %v2212 = vmax.f32 %v2192, 0.0
        %v2213 = vmax.f32 %v2193, 0.0
        %v2214 = vmax.f32 %v2194, 0.0
        %v2215 = vmax.f32 %v2195, 0.0
        %v2216 = vmax.f32 %v2196, 0.0
        %v2217 = vmax.f32 %v2197, 0.0
        %v2218 = vmax.f32 %v2198, 0.0
        %v2219 = vmax.f32 %v2199, 0.0
        %v2220 = vmax.f32 %v2200, 0.0
        %v2221 = vmax.f32 %v2201, 0.0
        %v2222 = vmax.f32 %v2202, 0.0
        %v2223 = vmax.f32 %v2203, 0.0
        %v2224 = vmax.f32 %v2204, 0.0
        %v2225 = vmax.f32 %v2205, 0.0
        %v2226 = vmax.f32 %v2206, 0.0
        %v2227 = vmax.f32 %v2207, 0.0
        %v2228 = vpack.c.bf16 %v2208, %v2208
        %v2229 = vpack.c.bf16 %v2209, %v2209
        %v2230 = vpack.c.bf16 %v2210, %v2210
        %v2231 = vpack.c.bf16 %v2211, %v2211
        %v2232 = vpack.c.bf16 %v2212, %v2212
        %v2233 = vpack.c.bf16 %v2213, %v2213
        %v2234 = vpack.c.bf16 %v2214, %v2214
        %v2235 = vpack.c.bf16 %v2215, %v2215
        %v2236 = vpack.c.bf16 %v2216, %v2216
        %v2237 = vpack.c.bf16 %v2217, %v2217
        %v2238 = vpack.c.bf16 %v2218, %v2218
        %v2239 = vpack.c.bf16 %v2219, %v2219
        %v2240 = vpack.c.bf16 %v2220, %v2220
        %v2241 = vpack.c.bf16 %v2221, %v2221
        %v2242 = vpack.c.bf16 %v2222, %v2222
        %v2243 = vpack.c.bf16 %v2223, %v2223
        %v2244 = vpack.c.bf16 %v2224, %v2224
        %v2245 = vpack.c.bf16 %v2225, %v2225
        %v2246 = vpack.c.bf16 %v2226, %v2226
        %v2247 = vpack.c.bf16 %v2227, %v2227
        %p2248 = scmp.gt.s32.totalorder %s29, 0
        %s2249 = scalar_select %p2248, 1.0, 0.0
        %p2251 = scmp.ne.f32.partialorder %s2249, %s2249
        %s2252 = sshrl.u32 %s2249, 16
        %s2253 = sand.u32 %s2252, 1
        %s2254 = sadd.s32 32767, %s2253
        %s2255 = sadd.s32 %s2249, %s2254
        %s2256 = sand.u32 %s2255, 4294901760
        %s2257 = scalar_select %p2251, 2143289344, %s2256
        %s2259 = sshrl.u32 %s2257, 16
        %p2260 = scmp.lt.s32.totalorder %s29, 1
        %s2261 = scalar_select %p2260, 1.0, 0.0
        %p2263 = scmp.ne.f32.partialorder %s2261, %s2261
        %s2264 = sshrl.u32 %s2261, 16
        %s2265 = sand.u32 %s2264, 1
        %s2266 = sadd.s32 32767, %s2265
        %s2267 = sadd.s32 %s2261, %s2266
        %s2268 = sand.u32 %s2267, 4294901760
        %s2269 = scalar_select %p2263, 2143289344, %s2268
        %s2271 = sshrl.u32 %s2269, 16
        %s2272 = sshll.u32 %s2259, 16
        %s2273 = sor.u32 %s2259, %s2272
        %v2274 = vstv %s2273
        %v2276 = vunpack.c.l.bf16 %v2228
        %v2277 = vunpack.c.l.bf16 %v2229
        %v2278 = vunpack.c.l.bf16 %v2274
        %v2279 = vmul.f32 %v2276, %v2278
        %v2280 = vmul.f32 %v2277, %v2278
        %v2281 = vpack.c.bf16 %v2279, %v2279
        %v2282 = vpack.c.bf16 %v2280, %v2280
        %s2283 = sshll.u32 %s2271, 16
        %s2284 = sor.u32 %s2271, %s2283
        %v2285 = vstv %s2284
        %v2287 = vunpack.c.l.bf16 %v2246
        %v2288 = vunpack.c.l.bf16 %v2247
        %v2289 = vunpack.c.l.bf16 %v2285
        %v2290 = vmul.f32 %v2287, %v2289
        %v2291 = vmul.f32 %v2288, %v2289
        %v2292 = vpack.c.bf16 %v2290, %v2290
        %v2293 = vpack.c.bf16 %v2291, %v2291
        %v2314 = vunpack.c.l.b16 %v2281
        %v2315 = vunpack.c.l.b16 %v2282
        %v2316 = vunpack.c.l.b16 %v2230
        %v2317 = vunpack.c.l.b16 %v2231
        %v2318 = vunpack.c.l.b16 %v2232
        %v2319 = vunpack.c.l.b16 %v2233
        %v2320 = vunpack.c.l.b16 %v2234
        %v2321 = vunpack.c.l.b16 %v2235
        %v2322 = vunpack.c.l.b16 %v2236
        %v2323 = vunpack.c.l.b16 %v2237
        %v2324 = vunpack.c.l.b16 %v2238
        %v2325 = vunpack.c.l.b16 %v2239
        %v2326 = vunpack.c.l.b16 %v2240
        %v2327 = vunpack.c.l.b16 %v2241
        %v2328 = vunpack.c.l.b16 %v2242
        %v2329 = vunpack.c.l.b16 %v2243
        %v2330 = vunpack.c.l.b16 %v2244
        %v2331 = vunpack.c.l.b16 %v2245
        %v2332 = vunpack.c.l.b16 %v2292
        %v2333 = vunpack.c.l.b16 %v2293
        %v2334 = vpack.c.b16 %v2315, %v2314
        %v2335 = vpack.c.b16 %v2317, %v2316
        %v2336 = vpack.c.b16 %v2319, %v2318
        %v2337 = vpack.c.b16 %v2321, %v2320
        %v2338 = vpack.c.b16 %v2323, %v2322
        %v2339 = vpack.c.b16 %v2325, %v2324
        %v2340 = vpack.c.b16 %v2327, %v2326
        %v2341 = vpack.c.b16 %v2329, %v2328
        %v2342 = vpack.c.b16 %v2331, %v2330
        %v2343 = vpack.c.b16 %v2333, %v2332
        %v2345 = vshrl.u32 %v2334, 16
        %v2347 = vrot.slane %v2345, 7
        %v2348 = vshll.u32 %v2334, 16
        %v2350 = vor.u32 %v2347, %v2348
        %v2352 = vshrl.u32 %v2335, 16
        %v2354 = vrot.slane %v2352, 7
        %v2355 = vshll.u32 %v2335, 16
        %v2357 = vor.u32 %v2354, %v2355
        %v2359 = vshrl.u32 %v2336, 16
        %v2361 = vrot.slane %v2359, 7
        %v2362 = vshll.u32 %v2336, 16
        %v2364 = vor.u32 %v2361, %v2362
        %v2366 = vshrl.u32 %v2337, 16
        %v2368 = vrot.slane %v2366, 7
        %v2369 = vshll.u32 %v2337, 16
        %v2371 = vor.u32 %v2368, %v2369
        %v2373 = vshrl.u32 %v2338, 16
        %v2375 = vrot.slane %v2373, 7
        %v2376 = vshll.u32 %v2338, 16
        %v2378 = vor.u32 %v2375, %v2376
        %v2380 = vshrl.u32 %v2339, 16
        %v2382 = vrot.slane %v2380, 7
        %v2383 = vshll.u32 %v2339, 16
        %v2385 = vor.u32 %v2382, %v2383
        %v2387 = vshrl.u32 %v2340, 16
        %v2389 = vrot.slane %v2387, 7
        %v2390 = vshll.u32 %v2340, 16
        %v2392 = vor.u32 %v2389, %v2390
        %v2394 = vshrl.u32 %v2341, 16
        %v2396 = vrot.slane %v2394, 7
        %v2397 = vshll.u32 %v2341, 16
        %v2399 = vor.u32 %v2396, %v2397
        %v2401 = vshrl.u32 %v2342, 16
        %v2403 = vrot.slane %v2401, 7
        %v2404 = vshll.u32 %v2342, 16
        %v2406 = vor.u32 %v2403, %v2404
        %v2408 = vshrl.u32 %v2343, 16
        %v2410 = vrot.slane %v2408, 7
        %v2411 = vshll.u32 %v2343, 16
        %v2413 = vor.u32 %v2410, %v2411
        %vm2434 = vcmask 1040384
        %vm2435 = vsmask.f32 256
        %vm2436 = vmand %vm2434, %vm2435
        %v2437 = vsel %vm2436, 0, %v2350
        %v2438 = vsel %vm2436, 0, %v2357
        %v2439 = vsel %vm2436, 0, %v2364
        %v2440 = vsel %vm2436, 0, %v2371
        %v2441 = vsel %vm2436, 0, %v2378
        %v2442 = vsel %vm2436, 0, %v2385
        %v2443 = vsel %vm2436, 0, %v2392
        %v2444 = vsel %vm2436, 0, %v2399
        %v2445 = vsel %vm2436, 0, %v2406
        %v2446 = vsel %vm2436, 0, %v2413
        %v2447 = vsel %vm2436, %v2347, 0
        %v2448 = vsel %vm2436, %v2354, 0
        %v2449 = vsel %vm2436, %v2361, 0
        %v2450 = vsel %vm2436, %v2368, 0
        %v2451 = vsel %vm2436, %v2375, 0
        %v2452 = vsel %vm2436, %v2382, 0
        %v2453 = vsel %vm2436, %v2389, 0
        %v2454 = vsel %vm2436, %v2396, 0
        %v2455 = vsel %vm2436, %v2403, 0
        %v2456 = vsel %vm2436, %v2410, 0
        %v2457 = vld [vmem:[#allocation5] sm:$0xf]
        %v2458 = vld [vmem:[#allocation5 + $0x4] sm:$0xf]
        %v2459 = vld [vmem:[#allocation5 + $0x8] sm:$0xf]
        %v2460 = vld [vmem:[#allocation5 + $0xc] sm:$0xf]
        %v2461 = vld [vmem:[#allocation5 + $0x10] sm:$0xf]
        %v2462 = vld [vmem:[#allocation5 + $0x14] sm:$0xf]
        %v2463 = vld [vmem:[#allocation5 + $0x18] sm:$0xf]
        %v2464 = vld [vmem:[#allocation5 + $0x1c] sm:$0xf]
        %v2465 = vld [vmem:[#allocation5 + $0x20] sm:$0xf]
        %v2466 = vld [vmem:[#allocation5 + $0x24] sm:$0xf]
        %v2467 = vld [vmem:[#allocation5 + $0x28] sm:$0xf]
        %v2468 = vld [vmem:[#allocation5 + $0x2c] sm:$0xf]
        %v2469 = vld [vmem:[#allocation5 + $0x30] sm:$0xf]
        %v2470 = vld [vmem:[#allocation5 + $0x34] sm:$0xf]
        %v2471 = vld [vmem:[#allocation5 + $0x38] sm:$0xf]
        %v2472 = vld [vmem:[#allocation5 + $0x3c] sm:$0xf]
        %vm2473 = vsmask.f32 7424
        %v2475 = vshrl.u32 %v2437, 16
        %v2477 = vshll.u32 %v2437, 16
        %v2479 = vrot.slane %v2477, 1
        %v2480 = vor.u32 %v2475, %v2479
        %v2482 = vshll.u32 %v2447, 16
        %v2484 = vrot.slane %v2482, 1
        %v2485 = vsel %vm2473, %v2480, %v2484
        %v2487 = vshrl.u32 %v2438, 16
        %v2489 = vshll.u32 %v2438, 16
        %v2491 = vrot.slane %v2489, 1
        %v2492 = vor.u32 %v2487, %v2491
        %v2494 = vshll.u32 %v2448, 16
        %v2496 = vrot.slane %v2494, 1
        %v2497 = vsel %vm2473, %v2492, %v2496
        %v2499 = vshrl.u32 %v2439, 16
        %v2501 = vshll.u32 %v2439, 16
        %v2503 = vrot.slane %v2501, 1
        %v2504 = vor.u32 %v2499, %v2503
        %v2506 = vshll.u32 %v2449, 16
        %v2508 = vrot.slane %v2506, 1
        %v2509 = vsel %vm2473, %v2504, %v2508
        %v2511 = vshrl.u32 %v2440, 16
        %v2513 = vshll.u32 %v2440, 16
        %v2515 = vrot.slane %v2513, 1
        %v2516 = vor.u32 %v2511, %v2515
        %v2518 = vshll.u32 %v2450, 16
        %v2520 = vrot.slane %v2518, 1
        %v2521 = vsel %vm2473, %v2516, %v2520
        %v2523 = vshrl.u32 %v2441, 16
        %v2525 = vshll.u32 %v2441, 16
        %v2527 = vrot.slane %v2525, 1
        %v2528 = vor.u32 %v2523, %v2527
        %v2530 = vshll.u32 %v2451, 16
        %v2532 = vrot.slane %v2530, 1
        %v2533 = vsel %vm2473, %v2528, %v2532
        %v2535 = vshrl.u32 %v2442, 16
        %v2537 = vshll.u32 %v2442, 16
        %v2539 = vrot.slane %v2537, 1
        %v2540 = vor.u32 %v2535, %v2539
        %v2542 = vshll.u32 %v2452, 16
        %v2544 = vrot.slane %v2542, 1
        %v2545 = vsel %vm2473, %v2540, %v2544
        %v2547 = vshrl.u32 %v2443, 16
        %v2549 = vshll.u32 %v2443, 16
        %v2551 = vrot.slane %v2549, 1
        %v2552 = vor.u32 %v2547, %v2551
        %v2554 = vshll.u32 %v2453, 16
        %v2556 = vrot.slane %v2554, 1
        %v2557 = vsel %vm2473, %v2552, %v2556
        %v2559 = vshrl.u32 %v2444, 16
        %v2561 = vshll.u32 %v2444, 16
        %v2563 = vrot.slane %v2561, 1
        %v2564 = vor.u32 %v2559, %v2563
        %v2566 = vshll.u32 %v2454, 16
        %v2568 = vrot.slane %v2566, 1
        %v2569 = vsel %vm2473, %v2564, %v2568
        %s2578 = scalar_lea.vmem [#allocation5], 64
        %v2579 = vld [vmem:[%s2578] sm:$0xf]
        %v2580 = vld [vmem:[%s2578 + $0x4] sm:$0xf]
        %v2581 = vld [vmem:[%s2578 + $0x8] sm:$0xf]
        %v2582 = vld [vmem:[%s2578 + $0xc] sm:$0xf]
        %v2583 = vld [vmem:[%s2578 + $0x10] sm:$0xf]
        %v2584 = vld [vmem:[%s2578 + $0x14] sm:$0xf]
        %v2585 = vld [vmem:[%s2578 + $0x18] sm:$0xf]
        %v2586 = vld [vmem:[%s2578 + $0x1c] sm:$0xf]
        %v2587 = vld [vmem:[%s2578 + $0x20] sm:$0xf]
        %v2588 = vld [vmem:[%s2578 + $0x24] sm:$0xf]
        %v2589 = vld [vmem:[%s2578 + $0x28] sm:$0xf]
        %v2590 = vld [vmem:[%s2578 + $0x2c] sm:$0xf]
        %v2591 = vld [vmem:[%s2578 + $0x30] sm:$0xf]
        %v2592 = vld [vmem:[%s2578 + $0x34] sm:$0xf]
        %v2593 = vld [vmem:[%s2578 + $0x38] sm:$0xf]
        %v2594 = vld [vmem:[%s2578 + $0x3c] sm:$0xf]
        %v2611 = vunpack.c.l.b16 %v2579
        %v2612 = vunpack.c.l.b16 %v2580
        %v2613 = vunpack.c.l.b16 %v2581
        %v2614 = vunpack.c.l.b16 %v2582
        %v2615 = vunpack.c.l.b16 %v2583
        %v2616 = vunpack.c.l.b16 %v2584
        %v2617 = vunpack.c.l.b16 %v2585
        %v2618 = vunpack.c.l.b16 %v2586
        %v2619 = vunpack.c.l.b16 %v2587
        %v2620 = vunpack.c.l.b16 %v2588
        %v2621 = vunpack.c.l.b16 %v2589
        %v2622 = vunpack.c.l.b16 %v2590
        %v2623 = vunpack.c.l.b16 %v2591
        %v2624 = vunpack.c.l.b16 %v2592
        %v2625 = vunpack.c.l.b16 %v2593
        %v2626 = vunpack.c.l.b16 %v2594
        %v2627 = vpack.c.b16 %v2612, %v2611
        %v2628 = vpack.c.b16 %v2614, %v2613
        %v2629 = vpack.c.b16 %v2616, %v2615
        %v2630 = vpack.c.b16 %v2618, %v2617
        %v2631 = vpack.c.b16 %v2620, %v2619
        %v2632 = vpack.c.b16 %v2622, %v2621
        %v2633 = vpack.c.b16 %v2624, %v2623
        %v2634 = vpack.c.b16 %v2626, %v2625
        %2643 = vmatpush.bf16.msra.mxu0 %v2634
        %2644 = vmatpush.bf16.msra.mxu0 %v2633
        %2645 = vmatpush.bf16.msra.mxu0 %v2632
        %2646 = vmatpush.bf16.msra.mxu0 %v2631
        %2647 = vmatpush.bf16.msra.mxu0 %v2630
        %2648 = vmatpush.bf16.msra.mxu0 %v2629
        %2649 = vmatpush.bf16.msra.mxu0 %v2628
        %2650 = vmatpush.bf16.msra.mxu0 %v2627
        %2651 = vmatmul.bf16.gmra.mxu0 %v2485
        %v2652 = vpop.f32.mrf.mxu0
        %v2653 = vadd.f32 0.0, %v2652
        %v2654 = vpop.f32.mrf.mxu0
        %v2655 = vadd.f32 0.0, %v2654
        %2656 = vmatmul.bf16.gmra.mxu0 %v2497
        %v2657 = vpop.f32.mrf.mxu0
        %v2658 = vadd.f32 0.0, %v2657
        %v2659 = vpop.f32.mrf.mxu0
        %v2660 = vadd.f32 0.0, %v2659
        %2661 = vmatmul.bf16.gmra.mxu0 %v2509
        %v2662 = vpop.f32.mrf.mxu0
        %v2663 = vadd.f32 0.0, %v2662
        %v2664 = vpop.f32.mrf.mxu0
        %v2665 = vadd.f32 0.0, %v2664
        %2666 = vmatmul.bf16.gmra.mxu0 %v2521
        %v2667 = vpop.f32.mrf.mxu0
        %v2668 = vadd.f32 0.0, %v2667
        %v2669 = vpop.f32.mrf.mxu0
        %v2670 = vadd.f32 0.0, %v2669
        %2671 = vmatmul.bf16.gmra.mxu0 %v2533
        %v2672 = vpop.f32.mrf.mxu0
        %v2673 = vadd.f32 0.0, %v2672
        %v2674 = vpop.f32.mrf.mxu0
        %v2675 = vadd.f32 0.0, %v2674
        %2676 = vmatmul.bf16.gmra.mxu0 %v2545
        %v2677 = vpop.f32.mrf.mxu0
        %v2678 = vadd.f32 0.0, %v2677
        %v2679 = vpop.f32.mrf.mxu0
        %v2680 = vadd.f32 0.0, %v2679
        %2681 = vmatmul.bf16.gmra.mxu0 %v2557
        %v2682 = vpop.f32.mrf.mxu0
        %v2683 = vadd.f32 0.0, %v2682
        %v2684 = vpop.f32.mrf.mxu0
        %v2685 = vadd.f32 0.0, %v2684
        %2686 = vmatmul.bf16.gmra.mxu0 %v2569
        %v2687 = vpop.f32.mrf.mxu0
        %v2688 = vadd.f32 0.0, %v2687
        %v2689 = vpop.f32.mrf.mxu0
        %v2690 = vadd.f32 0.0, %v2689
        %2691 = vdwg.mxu0
        %v2708 = vunpack.c.l.b16 %v2457
        %v2709 = vunpack.c.l.b16 %v2458
        %v2710 = vunpack.c.l.b16 %v2459
        %v2711 = vunpack.c.l.b16 %v2460
        %v2712 = vunpack.c.l.b16 %v2461
        %v2713 = vunpack.c.l.b16 %v2462
        %v2714 = vunpack.c.l.b16 %v2463
        %v2715 = vunpack.c.l.b16 %v2464
        %v2716 = vunpack.c.l.b16 %v2465
        %v2717 = vunpack.c.l.b16 %v2466
        %v2718 = vunpack.c.l.b16 %v2467
        %v2719 = vunpack.c.l.b16 %v2468
        %v2720 = vunpack.c.l.b16 %v2469
        %v2721 = vunpack.c.l.b16 %v2470
        %v2722 = vunpack.c.l.b16 %v2471
        %v2723 = vunpack.c.l.b16 %v2472
        %v2724 = vpack.c.b16 %v2709, %v2708
        %v2725 = vpack.c.b16 %v2711, %v2710
        %v2726 = vpack.c.b16 %v2713, %v2712
        %v2727 = vpack.c.b16 %v2715, %v2714
        %v2728 = vpack.c.b16 %v2717, %v2716
        %v2729 = vpack.c.b16 %v2719, %v2718
        %v2730 = vpack.c.b16 %v2721, %v2720
        %v2731 = vpack.c.b16 %v2723, %v2722
        %2740 = vmatpush.bf16.msra.mxu0 %v2731
        %2741 = vmatpush.bf16.msra.mxu0 %v2730
        %2742 = vmatpush.bf16.msra.mxu0 %v2729
        %2743 = vmatpush.bf16.msra.mxu0 %v2728
        %2744 = vmatpush.bf16.msra.mxu0 %v2727
        %2745 = vmatpush.bf16.msra.mxu0 %v2726
        %2746 = vmatpush.bf16.msra.mxu0 %v2725
        %2747 = vmatpush.bf16.msra.mxu0 %v2724
        %2748 = vmatmul.bf16.gmra.mxu0 %v2437
        %v2749 = vpop.f32.mrf.mxu0
        %v2750 = vadd.f32 %v2653, %v2749
        %v2751 = vpop.f32.mrf.mxu0
        %v2752 = vadd.f32 %v2655, %v2751
        %2753 = vmatmul.bf16.gmra.mxu0 %v2438
        %v2754 = vpop.f32.mrf.mxu0
        %v2755 = vadd.f32 %v2658, %v2754
        %v2756 = vpop.f32.mrf.mxu0
        %v2757 = vadd.f32 %v2660, %v2756
        %2758 = vmatmul.bf16.gmra.mxu0 %v2439
        %v2759 = vpop.f32.mrf.mxu0
        %v2760 = vadd.f32 %v2663, %v2759
        %v2761 = vpop.f32.mrf.mxu0
        %v2762 = vadd.f32 %v2665, %v2761
        %2763 = vmatmul.bf16.gmra.mxu0 %v2440
        %v2764 = vpop.f32.mrf.mxu0
        %v2765 = vadd.f32 %v2668, %v2764
        %v2766 = vpop.f32.mrf.mxu0
        %v2767 = vadd.f32 %v2670, %v2766
        %2768 = vmatmul.bf16.gmra.mxu0 %v2441
        %v2769 = vpop.f32.mrf.mxu0
        %v2770 = vadd.f32 %v2673, %v2769
        %v2771 = vpop.f32.mrf.mxu0
        %v2772 = vadd.f32 %v2675, %v2771
        %2773 = vmatmul.bf16.gmra.mxu0 %v2442
        %v2774 = vpop.f32.mrf.mxu0
        %v2775 = vadd.f32 %v2678, %v2774
        %v2776 = vpop.f32.mrf.mxu0
        %v2777 = vadd.f32 %v2680, %v2776
        %2778 = vmatmul.bf16.gmra.mxu0 %v2443
        %v2779 = vpop.f32.mrf.mxu0
        %v2780 = vadd.f32 %v2683, %v2779
        %v2781 = vpop.f32.mrf.mxu0
        %v2782 = vadd.f32 %v2685, %v2781
        %2783 = vmatmul.bf16.gmra.mxu0 %v2444
        %v2784 = vpop.f32.mrf.mxu0
        %v2785 = vadd.f32 %v2688, %v2784
        %v2786 = vpop.f32.mrf.mxu0
        %v2787 = vadd.f32 %v2690, %v2786
        %2788 = vdwg.mxu0
        %vm2805 = vcmask 1046528
        %v2806 = vrot.slane %v2437, 1
        %v2807 = vrot.slane %v2447, 1
        %v2808 = vsel %vm2805, %v2806, %v2807
        %v2809 = vrot.slane %v2438, 1
        %v2810 = vrot.slane %v2448, 1
        %v2811 = vsel %vm2805, %v2809, %v2810
        %v2812 = vrot.slane %v2439, 1
        %v2813 = vrot.slane %v2449, 1
        %v2814 = vsel %vm2805, %v2812, %v2813
        %v2815 = vrot.slane %v2440, 1
        %v2816 = vrot.slane %v2450, 1
        %v2817 = vsel %vm2805, %v2815, %v2816
        %v2818 = vrot.slane %v2441, 1
        %v2819 = vrot.slane %v2451, 1
        %v2820 = vsel %vm2805, %v2818, %v2819
        %v2821 = vrot.slane %v2442, 1
        %v2822 = vrot.slane %v2452, 1
        %v2823 = vsel %vm2805, %v2821, %v2822
        %v2824 = vrot.slane %v2443, 1
        %v2825 = vrot.slane %v2453, 1
        %v2826 = vsel %vm2805, %v2824, %v2825
        %v2827 = vrot.slane %v2444, 1
        %v2828 = vrot.slane %v2454, 1
        %v2829 = vsel %vm2805, %v2827, %v2828
        %s2838 = scalar_lea.vmem [#allocation5], 128
        %v2839 = vld [vmem:[%s2838] sm:$0xf]
        %v2840 = vld [vmem:[%s2838 + $0x4] sm:$0xf]
        %v2841 = vld [vmem:[%s2838 + $0x8] sm:$0xf]
        %v2842 = vld [vmem:[%s2838 + $0xc] sm:$0xf]
        %v2843 = vld [vmem:[%s2838 + $0x10] sm:$0xf]
        %v2844 = vld [vmem:[%s2838 + $0x14] sm:$0xf]
        %v2845 = vld [vmem:[%s2838 + $0x18] sm:$0xf]
        %v2846 = vld [vmem:[%s2838 + $0x1c] sm:$0xf]
        %v2847 = vld [vmem:[%s2838 + $0x20] sm:$0xf]
        %v2848 = vld [vmem:[%s2838 + $0x24] sm:$0xf]
        %v2849 = vld [vmem:[%s2838 + $0x28] sm:$0xf]
        %v2850 = vld [vmem:[%s2838 + $0x2c] sm:$0xf]
        %v2851 = vld [vmem:[%s2838 + $0x30] sm:$0xf]
        %v2852 = vld [vmem:[%s2838 + $0x34] sm:$0xf]
        %v2853 = vld [vmem:[%s2838 + $0x38] sm:$0xf]
        %v2854 = vld [vmem:[%s2838 + $0x3c] sm:$0xf]
        %v2871 = vunpack.c.l.b16 %v2839
        %v2872 = vunpack.c.l.b16 %v2840
        %v2873 = vunpack.c.l.b16 %v2841
        %v2874 = vunpack.c.l.b16 %v2842
        %v2875 = vunpack.c.l.b16 %v2843
        %v2876 = vunpack.c.l.b16 %v2844
        %v2877 = vunpack.c.l.b16 %v2845
        %v2878 = vunpack.c.l.b16 %v2846
        %v2879 = vunpack.c.l.b16 %v2847
        %v2880 = vunpack.c.l.b16 %v2848
        %v2881 = vunpack.c.l.b16 %v2849
        %v2882 = vunpack.c.l.b16 %v2850
        %v2883 = vunpack.c.l.b16 %v2851
        %v2884 = vunpack.c.l.b16 %v2852
        %v2885 = vunpack.c.l.b16 %v2853
        %v2886 = vunpack.c.l.b16 %v2854
        %v2887 = vpack.c.b16 %v2872, %v2871
        %v2888 = vpack.c.b16 %v2874, %v2873
        %v2889 = vpack.c.b16 %v2876, %v2875
        %v2890 = vpack.c.b16 %v2878, %v2877
        %v2891 = vpack.c.b16 %v2880, %v2879
        %v2892 = vpack.c.b16 %v2882, %v2881
        %v2893 = vpack.c.b16 %v2884, %v2883
        %v2894 = vpack.c.b16 %v2886, %v2885
        %2903 = vmatpush.bf16.msra.mxu0 %v2894
        %2904 = vmatpush.bf16.msra.mxu0 %v2893
        %2905 = vmatpush.bf16.msra.mxu0 %v2892
        %2906 = vmatpush.bf16.msra.mxu0 %v2891
        %2907 = vmatpush.bf16.msra.mxu0 %v2890
        %2908 = vmatpush.bf16.msra.mxu0 %v2889
        %2909 = vmatpush.bf16.msra.mxu0 %v2888
        %2910 = vmatpush.bf16.msra.mxu0 %v2887
        %2911 = vmatmul.bf16.gmra.mxu0 %v2808
        %v2912 = vpop.f32.mrf.mxu0
        %v2913 = vadd.f32 0.0, %v2912
        %v2914 = vpop.f32.mrf.mxu0
        %v2915 = vadd.f32 0.0, %v2914
        %2916 = vmatmul.bf16.gmra.mxu0 %v2811
        %v2917 = vpop.f32.mrf.mxu0
        %v2918 = vadd.f32 0.0, %v2917
        %v2919 = vpop.f32.mrf.mxu0
        %v2920 = vadd.f32 0.0, %v2919
        %2921 = vmatmul.bf16.gmra.mxu0 %v2814
        %v2922 = vpop.f32.mrf.mxu0
        %v2923 = vadd.f32 0.0, %v2922
        %v2924 = vpop.f32.mrf.mxu0
        %v2925 = vadd.f32 0.0, %v2924
        %2926 = vmatmul.bf16.gmra.mxu0 %v2817
        %v2927 = vpop.f32.mrf.mxu0
        %v2928 = vadd.f32 0.0, %v2927
        %v2929 = vpop.f32.mrf.mxu0
        %v2930 = vadd.f32 0.0, %v2929
        %2931 = vmatmul.bf16.gmra.mxu0 %v2820
        %v2932 = vpop.f32.mrf.mxu0
        %v2933 = vadd.f32 0.0, %v2932
        %v2934 = vpop.f32.mrf.mxu0
        %v2935 = vadd.f32 0.0, %v2934
        %2936 = vmatmul.bf16.gmra.mxu0 %v2823
        %v2937 = vpop.f32.mrf.mxu0
        %v2938 = vadd.f32 0.0, %v2937
        %v2939 = vpop.f32.mrf.mxu0
        %v2940 = vadd.f32 0.0, %v2939
        %2941 = vmatmul.bf16.gmra.mxu0 %v2826
        %v2942 = vpop.f32.mrf.mxu0
        %v2943 = vadd.f32 0.0, %v2942
        %v2944 = vpop.f32.mrf.mxu0
        %v2945 = vadd.f32 0.0, %v2944
        %2946 = vmatmul.bf16.gmra.mxu0 %v2829
        %v2947 = vpop.f32.mrf.mxu0
        %v2948 = vadd.f32 0.0, %v2947
        %v2949 = vpop.f32.mrf.mxu0
        %v2950 = vadd.f32 0.0, %v2949
        %2951 = vdwg.mxu0
        %v2952 = vadd.f32 %v2750, %v2913
        %v2953 = vadd.f32 %v2752, %v2915
        %v2954 = vadd.f32 %v2755, %v2918
        %v2955 = vadd.f32 %v2757, %v2920
        %v2956 = vadd.f32 %v2760, %v2923
        %v2957 = vadd.f32 %v2762, %v2925
        %v2958 = vadd.f32 %v2765, %v2928
        %v2959 = vadd.f32 %v2767, %v2930
        %v2960 = vadd.f32 %v2770, %v2933
        %v2961 = vadd.f32 %v2772, %v2935
        %v2962 = vadd.f32 %v2775, %v2938
        %v2963 = vadd.f32 %v2777, %v2940
        %v2964 = vadd.f32 %v2780, %v2943
        %v2965 = vadd.f32 %v2782, %v2945
        %v2966 = vadd.f32 %v2785, %v2948
        %v2967 = vadd.f32 %v2787, %v2950
        %s2968 = scalar_lea.vmem [#allocation5], 192
        %v2969 = vld [vmem:[%s2968] sm:$0xf]
        %v2970 = vld [vmem:[%s2968 + $0x4] sm:$0xf]
        %v2971 = vld [vmem:[%s2968 + $0x8] sm:$0xf]
        %v2972 = vld [vmem:[%s2968 + $0xc] sm:$0xf]
        %v2973 = vld [vmem:[%s2968 + $0x10] sm:$0xf]
        %v2974 = vld [vmem:[%s2968 + $0x14] sm:$0xf]
        %v2975 = vld [vmem:[%s2968 + $0x18] sm:$0xf]
        %v2976 = vld [vmem:[%s2968 + $0x1c] sm:$0xf]
        %v2977 = vld [vmem:[%s2968 + $0x20] sm:$0xf]
        %v2978 = vld [vmem:[%s2968 + $0x24] sm:$0xf]
        %v2979 = vld [vmem:[%s2968 + $0x28] sm:$0xf]
        %v2980 = vld [vmem:[%s2968 + $0x2c] sm:$0xf]
        %v2981 = vld [vmem:[%s2968 + $0x30] sm:$0xf]
        %v2982 = vld [vmem:[%s2968 + $0x34] sm:$0xf]
        %v2983 = vld [vmem:[%s2968 + $0x38] sm:$0xf]
        %v2984 = vld [vmem:[%s2968 + $0x3c] sm:$0xf]
        %v3001 = vunpack.c.l.b16 %v2969
        %v3002 = vunpack.c.l.b16 %v2970
        %v3003 = vunpack.c.l.b16 %v2971
        %v3004 = vunpack.c.l.b16 %v2972
        %v3005 = vunpack.c.l.b16 %v2973
        %v3006 = vunpack.c.l.b16 %v2974
        %v3007 = vunpack.c.l.b16 %v2975
        %v3008 = vunpack.c.l.b16 %v2976
        %v3009 = vunpack.c.l.b16 %v2977
        %v3010 = vunpack.c.l.b16 %v2978
        %v3011 = vunpack.c.l.b16 %v2979
        %v3012 = vunpack.c.l.b16 %v2980
        %v3013 = vunpack.c.l.b16 %v2981
        %v3014 = vunpack.c.l.b16 %v2982
        %v3015 = vunpack.c.l.b16 %v2983
        %v3016 = vunpack.c.l.b16 %v2984
        %v3017 = vpack.c.b16 %v3002, %v3001
        %v3018 = vpack.c.b16 %v3004, %v3003
        %v3019 = vpack.c.b16 %v3006, %v3005
        %v3020 = vpack.c.b16 %v3008, %v3007
        %v3021 = vpack.c.b16 %v3010, %v3009
        %v3022 = vpack.c.b16 %v3012, %v3011
        %v3023 = vpack.c.b16 %v3014, %v3013
        %v3024 = vpack.c.b16 %v3016, %v3015
        %3033 = vmatpush.bf16.msra.mxu0 %v3024
        %3034 = vmatpush.bf16.msra.mxu0 %v3023
        %3035 = vmatpush.bf16.msra.mxu0 %v3022
        %3036 = vmatpush.bf16.msra.mxu0 %v3021
        %3037 = vmatpush.bf16.msra.mxu0 %v3020
        %3038 = vmatpush.bf16.msra.mxu0 %v3019
        %3039 = vmatpush.bf16.msra.mxu0 %v3018
        %3040 = vmatpush.bf16.msra.mxu0 %v3017
        %3041 = vmatmul.bf16.gmra.mxu0 %v2438
        %v3042 = vpop.f32.mrf.mxu0
        %v3043 = vadd.f32 0.0, %v3042
        %v3044 = vpop.f32.mrf.mxu0
        %v3045 = vadd.f32 0.0, %v3044
        %3046 = vmatmul.bf16.gmra.mxu0 %v2439
        %v3047 = vpop.f32.mrf.mxu0
        %v3048 = vadd.f32 0.0, %v3047
        %v3049 = vpop.f32.mrf.mxu0
        %v3050 = vadd.f32 0.0, %v3049
        %3051 = vmatmul.bf16.gmra.mxu0 %v2440
        %v3052 = vpop.f32.mrf.mxu0
        %v3053 = vadd.f32 0.0, %v3052
        %v3054 = vpop.f32.mrf.mxu0
        %v3055 = vadd.f32 0.0, %v3054
        %3056 = vmatmul.bf16.gmra.mxu0 %v2441
        %v3057 = vpop.f32.mrf.mxu0
        %v3058 = vadd.f32 0.0, %v3057
        %v3059 = vpop.f32.mrf.mxu0
        %v3060 = vadd.f32 0.0, %v3059
        %3061 = vmatmul.bf16.gmra.mxu0 %v2442
        %v3062 = vpop.f32.mrf.mxu0
        %v3063 = vadd.f32 0.0, %v3062
        %v3064 = vpop.f32.mrf.mxu0
        %v3065 = vadd.f32 0.0, %v3064
        %3066 = vmatmul.bf16.gmra.mxu0 %v2443
        %v3067 = vpop.f32.mrf.mxu0
        %v3068 = vadd.f32 0.0, %v3067
        %v3069 = vpop.f32.mrf.mxu0
        %v3070 = vadd.f32 0.0, %v3069
        %3071 = vmatmul.bf16.gmra.mxu0 %v2444
        %v3072 = vpop.f32.mrf.mxu0
        %v3073 = vadd.f32 0.0, %v3072
        %v3074 = vpop.f32.mrf.mxu0
        %v3075 = vadd.f32 0.0, %v3074
        %3076 = vmatmul.bf16.gmra.mxu0 %v2445
        %v3077 = vpop.f32.mrf.mxu0
        %v3078 = vadd.f32 0.0, %v3077
        %v3079 = vpop.f32.mrf.mxu0
        %v3080 = vadd.f32 0.0, %v3079
        %3081 = vdwg.mxu0
        %v3082 = vadd.f32 %v2952, %v3043
        %v3083 = vadd.f32 %v2953, %v3045
        %v3084 = vadd.f32 %v2954, %v3048
        %v3085 = vadd.f32 %v2955, %v3050
        %v3086 = vadd.f32 %v2956, %v3053
        %v3087 = vadd.f32 %v2957, %v3055
        %v3088 = vadd.f32 %v2958, %v3058
        %v3089 = vadd.f32 %v2959, %v3060
        %v3090 = vadd.f32 %v2960, %v3063
        %v3091 = vadd.f32 %v2961, %v3065
        %v3092 = vadd.f32 %v2962, %v3068
        %v3093 = vadd.f32 %v2963, %v3070
        %v3094 = vadd.f32 %v2964, %v3073
        %v3095 = vadd.f32 %v2965, %v3075
        %v3096 = vadd.f32 %v2966, %v3078
        %v3097 = vadd.f32 %v2967, %v3080
        %v3099 = vshrl.u32 %v2445, 16
        %v3101 = vshll.u32 %v2445, 16
        %v3103 = vrot.slane %v3101, 1
        %v3104 = vor.u32 %v3099, %v3103
        %v3106 = vshll.u32 %v2455, 16
        %v3108 = vrot.slane %v3106, 1
        %v3109 = vsel %vm2473, %v3104, %v3108
        %s3111 = scalar_lea.vmem [#allocation5], 256
        %v3112 = vld [vmem:[%s3111] sm:$0xf]
        %v3113 = vld [vmem:[%s3111 + $0x4] sm:$0xf]
        %v3114 = vld [vmem:[%s3111 + $0x8] sm:$0xf]
        %v3115 = vld [vmem:[%s3111 + $0xc] sm:$0xf]
        %v3116 = vld [vmem:[%s3111 + $0x10] sm:$0xf]
        %v3117 = vld [vmem:[%s3111 + $0x14] sm:$0xf]
        %v3118 = vld [vmem:[%s3111 + $0x18] sm:$0xf]
        %v3119 = vld [vmem:[%s3111 + $0x1c] sm:$0xf]
        %v3120 = vld [vmem:[%s3111 + $0x20] sm:$0xf]
        %v3121 = vld [vmem:[%s3111 + $0x24] sm:$0xf]
        %v3122 = vld [vmem:[%s3111 + $0x28] sm:$0xf]
        %v3123 = vld [vmem:[%s3111 + $0x2c] sm:$0xf]
        %v3124 = vld [vmem:[%s3111 + $0x30] sm:$0xf]
        %v3125 = vld [vmem:[%s3111 + $0x34] sm:$0xf]
        %v3126 = vld [vmem:[%s3111 + $0x38] sm:$0xf]
        %v3127 = vld [vmem:[%s3111 + $0x3c] sm:$0xf]
        %v3144 = vunpack.c.l.b16 %v3112
        %v3145 = vunpack.c.l.b16 %v3113
        %v3146 = vunpack.c.l.b16 %v3114
        %v3147 = vunpack.c.l.b16 %v3115
        %v3148 = vunpack.c.l.b16 %v3116
        %v3149 = vunpack.c.l.b16 %v3117
        %v3150 = vunpack.c.l.b16 %v3118
        %v3151 = vunpack.c.l.b16 %v3119
        %v3152 = vunpack.c.l.b16 %v3120
        %v3153 = vunpack.c.l.b16 %v3121
        %v3154 = vunpack.c.l.b16 %v3122
        %v3155 = vunpack.c.l.b16 %v3123
        %v3156 = vunpack.c.l.b16 %v3124
        %v3157 = vunpack.c.l.b16 %v3125
        %v3158 = vunpack.c.l.b16 %v3126
        %v3159 = vunpack.c.l.b16 %v3127
        %v3160 = vpack.c.b16 %v3145, %v3144
        %v3161 = vpack.c.b16 %v3147, %v3146
        %v3162 = vpack.c.b16 %v3149, %v3148
        %v3163 = vpack.c.b16 %v3151, %v3150
        %v3164 = vpack.c.b16 %v3153, %v3152
        %v3165 = vpack.c.b16 %v3155, %v3154
        %v3166 = vpack.c.b16 %v3157, %v3156
        %v3167 = vpack.c.b16 %v3159, %v3158
        %3176 = vmatpush.bf16.msra.mxu0 %v3167
        %3177 = vmatpush.bf16.msra.mxu0 %v3166
        %3178 = vmatpush.bf16.msra.mxu0 %v3165
        %3179 = vmatpush.bf16.msra.mxu0 %v3164
        %3180 = vmatpush.bf16.msra.mxu0 %v3163
        %3181 = vmatpush.bf16.msra.mxu0 %v3162
        %3182 = vmatpush.bf16.msra.mxu0 %v3161
        %3183 = vmatpush.bf16.msra.mxu0 %v3160
        %3184 = vmatmul.bf16.gmra.mxu0 %v2497
        %v3185 = vpop.f32.mrf.mxu0
        %v3186 = vadd.f32 0.0, %v3185
        %v3187 = vpop.f32.mrf.mxu0
        %v3188 = vadd.f32 0.0, %v3187
        %3189 = vmatmul.bf16.gmra.mxu0 %v2509
        %v3190 = vpop.f32.mrf.mxu0
        %v3191 = vadd.f32 0.0, %v3190
        %v3192 = vpop.f32.mrf.mxu0
        %v3193 = vadd.f32 0.0, %v3192
        %3194 = vmatmul.bf16.gmra.mxu0 %v2521
        %v3195 = vpop.f32.mrf.mxu0
        %v3196 = vadd.f32 0.0, %v3195
        %v3197 = vpop.f32.mrf.mxu0
        %v3198 = vadd.f32 0.0, %v3197
        %3199 = vmatmul.bf16.gmra.mxu0 %v2533
        %v3200 = vpop.f32.mrf.mxu0
        %v3201 = vadd.f32 0.0, %v3200
        %v3202 = vpop.f32.mrf.mxu0
        %v3203 = vadd.f32 0.0, %v3202
        %3204 = vmatmul.bf16.gmra.mxu0 %v2545
        %v3205 = vpop.f32.mrf.mxu0
        %v3206 = vadd.f32 0.0, %v3205
        %v3207 = vpop.f32.mrf.mxu0
        %v3208 = vadd.f32 0.0, %v3207
        %3209 = vmatmul.bf16.gmra.mxu0 %v2557
        %v3210 = vpop.f32.mrf.mxu0
        %v3211 = vadd.f32 0.0, %v3210
        %v3212 = vpop.f32.mrf.mxu0
        %v3213 = vadd.f32 0.0, %v3212
        %3214 = vmatmul.bf16.gmra.mxu0 %v2569
        %v3215 = vpop.f32.mrf.mxu0
        %v3216 = vadd.f32 0.0, %v3215
        %v3217 = vpop.f32.mrf.mxu0
        %v3218 = vadd.f32 0.0, %v3217
        %3219 = vmatmul.bf16.gmra.mxu0 %v3109
        %v3220 = vpop.f32.mrf.mxu0
        %v3221 = vadd.f32 0.0, %v3220
        %v3222 = vpop.f32.mrf.mxu0
        %v3223 = vadd.f32 0.0, %v3222
        %3224 = vdwg.mxu0
        %v3225 = vadd.f32 %v3082, %v3186
        %v3226 = vadd.f32 %v3083, %v3188
        %v3227 = vadd.f32 %v3084, %v3191
        %v3228 = vadd.f32 %v3085, %v3193
        %v3229 = vadd.f32 %v3086, %v3196
        %v3230 = vadd.f32 %v3087, %v3198
        %v3231 = vadd.f32 %v3088, %v3201
        %v3232 = vadd.f32 %v3089, %v3203
        %v3233 = vadd.f32 %v3090, %v3206
        %v3234 = vadd.f32 %v3091, %v3208
        %v3235 = vadd.f32 %v3092, %v3211
        %v3236 = vadd.f32 %v3093, %v3213
        %v3237 = vadd.f32 %v3094, %v3216
        %v3238 = vadd.f32 %v3095, %v3218
        %v3239 = vadd.f32 %v3096, %v3221
        %v3240 = vadd.f32 %v3097, %v3223
        %v3243 = vrot.slane %v2445, 1
        %v3244 = vrot.slane %v2455, 1
        %v3245 = vsel %vm2805, %v3243, %v3244
        %s3247 = scalar_lea.vmem [#allocation5], 320
        %v3248 = vld [vmem:[%s3247] sm:$0xf]
        %v3249 = vld [vmem:[%s3247 + $0x4] sm:$0xf]
        %v3250 = vld [vmem:[%s3247 + $0x8] sm:$0xf]
        %v3251 = vld [vmem:[%s3247 + $0xc] sm:$0xf]
        %v3252 = vld [vmem:[%s3247 + $0x10] sm:$0xf]
        %v3253 = vld [vmem:[%s3247 + $0x14] sm:$0xf]
        %v3254 = vld [vmem:[%s3247 + $0x18] sm:$0xf]
        %v3255 = vld [vmem:[%s3247 + $0x1c] sm:$0xf]
        %v3256 = vld [vmem:[%s3247 + $0x20] sm:$0xf]
        %v3257 = vld [vmem:[%s3247 + $0x24] sm:$0xf]
        %v3258 = vld [vmem:[%s3247 + $0x28] sm:$0xf]
        %v3259 = vld [vmem:[%s3247 + $0x2c] sm:$0xf]
        %v3260 = vld [vmem:[%s3247 + $0x30] sm:$0xf]
        %v3261 = vld [vmem:[%s3247 + $0x34] sm:$0xf]
        %v3262 = vld [vmem:[%s3247 + $0x38] sm:$0xf]
        %v3263 = vld [vmem:[%s3247 + $0x3c] sm:$0xf]
        %v3280 = vunpack.c.l.b16 %v3248
        %v3281 = vunpack.c.l.b16 %v3249
        %v3282 = vunpack.c.l.b16 %v3250
        %v3283 = vunpack.c.l.b16 %v3251
        %v3284 = vunpack.c.l.b16 %v3252
        %v3285 = vunpack.c.l.b16 %v3253
        %v3286 = vunpack.c.l.b16 %v3254
        %v3287 = vunpack.c.l.b16 %v3255
        %v3288 = vunpack.c.l.b16 %v3256
        %v3289 = vunpack.c.l.b16 %v3257
        %v3290 = vunpack.c.l.b16 %v3258
        %v3291 = vunpack.c.l.b16 %v3259
        %v3292 = vunpack.c.l.b16 %v3260
        %v3293 = vunpack.c.l.b16 %v3261
        %v3294 = vunpack.c.l.b16 %v3262
        %v3295 = vunpack.c.l.b16 %v3263
        %v3296 = vpack.c.b16 %v3281, %v3280
        %v3297 = vpack.c.b16 %v3283, %v3282
        %v3298 = vpack.c.b16 %v3285, %v3284
        %v3299 = vpack.c.b16 %v3287, %v3286
        %v3300 = vpack.c.b16 %v3289, %v3288
        %v3301 = vpack.c.b16 %v3291, %v3290
        %v3302 = vpack.c.b16 %v3293, %v3292
        %v3303 = vpack.c.b16 %v3295, %v3294
        %3312 = vmatpush.bf16.msra.mxu0 %v3303
        %3313 = vmatpush.bf16.msra.mxu0 %v3302
        %3314 = vmatpush.bf16.msra.mxu0 %v3301
        %3315 = vmatpush.bf16.msra.mxu0 %v3300
        %3316 = vmatpush.bf16.msra.mxu0 %v3299
        %3317 = vmatpush.bf16.msra.mxu0 %v3298
        %3318 = vmatpush.bf16.msra.mxu0 %v3297
        %3319 = vmatpush.bf16.msra.mxu0 %v3296
        %3320 = vmatmul.bf16.gmra.mxu0 %v2811
        %v3321 = vpop.f32.mrf.mxu0
        %v3322 = vadd.f32 0.0, %v3321
        %v3323 = vpop.f32.mrf.mxu0
        %v3324 = vadd.f32 0.0, %v3323
        %3325 = vmatmul.bf16.gmra.mxu0 %v2814
        %v3326 = vpop.f32.mrf.mxu0
        %v3327 = vadd.f32 0.0, %v3326
        %v3328 = vpop.f32.mrf.mxu0
        %v3329 = vadd.f32 0.0, %v3328
        %3330 = vmatmul.bf16.gmra.mxu0 %v2817
        %v3331 = vpop.f32.mrf.mxu0
        %v3332 = vadd.f32 0.0, %v3331
        %v3333 = vpop.f32.mrf.mxu0
        %v3334 = vadd.f32 0.0, %v3333
        %3335 = vmatmul.bf16.gmra.mxu0 %v2820
        %v3336 = vpop.f32.mrf.mxu0
        %v3337 = vadd.f32 0.0, %v3336
        %v3338 = vpop.f32.mrf.mxu0
        %v3339 = vadd.f32 0.0, %v3338
        %3340 = vmatmul.bf16.gmra.mxu0 %v2823
        %v3341 = vpop.f32.mrf.mxu0
        %v3342 = vadd.f32 0.0, %v3341
        %v3343 = vpop.f32.mrf.mxu0
        %v3344 = vadd.f32 0.0, %v3343
        %3345 = vmatmul.bf16.gmra.mxu0 %v2826
        %v3346 = vpop.f32.mrf.mxu0
        %v3347 = vadd.f32 0.0, %v3346
        %v3348 = vpop.f32.mrf.mxu0
        %v3349 = vadd.f32 0.0, %v3348
        %3350 = vmatmul.bf16.gmra.mxu0 %v2829
        %v3351 = vpop.f32.mrf.mxu0
        %v3352 = vadd.f32 0.0, %v3351
        %v3353 = vpop.f32.mrf.mxu0
        %v3354 = vadd.f32 0.0, %v3353
        %3355 = vmatmul.bf16.gmra.mxu0 %v3245
        %v3356 = vpop.f32.mrf.mxu0
        %v3357 = vadd.f32 0.0, %v3356
        %v3358 = vpop.f32.mrf.mxu0
        %v3359 = vadd.f32 0.0, %v3358
        %3360 = vdwg.mxu0
        %v3361 = vadd.f32 %v3225, %v3322
        %v3362 = vadd.f32 %v3226, %v3324
        %v3363 = vadd.f32 %v3227, %v3327
        %v3364 = vadd.f32 %v3228, %v3329
        %v3365 = vadd.f32 %v3229, %v3332
        %v3366 = vadd.f32 %v3230, %v3334
        %v3367 = vadd.f32 %v3231, %v3337
        %v3368 = vadd.f32 %v3232, %v3339
        %v3369 = vadd.f32 %v3233, %v3342
        %v3370 = vadd.f32 %v3234, %v3344
        %v3371 = vadd.f32 %v3235, %v3347
        %v3372 = vadd.f32 %v3236, %v3349
        %v3373 = vadd.f32 %v3237, %v3352
        %v3374 = vadd.f32 %v3238, %v3354
        %v3375 = vadd.f32 %v3239, %v3357
        %v3376 = vadd.f32 %v3240, %v3359
        %s3377 = scalar_lea.vmem [#allocation5], 384
        %v3378 = vld [vmem:[%s3377] sm:$0xf]
        %v3379 = vld [vmem:[%s3377 + $0x4] sm:$0xf]
        %v3380 = vld [vmem:[%s3377 + $0x8] sm:$0xf]
        %v3381 = vld [vmem:[%s3377 + $0xc] sm:$0xf]
        %v3382 = vld [vmem:[%s3377 + $0x10] sm:$0xf]
        %v3383 = vld [vmem:[%s3377 + $0x14] sm:$0xf]
        %v3384 = vld [vmem:[%s3377 + $0x18] sm:$0xf]
        %v3385 = vld [vmem:[%s3377 + $0x1c] sm:$0xf]
        %v3386 = vld [vmem:[%s3377 + $0x20] sm:$0xf]
        %v3387 = vld [vmem:[%s3377 + $0x24] sm:$0xf]
        %v3388 = vld [vmem:[%s3377 + $0x28] sm:$0xf]
        %v3389 = vld [vmem:[%s3377 + $0x2c] sm:$0xf]
        %v3390 = vld [vmem:[%s3377 + $0x30] sm:$0xf]
        %v3391 = vld [vmem:[%s3377 + $0x34] sm:$0xf]
        %v3392 = vld [vmem:[%s3377 + $0x38] sm:$0xf]
        %v3393 = vld [vmem:[%s3377 + $0x3c] sm:$0xf]
        %v3410 = vunpack.c.l.b16 %v3378
        %v3411 = vunpack.c.l.b16 %v3379
        %v3412 = vunpack.c.l.b16 %v3380
        %v3413 = vunpack.c.l.b16 %v3381
        %v3414 = vunpack.c.l.b16 %v3382
        %v3415 = vunpack.c.l.b16 %v3383
        %v3416 = vunpack.c.l.b16 %v3384
        %v3417 = vunpack.c.l.b16 %v3385
        %v3418 = vunpack.c.l.b16 %v3386
        %v3419 = vunpack.c.l.b16 %v3387
        %v3420 = vunpack.c.l.b16 %v3388
        %v3421 = vunpack.c.l.b16 %v3389
        %v3422 = vunpack.c.l.b16 %v3390
        %v3423 = vunpack.c.l.b16 %v3391
        %v3424 = vunpack.c.l.b16 %v3392
        %v3425 = vunpack.c.l.b16 %v3393
        %v3426 = vpack.c.b16 %v3411, %v3410
        %v3427 = vpack.c.b16 %v3413, %v3412
        %v3428 = vpack.c.b16 %v3415, %v3414
        %v3429 = vpack.c.b16 %v3417, %v3416
        %v3430 = vpack.c.b16 %v3419, %v3418
        %v3431 = vpack.c.b16 %v3421, %v3420
        %v3432 = vpack.c.b16 %v3423, %v3422
        %v3433 = vpack.c.b16 %v3425, %v3424
        %3442 = vmatpush.bf16.msra.mxu0 %v3433
        %3443 = vmatpush.bf16.msra.mxu0 %v3432
        %3444 = vmatpush.bf16.msra.mxu0 %v3431
        %3445 = vmatpush.bf16.msra.mxu0 %v3430
        %3446 = vmatpush.bf16.msra.mxu0 %v3429
        %3447 = vmatpush.bf16.msra.mxu0 %v3428
        %3448 = vmatpush.bf16.msra.mxu0 %v3427
        %3449 = vmatpush.bf16.msra.mxu0 %v3426
        %3450 = vmatmul.bf16.gmra.mxu0 %v2439
        %v3451 = vpop.f32.mrf.mxu0
        %v3452 = vadd.f32 0.0, %v3451
        %v3453 = vpop.f32.mrf.mxu0
        %v3454 = vadd.f32 0.0, %v3453
        %3455 = vmatmul.bf16.gmra.mxu0 %v2440
        %v3456 = vpop.f32.mrf.mxu0
        %v3457 = vadd.f32 0.0, %v3456
        %v3458 = vpop.f32.mrf.mxu0
        %v3459 = vadd.f32 0.0, %v3458
        %3460 = vmatmul.bf16.gmra.mxu0 %v2441
        %v3461 = vpop.f32.mrf.mxu0
        %v3462 = vadd.f32 0.0, %v3461
        %v3463 = vpop.f32.mrf.mxu0
        %v3464 = vadd.f32 0.0, %v3463
        %3465 = vmatmul.bf16.gmra.mxu0 %v2442
        %v3466 = vpop.f32.mrf.mxu0
        %v3467 = vadd.f32 0.0, %v3466
        %v3468 = vpop.f32.mrf.mxu0
        %v3469 = vadd.f32 0.0, %v3468
        %3470 = vmatmul.bf16.gmra.mxu0 %v2443
        %v3471 = vpop.f32.mrf.mxu0
        %v3472 = vadd.f32 0.0, %v3471
        %v3473 = vpop.f32.mrf.mxu0
        %v3474 = vadd.f32 0.0, %v3473
        %3475 = vmatmul.bf16.gmra.mxu0 %v2444
        %v3476 = vpop.f32.mrf.mxu0
        %v3477 = vadd.f32 0.0, %v3476
        %v3478 = vpop.f32.mrf.mxu0
        %v3479 = vadd.f32 0.0, %v3478
        %3480 = vmatmul.bf16.gmra.mxu0 %v2445
        %v3481 = vpop.f32.mrf.mxu0
        %v3482 = vadd.f32 0.0, %v3481
        %v3483 = vpop.f32.mrf.mxu0
        %v3484 = vadd.f32 0.0, %v3483
        %3485 = vmatmul.bf16.gmra.mxu0 %v2446
        %v3486 = vpop.f32.mrf.mxu0
        %v3487 = vadd.f32 0.0, %v3486
        %v3488 = vpop.f32.mrf.mxu0
        %v3489 = vadd.f32 0.0, %v3488
        %3490 = vdwg.mxu0
        %v3491 = vadd.f32 %v3361, %v3452
        %v3492 = vadd.f32 %v3362, %v3454
        %v3493 = vadd.f32 %v3363, %v3457
        %v3494 = vadd.f32 %v3364, %v3459
        %v3495 = vadd.f32 %v3365, %v3462
        %v3496 = vadd.f32 %v3366, %v3464
        %v3497 = vadd.f32 %v3367, %v3467
        %v3498 = vadd.f32 %v3368, %v3469
        %v3499 = vadd.f32 %v3369, %v3472
        %v3500 = vadd.f32 %v3370, %v3474
        %v3501 = vadd.f32 %v3371, %v3477
        %v3502 = vadd.f32 %v3372, %v3479
        %v3503 = vadd.f32 %v3373, %v3482
        %v3504 = vadd.f32 %v3374, %v3484
        %v3505 = vadd.f32 %v3375, %v3487
        %v3506 = vadd.f32 %v3376, %v3489
        %v3508 = vshrl.u32 %v2446, 16
        %v3510 = vshll.u32 %v2446, 16
        %v3512 = vrot.slane %v3510, 1
        %v3513 = vor.u32 %v3508, %v3512
        %v3515 = vshll.u32 %v2456, 16
        %v3517 = vrot.slane %v3515, 1
        %v3518 = vsel %vm2473, %v3513, %v3517
        %s3520 = scalar_lea.vmem [#allocation5], 448
        %v3521 = vld [vmem:[%s3520] sm:$0xf]
        %v3522 = vld [vmem:[%s3520 + $0x4] sm:$0xf]
        %v3523 = vld [vmem:[%s3520 + $0x8] sm:$0xf]
        %v3524 = vld [vmem:[%s3520 + $0xc] sm:$0xf]
        %v3525 = vld [vmem:[%s3520 + $0x10] sm:$0xf]
        %v3526 = vld [vmem:[%s3520 + $0x14] sm:$0xf]
        %v3527 = vld [vmem:[%s3520 + $0x18] sm:$0xf]
        %v3528 = vld [vmem:[%s3520 + $0x1c] sm:$0xf]
        %v3529 = vld [vmem:[%s3520 + $0x20] sm:$0xf]
        %v3530 = vld [vmem:[%s3520 + $0x24] sm:$0xf]
        %v3531 = vld [vmem:[%s3520 + $0x28] sm:$0xf]
        %v3532 = vld [vmem:[%s3520 + $0x2c] sm:$0xf]
        %v3533 = vld [vmem:[%s3520 + $0x30] sm:$0xf]
        %v3534 = vld [vmem:[%s3520 + $0x34] sm:$0xf]
        %v3535 = vld [vmem:[%s3520 + $0x38] sm:$0xf]
        %v3536 = vld [vmem:[%s3520 + $0x3c] sm:$0xf]
        %v3553 = vunpack.c.l.b16 %v3521
        %v3554 = vunpack.c.l.b16 %v3522
        %v3555 = vunpack.c.l.b16 %v3523
        %v3556 = vunpack.c.l.b16 %v3524
        %v3557 = vunpack.c.l.b16 %v3525
        %v3558 = vunpack.c.l.b16 %v3526
        %v3559 = vunpack.c.l.b16 %v3527
        %v3560 = vunpack.c.l.b16 %v3528
        %v3561 = vunpack.c.l.b16 %v3529
        %v3562 = vunpack.c.l.b16 %v3530
        %v3563 = vunpack.c.l.b16 %v3531
        %v3564 = vunpack.c.l.b16 %v3532
        %v3565 = vunpack.c.l.b16 %v3533
        %v3566 = vunpack.c.l.b16 %v3534
        %v3567 = vunpack.c.l.b16 %v3535
        %v3568 = vunpack.c.l.b16 %v3536
        %v3569 = vpack.c.b16 %v3554, %v3553
        %v3570 = vpack.c.b16 %v3556, %v3555
        %v3571 = vpack.c.b16 %v3558, %v3557
        %v3572 = vpack.c.b16 %v3560, %v3559
        %v3573 = vpack.c.b16 %v3562, %v3561
        %v3574 = vpack.c.b16 %v3564, %v3563
        %v3575 = vpack.c.b16 %v3566, %v3565
        %v3576 = vpack.c.b16 %v3568, %v3567
        %3585 = vmatpush.bf16.msra.mxu0 %v3576
        %3586 = vmatpush.bf16.msra.mxu0 %v3575
        %3587 = vmatpush.bf16.msra.mxu0 %v3574
        %3588 = vmatpush.bf16.msra.mxu0 %v3573
        %3589 = vmatpush.bf16.msra.mxu0 %v3572
        %3590 = vmatpush.bf16.msra.mxu0 %v3571
        %3591 = vmatpush.bf16.msra.mxu0 %v3570
        %3592 = vmatpush.bf16.msra.mxu0 %v3569
        %3593 = vmatmul.bf16.gmra.mxu0 %v2509
        %v3594 = vpop.f32.mrf.mxu0
        %v3595 = vadd.f32 0.0, %v3594
        %v3596 = vpop.f32.mrf.mxu0
        %v3597 = vadd.f32 0.0, %v3596
        %3598 = vmatmul.bf16.gmra.mxu0 %v2521
        %v3599 = vpop.f32.mrf.mxu0
        %v3600 = vadd.f32 0.0, %v3599
        %v3601 = vpop.f32.mrf.mxu0
        %v3602 = vadd.f32 0.0, %v3601
        %3603 = vmatmul.bf16.gmra.mxu0 %v2533
        %v3604 = vpop.f32.mrf.mxu0
        %v3605 = vadd.f32 0.0, %v3604
        %v3606 = vpop.f32.mrf.mxu0
        %v3607 = vadd.f32 0.0, %v3606
        %3608 = vmatmul.bf16.gmra.mxu0 %v2545
        %v3609 = vpop.f32.mrf.mxu0
        %v3610 = vadd.f32 0.0, %v3609
        %v3611 = vpop.f32.mrf.mxu0
        %v3612 = vadd.f32 0.0, %v3611
        %3613 = vmatmul.bf16.gmra.mxu0 %v2557
        %v3614 = vpop.f32.mrf.mxu0
        %v3615 = vadd.f32 0.0, %v3614
        %v3616 = vpop.f32.mrf.mxu0
        %v3617 = vadd.f32 0.0, %v3616
        %3618 = vmatmul.bf16.gmra.mxu0 %v2569
        %v3619 = vpop.f32.mrf.mxu0
        %v3620 = vadd.f32 0.0, %v3619
        %v3621 = vpop.f32.mrf.mxu0
        %v3622 = vadd.f32 0.0, %v3621
        %3623 = vmatmul.bf16.gmra.mxu0 %v3109
        %v3624 = vpop.f32.mrf.mxu0
        %v3625 = vadd.f32 0.0, %v3624
        %v3626 = vpop.f32.mrf.mxu0
        %v3627 = vadd.f32 0.0, %v3626
        %3628 = vmatmul.bf16.gmra.mxu0 %v3518
        %v3629 = vpop.f32.mrf.mxu0
        %v3630 = vadd.f32 0.0, %v3629
        %v3631 = vpop.f32.mrf.mxu0
        %v3632 = vadd.f32 0.0, %v3631
        %3633 = vdwg.mxu0
        %v3634 = vadd.f32 %v3491, %v3595
        %v3635 = vadd.f32 %v3492, %v3597
        %v3636 = vadd.f32 %v3493, %v3600
        %v3637 = vadd.f32 %v3494, %v3602
        %v3638 = vadd.f32 %v3495, %v3605
        %v3639 = vadd.f32 %v3496, %v3607
        %v3640 = vadd.f32 %v3497, %v3610
        %v3641 = vadd.f32 %v3498, %v3612
        %v3642 = vadd.f32 %v3499, %v3615
        %v3643 = vadd.f32 %v3500, %v3617
        %v3644 = vadd.f32 %v3501, %v3620
        %v3645 = vadd.f32 %v3502, %v3622
        %v3646 = vadd.f32 %v3503, %v3625
        %v3647 = vadd.f32 %v3504, %v3627
        %v3648 = vadd.f32 %v3505, %v3630
        %v3649 = vadd.f32 %v3506, %v3632
        %v3652 = vrot.slane %v2446, 1
        %v3653 = vrot.slane %v2456, 1
        %v3654 = vsel %vm2805, %v3652, %v3653
        %s3656 = scalar_lea.vmem [#allocation5], 512
        %v3657 = vld [vmem:[%s3656] sm:$0xf]
        %v3658 = vld [vmem:[%s3656 + $0x4] sm:$0xf]
        %v3659 = vld [vmem:[%s3656 + $0x8] sm:$0xf]
        %v3660 = vld [vmem:[%s3656 + $0xc] sm:$0xf]
        %v3661 = vld [vmem:[%s3656 + $0x10] sm:$0xf]
        %v3662 = vld [vmem:[%s3656 + $0x14] sm:$0xf]
        %v3663 = vld [vmem:[%s3656 + $0x18] sm:$0xf]
        %v3664 = vld [vmem:[%s3656 + $0x1c] sm:$0xf]
        %v3665 = vld [vmem:[%s3656 + $0x20] sm:$0xf]
        %v3666 = vld [vmem:[%s3656 + $0x24] sm:$0xf]
        %v3667 = vld [vmem:[%s3656 + $0x28] sm:$0xf]
        %v3668 = vld [vmem:[%s3656 + $0x2c] sm:$0xf]
        %v3669 = vld [vmem:[%s3656 + $0x30] sm:$0xf]
        %v3670 = vld [vmem:[%s3656 + $0x34] sm:$0xf]
        %v3671 = vld [vmem:[%s3656 + $0x38] sm:$0xf]
        %v3672 = vld [vmem:[%s3656 + $0x3c] sm:$0xf]
        %v3689 = vunpack.c.l.b16 %v3657
        %v3690 = vunpack.c.l.b16 %v3658
        %v3691 = vunpack.c.l.b16 %v3659
        %v3692 = vunpack.c.l.b16 %v3660
        %v3693 = vunpack.c.l.b16 %v3661
        %v3694 = vunpack.c.l.b16 %v3662
        %v3695 = vunpack.c.l.b16 %v3663
        %v3696 = vunpack.c.l.b16 %v3664
        %v3697 = vunpack.c.l.b16 %v3665
        %v3698 = vunpack.c.l.b16 %v3666
        %v3699 = vunpack.c.l.b16 %v3667
        %v3700 = vunpack.c.l.b16 %v3668
        %v3701 = vunpack.c.l.b16 %v3669
        %v3702 = vunpack.c.l.b16 %v3670
        %v3703 = vunpack.c.l.b16 %v3671
        %v3704 = vunpack.c.l.b16 %v3672
        %v3705 = vpack.c.b16 %v3690, %v3689
        %v3706 = vpack.c.b16 %v3692, %v3691
        %v3707 = vpack.c.b16 %v3694, %v3693
        %v3708 = vpack.c.b16 %v3696, %v3695
        %v3709 = vpack.c.b16 %v3698, %v3697
        %v3710 = vpack.c.b16 %v3700, %v3699
        %v3711 = vpack.c.b16 %v3702, %v3701
        %v3712 = vpack.c.b16 %v3704, %v3703
        %3721 = vmatpush.bf16.msra.mxu0 %v3712
        %3722 = vmatpush.bf16.msra.mxu0 %v3711
        %3723 = vmatpush.bf16.msra.mxu0 %v3710
        %3724 = vmatpush.bf16.msra.mxu0 %v3709
        %3725 = vmatpush.bf16.msra.mxu0 %v3708
        %3726 = vmatpush.bf16.msra.mxu0 %v3707
        %3727 = vmatpush.bf16.msra.mxu0 %v3706
        %3728 = vmatpush.bf16.msra.mxu0 %v3705
        %3729 = vmatmul.bf16.gmra.mxu0 %v2814
        %v3730 = vpop.f32.mrf.mxu0
        %v3731 = vadd.f32 0.0, %v3730
        %v3732 = vpop.f32.mrf.mxu0
        %v3733 = vadd.f32 0.0, %v3732
        %3734 = vmatmul.bf16.gmra.mxu0 %v2817
        %v3735 = vpop.f32.mrf.mxu0
        %v3736 = vadd.f32 0.0, %v3735
        %v3737 = vpop.f32.mrf.mxu0
        %v3738 = vadd.f32 0.0, %v3737
        %3739 = vmatmul.bf16.gmra.mxu0 %v2820
        %v3740 = vpop.f32.mrf.mxu0
        %v3741 = vadd.f32 0.0, %v3740
        %v3742 = vpop.f32.mrf.mxu0
        %v3743 = vadd.f32 0.0, %v3742
        %3744 = vmatmul.bf16.gmra.mxu0 %v2823
        %v3745 = vpop.f32.mrf.mxu0
        %v3746 = vadd.f32 0.0, %v3745
        %v3747 = vpop.f32.mrf.mxu0
        %v3748 = vadd.f32 0.0, %v3747
        %3749 = vmatmul.bf16.gmra.mxu0 %v2826
        %v3750 = vpop.f32.mrf.mxu0
        %v3751 = vadd.f32 0.0, %v3750
        %v3752 = vpop.f32.mrf.mxu0
        %v3753 = vadd.f32 0.0, %v3752
        %3754 = vmatmul.bf16.gmra.mxu0 %v2829
        %v3755 = vpop.f32.mrf.mxu0
        %v3756 = vadd.f32 0.0, %v3755
        %v3757 = vpop.f32.mrf.mxu0
        %v3758 = vadd.f32 0.0, %v3757
        %3759 = vmatmul.bf16.gmra.mxu0 %v3245
        %v3760 = vpop.f32.mrf.mxu0
        %v3761 = vadd.f32 0.0, %v3760
        %v3762 = vpop.f32.mrf.mxu0
        %v3763 = vadd.f32 0.0, %v3762
        %3764 = vmatmul.bf16.gmra.mxu0 %v3654
        %v3765 = vpop.f32.mrf.mxu0
        %v3766 = vadd.f32 0.0, %v3765
        %v3767 = vpop.f32.mrf.mxu0
        %v3768 = vadd.f32 0.0, %v3767
        %3769 = vdwg.mxu0
        %v3770 = vadd.f32 %v3634, %v3731
        %v3771 = vadd.f32 %v3635, %v3733
        %v3772 = vadd.f32 %v3636, %v3736
        %v3773 = vadd.f32 %v3637, %v3738
        %v3774 = vadd.f32 %v3638, %v3741
        %v3775 = vadd.f32 %v3639, %v3743
        %v3776 = vadd.f32 %v3640, %v3746
        %v3777 = vadd.f32 %v3641, %v3748
        %v3778 = vadd.f32 %v3642, %v3751
        %v3779 = vadd.f32 %v3643, %v3753
        %v3780 = vadd.f32 %v3644, %v3756
        %v3781 = vadd.f32 %v3645, %v3758
        %v3782 = vadd.f32 %v3646, %v3761
        %v3783 = vadd.f32 %v3647, %v3763
        %v3784 = vadd.f32 %v3648, %v3766
        %v3785 = vadd.f32 %v3649, %v3768
        %v3786 = vld [vmem:[%s283] sm:$0xff]
        %v3787 = vld [vmem:[%s283 + $0x8] sm:$0xff]
        %v3788 = vld [vmem:[%s283 + $0x10] sm:$0xff]
        %v3789 = vld [vmem:[%s283 + $0x18] sm:$0xff]
        %v3790 = vld [vmem:[%s283 + $0x20] sm:$0xff]
        %v3791 = vld [vmem:[%s283 + $0x28] sm:$0xff]
        %v3792 = vld [vmem:[%s283 + $0x30] sm:$0xff]
        %v3793 = vld [vmem:[%s283 + $0x38] sm:$0xff]
        %v3794 = vld [vmem:[%s283 + $0x40] sm:$0xff]
        %v3795 = vld [vmem:[%s283 + $0x48] sm:$0xff]
        %v3796 = vld [vmem:[%s283 + $0x50] sm:$0xff]
        %v3797 = vld [vmem:[%s283 + $0x58] sm:$0xff]
        %v3798 = vld [vmem:[%s283 + $0x60] sm:$0xff]
        %v3799 = vld [vmem:[%s283 + $0x68] sm:$0xff]
        %v3800 = vld [vmem:[%s283 + $0x70] sm:$0xff]
        %v3801 = vld [vmem:[%s283 + $0x78] sm:$0xff]
        %v3802 = vld [vmem:[%s5] sm:$0x1]
        %v3804 = vperm.slane %v3802, 0
        %v3806 = vadd.f32 %v3770, %v3804
        %v3807 = vadd.f32 %v3771, %v3804
        %v3808 = vadd.f32 %v3772, %v3804
        %v3809 = vadd.f32 %v3773, %v3804
        %v3810 = vadd.f32 %v3774, %v3804
        %v3811 = vadd.f32 %v3775, %v3804
        %v3812 = vadd.f32 %v3776, %v3804
        %v3813 = vadd.f32 %v3777, %v3804
        %v3814 = vadd.f32 %v3778, %v3804
        %v3815 = vadd.f32 %v3779, %v3804
        %v3816 = vadd.f32 %v3780, %v3804
        %v3817 = vadd.f32 %v3781, %v3804
        %v3818 = vadd.f32 %v3782, %v3804
        %v3819 = vadd.f32 %v3783, %v3804
        %v3820 = vadd.f32 %v3784, %v3804
        %v3821 = vadd.f32 %v3785, %v3804
        %v3822 = vadd.f32 %v3806, %v3786
        %v3823 = vadd.f32 %v3807, %v3787
        %v3824 = vadd.f32 %v3808, %v3788
        %v3825 = vadd.f32 %v3809, %v3789
        %v3826 = vadd.f32 %v3810, %v3790
        %v3827 = vadd.f32 %v3811, %v3791
        %v3828 = vadd.f32 %v3812, %v3792
        %v3829 = vadd.f32 %v3813, %v3793
        %v3830 = vadd.f32 %v3814, %v3794
        %v3831 = vadd.f32 %v3815, %v3795
        %v3832 = vadd.f32 %v3816, %v3796
        %v3833 = vadd.f32 %v3817, %v3797
        %v3834 = vadd.f32 %v3818, %v3798
        %v3835 = vadd.f32 %v3819, %v3799
        %v3836 = vadd.f32 %v3820, %v3800
        %v3837 = vadd.f32 %v3821, %v3801
        %v3838 = vmax.f32 %v3822, 0.0
        %v3839 = vmax.f32 %v3823, 0.0
        %v3840 = vmax.f32 %v3824, 0.0
        %v3841 = vmax.f32 %v3825, 0.0
        %v3842 = vmax.f32 %v3826, 0.0
        %v3843 = vmax.f32 %v3827, 0.0
        %v3844 = vmax.f32 %v3828, 0.0
        %v3845 = vmax.f32 %v3829, 0.0
        %v3846 = vmax.f32 %v3830, 0.0
        %v3847 = vmax.f32 %v3831, 0.0
        %v3848 = vmax.f32 %v3832, 0.0
        %v3849 = vmax.f32 %v3833, 0.0
        %v3850 = vmax.f32 %v3834, 0.0
        %v3851 = vmax.f32 %v3835, 0.0
        %v3852 = vmax.f32 %v3836, 0.0
        %v3853 = vmax.f32 %v3837, 0.0
        %3854 = vst [vmem:[%s322] sm:$0xff] %v3838
        %3855 = vst [vmem:[%s322 + $0x8] sm:$0xff] %v3839
        %3856 = vst [vmem:[%s322 + $0x10] sm:$0xff] %v3840
        %3857 = vst [vmem:[%s322 + $0x18] sm:$0xff] %v3841
        %3858 = vst [vmem:[%s322 + $0x20] sm:$0xff] %v3842
        %3859 = vst [vmem:[%s322 + $0x28] sm:$0xff] %v3843
        %3860 = vst [vmem:[%s322 + $0x30] sm:$0xff] %v3844
        %3861 = vst [vmem:[%s322 + $0x38] sm:$0xff] %v3845
        %3862 = vst [vmem:[%s322 + $0x40] sm:$0xff] %v3846
        %3863 = vst [vmem:[%s322 + $0x48] sm:$0xff] %v3847
        %3864 = vst [vmem:[%s322 + $0x50] sm:$0xff] %v3848
        %3865 = vst [vmem:[%s322 + $0x58] sm:$0xff] %v3849
        %3866 = vst [vmem:[%s322 + $0x60] sm:$0xff] %v3850
        %3867 = vst [vmem:[%s322 + $0x68] sm:$0xff] %v3851
        %3868 = vst [vmem:[%s322 + $0x70] sm:$0xff] %v3852
        %3869 = vst [vmem:[%s322 + $0x78] sm:$0xff] %v3853
        %s3870 = sand.u32 %s184, 1
        %s3871 = scalar_lea.sflag [#allocation4], %s3870
        %s3872 = sand.u32 %s184, 1
        %s3873 = smul.addr %s3872, 128
        %s3874 = scalar_lea.vmem [#allocation7], %s3873
        // Predicated region
        $region53: #{tpu_custom_call.1} parent=43 // pred_check
          %p3875 = pneg %p194
        $region54: #{tpu_custom_call.1} parent=43 // pred_check_branch
          %3877 = sbr.rel (%p3875) target = $region56
        $region55: #{tpu_custom_call.1} parent=43 // pred_region
          %s3878 = smul.u32 8, %s29
          %3880 = vsyncadd %s3871, 0
          %s3881 = smul.addr %s3878, 2
          %s3882 = smul.addr %s28, 32
          %s3883 = sadd.s32 %s3881, %s3882
          %s3884 = smul.addr %s3883, 8
          %s3885 = scalar_lea.hbm %s6, %s3884
          %s3886 = sshll.u32 %s3874, 4
          %s3887 = int_to_ptr.vmem [resolvable:$true] %s3886
          %s3888 = sshll.u32 %s3885, 4
          %s3889 = int_to_ptr.hbm [resolvable:$true] %s3888
          %3894 = dma.vmem_to_hbm [thread:$0]  %s3887, 2048, %s3889, %s3871, 128, 128, 8
        $region56: #{tpu_custom_call.1} parent=43 // pred_fallthru
          _
      $region44: #{tpu_custom_call.1} parent=5 // pred_fallthru
        _
      %p3895 = scmp.le.s32.totalorder 2, %s19
      // Predicated region
      $region57: #{tpu_custom_call.1} parent=5 // pred_check
        %p3896 = pneg %p3895
      $region58: #{tpu_custom_call.1} parent=5 // pred_check_branch
        %3898 = sbr.rel (%p3896) target = $region60
      $region59: #{tpu_custom_call.1} parent=5 // pred_region
        %s3899 = ssub.s32 %s19, 2
        // Predicated region
        $region61: #{tpu_custom_call.1} parent=59 // pred_check
          %p3900 = pneg %p200
        $region62: #{tpu_custom_call.1} parent=59 // pred_check_branch
          %3902 = sbr.rel (%p3900) target = $region64
        $region63: #{tpu_custom_call.1} parent=59 // pred_region
          %s3903 = sand.u32 %s185, 1
          %s3904 = scalar_lea.sflag [#allocation4], %s3903
          %s3905 = sand.u32 %s185, 1
          %s3906 = smul.addr %s3905, 128
          %s3907 = scalar_lea.vmem [#allocation7], %s3906
          %3909 = dma.done %s3904, 2048
        $region64: #{tpu_custom_call.1} parent=59 // pred_fallthru
          _
      $region60: #{tpu_custom_call.1} parent=5 // pred_fallthru
        _
    $region6: #{tpu_custom_call.1} parent=1 // loop_footer
      %s23 = sadd.s32 1, %s19
    $region7: #{tpu_custom_call.1} parent=1 // loop_footer_branch
      %18 = sbr.rel target = $region3
    $region8: #{tpu_custom_call.1} parent=1 // loop_exit
      _
    %3910 = vsyncpa [#allocation3], 1
    %s3911 = scalar_lea.sflag [#allocation3], 1
    %3912 = vsyncpa %s3911, 1
    %3913 = vsyncpa [#allocation6], 1
    %3914 = vsyncpa [#allocation4], 1
    %s3915 = scalar_lea.sflag [#allocation4], 1
    %3916 = vsyncpa %s3915, 1

</llo_original>
